<compile_context>
chip_gen: v7x
topology: tpu7x:2x2x1
jax: 0.10.0
libtpu: 0.0.40
codegen_flags: <defaults>
</compile_context>

<pallas_src>
import jax
import jax.numpy as jnp
from jax.experimental import pallas as pl
from jax.experimental.pallas import tpu as pltpu

EFF_C = 112                        # efficientnet_b0 feature_info.channels()[3]
EFF_PAD = 128                      # eff channels padded to one lane tile
SWIN_C = 384                       # swin_tiny feature_info.channels()[2]
FUSED_C = EFF_C + SWIN_C           # 496
TARGET_C = 336
PAD_C = 384                        # TARGET_C padded to a multiple of 128
REDUCTION = 16
HIDDEN_C = TARGET_C // REDUCTION   # 21
PAD_HID = 128                      # hidden dim padded to one vreg width
BN_EPS = 1e-5
SP_K = 7                           # CBAM spatial-attention kernel size
SP_PAD = SP_K // 2


# ---------------------------------------------------------------------------
# Fused kernel: split-K 1x1 conv (bf16 MXU) + folded BN + ReLU + ResCBAM.
# TODO(synk): ResCBAM source was not provided; standard CBAM with a residual
# connection (out = x + sa * ca * x) is implemented here.
# ---------------------------------------------------------------------------
def fused_head_kernel(eff_ref, swin_ref, w_eff_ref, w_swin_ref, shift_ref,
                      fc1_ref, fc2_ref, wsp_ref, o_ref, pad_ref):
    b_blk, H, W, _ = eff_ref.shape
    HW = H * W
    M = b_blk * HW
    n_maps = 2 * b_blk

    # ---- 1x1 reduce conv as split-K matmul (bf16 operands, f32 accumulate);
    #      BN scale folded into the weights -> shift add + ReLU only.
    eff2 = eff_ref[...].reshape(M, EFF_PAD)                          # bf16
    # TODO(synk): this cast belongs in the (external) swin backbone's last op;
    # done in-kernel because the producer emits f32.
    swin2 = swin_ref[...].reshape(M, SWIN_C).astype(jnp.bfloat16)
    y2 = jnp.dot(eff2, w_eff_ref[...], preferred_element_type=jnp.float32)
    y2 = y2 + jnp.dot(swin2, w_swin_ref[...],
                      preferred_element_type=jnp.float32)
    y2 = jnp.maximum(y2 + shift_ref[...], 0.0)    # (M, PAD_C) f32, pad cols==0

    # ---- channel attention (per image): avg+max spatial pool -> shared MLP.
    y2b = y2.reshape(b_blk, HW, PAD_C)
    avg_p = jnp.sum(y2b, axis=1) * (1.0 / HW)                    # (b_blk, CP)
    max_p = jnp.max(y2b, axis=1)                                 # (b_blk, CP)
    pooled = jnp.concatenate([avg_p, max_p], axis=0).astype(jnp.bfloat16)
    h = jnp.maximum(
        jnp.dot(pooled, fc1_ref[...], preferred_element_type=jnp.float32), 0.0)
    mlp = jnp.dot(h.astype(jnp.bfloat16), fc2_ref[...],
                  preferred_element_type=jnp.float32)            # (2*b_blk, CP)
    ca = jax.nn.sigmoid(mlp[:b_blk] + mlp[b_blk:])               # (b_blk, CP)

    # ---- spatial pooling.  Padded channels 336..383 are exactly zero
    # (zero-padded weights/shift/fc2 + ReLU), so sum/336 equals the real mean
    # and the channel max is unaffected (x_ca >= 0).
    y4 = y2.reshape(b_blk, H, W, PAD_C)
    x_ca = y4 * ca[:, None, None, :]
    sp_avg = jnp.sum(x_ca, axis=-1) * (1.0 / TARGET_C)           # (b_blk, H, W)
    sp_max = jnp.max(x_ca, axis=-1)                              # (b_blk, H, W)

    # ---- 7x7 "SAME" conv over [avg; max]: one combined padded scratch for
    # all maps (avg slabs then max slabs), border-only zeroing (interior is
    # fully overwritten every step), one window load per tap (49, not 98).
    Hp, Wp = H + 2 * SP_PAD, W + 2 * SP_PAD
    zrow = jnp.zeros((n_maps, SP_PAD, Wp), jnp.float32)
    zcol = jnp.zeros((n_maps, H, SP_PAD), jnp.float32)
    pad_ref[:, pl.ds(0, SP_PAD), :] = zrow
    pad_ref[:, pl.ds(SP_PAD + H, SP_PAD), :] = zrow
    pad_ref[:, pl.ds(SP_PAD, H), pl.ds(0, SP_PAD)] = zcol
    pad_ref[:, pl.ds(SP_PAD, H), pl.ds(SP_PAD + W, SP_PAD)] = zcol
    pad_ref[pl.ds(0, b_blk), pl.ds(SP_PAD, H), pl.ds(SP_PAD, W)] = sp_avg
    pad_ref[pl.ds(b_blk, b_blk), pl.ds(SP_PAD, H), pl.ds(SP_PAD, W)] = sp_max

    acc_a = jnp.zeros((b_blk, H, W), jnp.float32)
    acc_m = jnp.zeros((b_blk, H, W), jnp.float32)
    for dy in range(SP_K):                            # static 49-tap unroll
        for dx in range(SP_K):
            win = pad_ref[:, pl.ds(dy, H), pl.ds(dx, W)]   # one load, all maps
            w_a = wsp_ref[dy * SP_K + dx]                  # avg-map tap
            w_m = wsp_ref[SP_K * SP_K + dy * SP_K + dx]    # max-map tap
            acc_a = acc_a + w_a * win[:b_blk]
            acc_m = acc_m + w_m * win[b_blk:]
    sa = jax.nn.sigmoid(acc_a + acc_m)                           # (b_blk, H, W)

    # ---- fused residual: y + (y*ca)*sa == y * (1 + ca*sa).  Lane-dense
    # store of all PAD_C channels; pads dropped lazily in the wrapper.
    o_ref[...] = y4 * (1.0 + ca[:, None, None, :] * sa[:, :, :, None])


# ---------------------------------------------------------------------------
# Helpers: batch-block picker + explicit VMEM budget.
# ---------------------------------------------------------------------------
def _pick_batch_block(B, HW, min_m=256, max_m=1024):
    """Largest-useful divisor of B: fill the MXU (M>=256) without blowing VMEM,
    then prefer an even number of grid steps (v7x has 2 TensorCores)."""
    # TODO(synk): for H*W beyond ~2-3k a two-pass (pool + apply) split of HW
    # across the grid would be needed on v7x (64 MiB VMEM); not implemented.
    divs = [b for b in range(1, B + 1) if B % b == 0 and b * HW <= max_m]
    if not divs:
        return 1
    def key(b):
        m = b * HW
        return (min(m, min_m), (B // b) % 2 == 0, m)
    return max(divs, key=key)


def _vmem_limit_bytes(b_blk, H, W):
    m = b_blk * H * W
    io = 2 * (m * EFF_PAD * 2 + m * SWIN_C * 4 + m * PAD_C * 4)   # dbl-buffered
    wts = 2 * ((EFF_PAD + SWIN_C) * PAD_C * 2 + PAD_C * 4
               + 2 * PAD_C * PAD_HID * 2)                         # resident wts
    tmp = 6 * m * PAD_C * 4                                       # f32 temps
    scr = 2 * b_blk * (H + 2 * SP_PAD) * (W + 2 * SP_PAD) * 4
    est = io + wts + tmp + scr
    return int(min(64 << 20, max(32 << 20, 2 * est)))


def fused_head_call(eff_bhwc_bf16, swin_bhwc, params, b_blk):
    B, H, W, _ = eff_bhwc_bf16.shape
    assert B % b_blk == 0
    n_blocks = B // b_blk
    Hp, Wp = H + 2 * SP_PAD, W + 2 * SP_PAD
    return pl.pallas_call(
        fused_head_kernel,
        out_shape=jax.ShapeDtypeStruct((B, H, W, PAD_C), jnp.float32),
        grid=(n_blocks,),
        in_specs=[
            pl.BlockSpec((b_blk, H, W, EFF_PAD), lambda b: (b, 0, 0, 0)),
            pl.BlockSpec((b_blk, H, W, SWIN_C), lambda b: (b, 0, 0, 0)),
            pl.BlockSpec((EFF_PAD, PAD_C), lambda b: (0, 0)),   # VMEM-resident
            pl.BlockSpec((SWIN_C, PAD_C), lambda b: (0, 0)),
            pl.BlockSpec((1, PAD_C), lambda b: (0, 0)),
            pl.BlockSpec((PAD_C, PAD_HID), lambda b: (0, 0)),
            pl.BlockSpec((PAD_HID, PAD_C), lambda b: (0, 0)),
            pl.BlockSpec(memory_space=pltpu.MemorySpace.SMEM),  # 7x7 taps
        ],
        out_specs=pl.BlockSpec((b_blk, H, W, PAD_C), lambda b: (b, 0, 0, 0)),
        scratch_shapes=[pltpu.VMEM((2 * b_blk, Hp, Wp), jnp.float32)],
        compiler_params=pltpu.CompilerParams(
            dimension_semantics=("parallel",),
            vmem_limit_bytes=_vmem_limit_bytes(b_blk, H, W)),
    )(eff_bhwc_bf16, swin_bhwc,
      params["w_eff"], params["w_swin"], params["shift"],
      params["fc1"], params["fc2"], params["w_sp"])


# ---------------------------------------------------------------------------
# Parameter prep (offline, once): fold BN scale into weights, zero-pad to
# 128-aligned channel dims, pre-cast MXU weights to bf16.
#
# INVARIANT (correctness): output channels TARGET_C..PAD_C-1 must be exactly
# zero after the reduce conv + shift + ReLU, and the padded fc2 output columns
# must be exactly zero.  The in-kernel CBAM math (sum/336 mean, channel max,
# ca*sa residual) silently relies on this.  Asserted below.
# ---------------------------------------------------------------------------
def prepare_params(w_reduce, gamma, beta, run_mean, run_var, fc1, fc2, w_sp):
    scale = gamma / jnp.sqrt(run_var + BN_EPS)                    # (336,)
    shift = beta - run_mean * scale
    w_fold = w_reduce * scale[None, :]                            # (496, 336)
    w_eff_p = (jnp.zeros((EFF_PAD, PAD_C), jnp.float32)
               .at[:EFF_C, :TARGET_C].set(w_fold[:EFF_C]))
    w_swin_p = (jnp.zeros((SWIN_C, PAD_C), jnp.float32)
                .at[:, :TARGET_C].set(w_fold[EFF_C:]))
    shift_p = jnp.zeros((1, PAD_C), jnp.float32).at[0, :TARGET_C].set(shift)
    fc1_p = (jnp.zeros((PAD_C, PAD_HID), jnp.float32)
             .at[:TARGET_C, :HIDDEN_C].set(fc1))
    fc2_p = (jnp.zeros((PAD_HID, PAD_C), jnp.float32)
             .at[:HIDDEN_C, :TARGET_C].set(fc2))
    # Assert the zero-pad invariant on the concrete host-side params.
    assert float(jnp.max(jnp.abs(w_eff_p[:, TARGET_C:]))) == 0.0
    assert float(jnp.max(jnp.abs(w_swin_p[:, TARGET_C:]))) == 0.0
    assert float(jnp.max(jnp.abs(shift_p[0, TARGET_C:]))) == 0.0
    assert float(jnp.max(jnp.abs(fc2_p[:, TARGET_C:]))) == 0.0
    return {
        "w_eff": w_eff_p.astype(jnp.bfloat16),
        "w_swin": w_swin_p.astype(jnp.bfloat16),
        "shift": shift_p,
        "fc1": fc1_p.astype(jnp.bfloat16),
        "fc2": fc2_p.astype(jnp.bfloat16),
        "w_sp": w_sp,
    }


# ---------------------------------------------------------------------------
# Wrapper: (no concat) -> fused reduce_conv+BN+ReLU+ResCBAM -> (dropout = id)
# ---------------------------------------------------------------------------
def stage3_gif_forward(eff3_nchw, swin3_nhwc, params):
    B, _, H, W = eff3_nchw.shape
    b_blk = _pick_batch_block(B, H * W)
    # eff feats NCHW -> NHWC; the bf16 cast and the 112->128 lane pad are
    # fused into this already-materializing transpose.
    eff_nhwc = jnp.transpose(eff3_nchw, (0, 2, 3, 1)).astype(jnp.bfloat16)
    eff_nhwc = jnp.pad(eff_nhwc, ((0, 0), (0, 0), (0, 0), (0, EFF_PAD - EFF_C)))
    out_nhwc = fused_head_call(eff_nhwc, swin3_nhwc, params, b_blk)
    # TODO(synk): Dropout2d(p=0.03) is identity in eval mode; not applied.
    # Drop the 48 pad channels lazily, fused into the required NHWC->NCHW
    # transpose (kernel stores were lane-dense 384-wide).
    return jnp.transpose(out_nhwc[..., :TARGET_C], (0, 3, 1, 2))   # NCHW


# Pure-JAX reference (unpadded params; matmul operands cast to bf16 so the
# comparison isolates kernel structure from MXU precision).
def reference_forward(eff3_nchw, swin3_nhwc, raw):
    eff = jnp.transpose(eff3_nchw, (0, 2, 3, 1))
    fused = jnp.concatenate([eff, swin3_nhwc], axis=-1)
    scale = raw["gamma"] / jnp.sqrt(raw["run_var"] + BN_EPS)
    shift = raw["beta"] - raw["run_mean"] * scale
    w_fold = (raw["w_reduce"] * scale[None, :]).astype(jnp.bfloat16)
    y = jnp.einsum("bhwk,kn->bhwn", fused.astype(jnp.bfloat16), w_fold,
                   preferred_element_type=jnp.float32)
    y = jnp.maximum(y + shift, 0.0)
    avg = jnp.mean(y, axis=(1, 2))
    mx = jnp.max(y, axis=(1, 2))
    fc1 = raw["fc1"].astype(jnp.bfloat16)
    fc2 = raw["fc2"].astype(jnp.bfloat16)
    def mlp(v):
        h = jnp.maximum(jnp.dot(v.astype(jnp.bfloat16), fc1,
                                preferred_element_type=jnp.float32), 0.0)
        return jnp.dot(h.astype(jnp.bfloat16), fc2,
                       preferred_element_type=jnp.float32)
    ca = jax.nn.sigmoid(mlp(avg) + mlp(mx))                       # (B, C)
    y_ca = y * ca[:, None, None, :]
    sp = jnp.stack([jnp.mean(y_ca, -1), jnp.max(y_ca, -1)], axis=-1)
    kern = jnp.transpose(raw["w_sp"].reshape(2, SP_K, SP_K), (1, 2, 0))[:, :, :, None]
    logit = jax.lax.conv_general_dilated(
        sp, kern, (1, 1), "SAME",
        dimension_numbers=("NHWC", "HWIO", "NHWC"))[..., 0]
    sa = jax.nn.sigmoid(logit)
    out = y + y_ca * sa[..., None]
    return jnp.transpose(out, (0, 3, 1, 2))


if __name__ == "__main__":
    B, H, W = 2, 8, 8
    key = jax.random.PRNGKey(0)
    ks = jax.random.split(key, 10)

    # Backbone stage-3 feature maps (deterministic synthetic inputs).
    eff3_feats = jax.random.normal(ks[0], (B, EFF_C, H, W), jnp.float32)    # NCHW
    swin3_feats = jax.random.normal(ks[1], (B, H, W, SWIN_C), jnp.float32)  # NHWC

    # Deterministic parameter init (shapes from the module's __init__).
    w_reduce = jax.random.normal(ks[2], (FUSED_C, TARGET_C), jnp.float32) * 0.05
    gamma = 1.0 + 0.1 * jax.random.normal(ks[3], (TARGET_C,), jnp.float32)
    beta = 0.1 * jax.random.normal(ks[4], (TARGET_C,), jnp.float32)
    run_mean = 0.1 * jax.random.normal(ks[5], (TARGET_C,), jnp.float32)
    run_var = jax.random.uniform(ks[6], (TARGET_C,), jnp.float32, 0.5, 1.5)
    fc1 = jax.random.normal(ks[7], (TARGET_C, HIDDEN_C), jnp.float32) * 0.1
    fc2 = jax.random.normal(ks[8], (HIDDEN_C, TARGET_C), jnp.float32) * 0.1
    w_sp = jax.random.normal(ks[9], (2 * SP_K * SP_K,), jnp.float32) * 0.1

    params = prepare_params(w_reduce, gamma, beta, run_mean, run_var,
                            fc1, fc2, w_sp)

    fwd = jax.jit(stage3_gif_forward)
    out = jax.block_until_ready(fwd(eff3_feats, swin3_feats, params))

    raw = dict(w_reduce=w_reduce, gamma=gamma, beta=beta, run_mean=run_mean,
               run_var=run_var, fc1=fc1, fc2=fc2, w_sp=w_sp)
    ref = reference_forward(eff3_feats, swin3_feats, raw)

    assert out.shape == (B, TARGET_C, H, W), out.shape
    assert bool(jnp.all(jnp.isfinite(out)))
    max_err = float(jnp.max(jnp.abs(out - ref)))
    assert bool(jnp.allclose(out, ref, rtol=2e-2, atol=2e-2)), max_err
    print("KERNEL_OK")
</pallas_src>

<mosaic_0001>
module attributes {stable_mosaic.version = 11 : i64} {
  func.func @fused_head_kernel(%arg0: i32, %arg1: memref<2x8x8x128xbf16, #tpu.memory_space<vmem>>, %arg2: memref<2x8x8x384xf32, #tpu.memory_space<vmem>>, %arg3: memref<128x384xbf16, #tpu.memory_space<vmem>>, %arg4: memref<384x384xbf16, #tpu.memory_space<vmem>>, %arg5: memref<1x384xf32, #tpu.memory_space<vmem>>, %arg6: memref<384x128xbf16, #tpu.memory_space<vmem>>, %arg7: memref<128x384xbf16, #tpu.memory_space<vmem>>, %arg8: memref<98xf32, #tpu.memory_space<smem>>, %arg9: memref<2x8x8x384xf32, #tpu.memory_space<vmem>>, %arg10: memref<4x14x14xf32, #tpu.memory_space<vmem>>) attributes {dimension_semantics = [#tpu.dimension_semantics<parallel>], iteration_bounds = array<i64: 1>, scalar_prefetch = 0 : i64, scratch_operands = 1 : i64, tpu.core_type = #tpu.core_type<tc>, window_params = [{transform_indices = @transform_0, window_bounds = array<i64: 2, 8, 8, 128>}, {transform_indices = @transform_1, window_bounds = array<i64: 2, 8, 8, 384>}, {pipeline_mode = #tpu.pipeline_mode<synchronous>, transform_indices = @transform_2, window_bounds = array<i64: 128, 384>}, {pipeline_mode = #tpu.pipeline_mode<synchronous>, transform_indices = @transform_3, window_bounds = array<i64: 384, 384>}, {pipeline_mode = #tpu.pipeline_mode<synchronous>, transform_indices = @transform_4, window_bounds = array<i64: 1, 384>}, {pipeline_mode = #tpu.pipeline_mode<synchronous>, transform_indices = @transform_5, window_bounds = array<i64: 384, 128>}, {pipeline_mode = #tpu.pipeline_mode<synchronous>, transform_indices = @transform_6, window_bounds = array<i64: 128, 384>}, {transform_indices = @transform_7, window_bounds = array<i64: 98>}, {transform_indices = @transform_8, window_bounds = array<i64: 2, 8, 8, 384>}]} {
    %c0 = arith.constant 0 : index
    %c0_0 = arith.constant 0 : index
    %c0_1 = arith.constant 0 : index
    %c0_2 = arith.constant 0 : index
    %0 = vector.load %arg1[%c0, %c0_0, %c0_1, %c0_2] : memref<2x8x8x128xbf16, #tpu.memory_space<vmem>>, vector<2x8x8x128xbf16>
    %1 = vector.shape_cast %0 : vector<2x8x8x128xbf16> to vector<128x128xbf16>
    %c0_3 = arith.constant 0 : index
    %c0_4 = arith.constant 0 : index
    %c0_5 = arith.constant 0 : index
    %c0_6 = arith.constant 0 : index
    %2 = vector.load %arg2[%c0_3, %c0_4, %c0_5, %c0_6] : memref<2x8x8x384xf32, #tpu.memory_space<vmem>>, vector<2x8x8x384xf32>
    %3 = vector.shape_cast %2 : vector<2x8x8x384xf32> to vector<128x384xf32>
    %4 = arith.truncf %3 : vector<128x384xf32> to vector<128x384xbf16>
    %c0_7 = arith.constant 0 : index
    %c0_8 = arith.constant 0 : index
    %5 = vector.load %arg3[%c0_7, %c0_8] : memref<128x384xbf16, #tpu.memory_space<vmem>>, vector<128x384xbf16>
    %cst = arith.constant dense<0.000000e+00> : vector<128x384xf32>
    %6 = tpu.matmul %1, %5, %cst {dimension_numbers = #tpu.dot_dimension_numbers<[1], [0], [0], [1], [0, 0, 1, 1], [], []>} : vector<128x128xbf16>, vector<128x384xbf16>, vector<128x384xf32> -> vector<128x384xf32>
    %c0_9 = arith.constant 0 : index
    %c0_10 = arith.constant 0 : index
    %7 = vector.load %arg4[%c0_9, %c0_10] : memref<384x384xbf16, #tpu.memory_space<vmem>>, vector<384x384xbf16>
    %cst_11 = arith.constant dense<0.000000e+00> : vector<128x384xf32>
    %8 = tpu.matmul %4, %7, %cst_11 {dimension_numbers = #tpu.dot_dimension_numbers<[1], [0], [0], [1], [0, 0, 1, 1], [], []>} : vector<128x384xbf16>, vector<384x384xbf16>, vector<128x384xf32> -> vector<128x384xf32>
    %9 = arith.addf %6, %8 : vector<128x384xf32>
    %c0_12 = arith.constant 0 : index
    %c0_13 = arith.constant 0 : index
    %10 = vector.load %arg5[%c0_12, %c0_13] : memref<1x384xf32, #tpu.memory_space<vmem>>, vector<1x384xf32>
    %11 = vector.broadcast %10 : vector<1x384xf32> to vector<128x384xf32>
    %12 = arith.addf %9, %11 : vector<128x384xf32>
    %cst_14 = arith.constant 0.000000e+00 : f32
    %13 = vector.broadcast %cst_14 : f32 to vector<128x384xf32>
    %14 = arith.maximumf %12, %13 : vector<128x384xf32>
    %15 = vector.shape_cast %14 : vector<128x384xf32> to vector<2x64x384xf32>
    %cst_15 = arith.constant dense<0.000000e+00> : vector<2x384xf32>
    %16 = vector.multi_reduction <add>, %15, %cst_15 [1] : vector<2x64x384xf32> to vector<2x384xf32>
    %cst_16 = arith.constant 1.562500e-02 : f32
    %17 = vector.broadcast %cst_16 : f32 to vector<2x384xf32>
    %18 = arith.mulf %16, %17 : vector<2x384xf32>
    %cst_17 = arith.constant dense<0xFF800000> : vector<2x384xf32>
    %19 = vector.multi_reduction <maximumf>, %15, %cst_17 [1] : vector<2x64x384xf32> to vector<2x384xf32>
    %20 = tpu.concatenate %18, %19 in 0 : vector<2x384xf32>, vector<2x384xf32> -> vector<4x384xf32>
    %21 = arith.truncf %20 : vector<4x384xf32> to vector<4x384xbf16>
    %c0_18 = arith.constant 0 : index
    %c0_19 = arith.constant 0 : index
    %22 = vector.load %arg6[%c0_18, %c0_19] : memref<384x128xbf16, #tpu.memory_space<vmem>>, vector<384x128xbf16>
    %cst_20 = arith.constant dense<0.000000e+00> : vector<4x128xf32>
    %23 = tpu.matmul %21, %22, %cst_20 {dimension_numbers = #tpu.dot_dimension_numbers<[1], [0], [0], [1], [0, 0, 1, 1], [], []>} : vector<4x384xbf16>, vector<384x128xbf16>, vector<4x128xf32> -> vector<4x128xf32>
    %cst_21 = arith.constant 0.000000e+00 : f32
    %24 = vector.broadcast %cst_21 : f32 to vector<4x128xf32>
    %25 = arith.maximumf %23, %24 : vector<4x128xf32>
    %26 = arith.truncf %25 : vector<4x128xf32> to vector<4x128xbf16>
    %c0_22 = arith.constant 0 : index
    %c0_23 = arith.constant 0 : index
    %27 = vector.load %arg7[%c0_22, %c0_23] : memref<128x384xbf16, #tpu.memory_space<vmem>>, vector<128x384xbf16>
    %cst_24 = arith.constant dense<0.000000e+00> : vector<4x384xf32>
    %28 = tpu.matmul %26, %27, %cst_24 {dimension_numbers = #tpu.dot_dimension_numbers<[1], [0], [0], [1], [0, 0, 1, 1], [], []>} : vector<4x128xbf16>, vector<128x384xbf16>, vector<4x384xf32> -> vector<4x384xf32>
    %29 = vector.extract_strided_slice %28 {offsets = [0, 0], sizes = [2, 384], strides = [1, 1]} : vector<4x384xf32> to vector<2x384xf32>
    %30 = vector.extract_strided_slice %28 {offsets = [2, 0], sizes = [2, 384], strides = [1, 1]} : vector<4x384xf32> to vector<2x384xf32>
    %31 = arith.addf %29, %30 : vector<2x384xf32>
    %32 = arith.negf %31 : vector<2x384xf32>
    %33 = math.exp %32 : vector<2x384xf32>
    %cst_25 = arith.constant 1.000000e+00 : f32
    %34 = vector.broadcast %cst_25 : f32 to vector<2x384xf32>
    %35 = arith.addf %34, %33 : vector<2x384xf32>
    %36 = arith.divf %34, %35 : vector<2x384xf32>
    %37 = vector.shape_cast %14 : vector<128x384xf32> to vector<2x8x8x384xf32>
    %38 = vector.shape_cast %36 : vector<2x384xf32> to vector<2x1x1x384xf32>
    %39 = vector.broadcast %38 : vector<2x1x1x384xf32> to vector<2x8x8x384xf32>
    %40 = arith.mulf %37, %39 : vector<2x8x8x384xf32>
    %cst_26 = arith.constant dense<0.000000e+00> : vector<2x8x8xf32>
    %41 = vector.multi_reduction <add>, %40, %cst_26 [3] : vector<2x8x8x384xf32> to vector<2x8x8xf32>
    %cst_27 = arith.constant 0.00297619053 : f32
    %42 = vector.broadcast %cst_27 : f32 to vector<2x8x8xf32>
    %43 = arith.mulf %41, %42 : vector<2x8x8xf32>
    %cst_28 = arith.constant dense<0xFF800000> : vector<2x8x8xf32>
    %44 = vector.multi_reduction <maximumf>, %40, %cst_28 [3] : vector<2x8x8x384xf32> to vector<2x8x8xf32>
    %cst_29 = arith.constant 0.000000e+00 : f32
    %45 = vector.broadcast %cst_29 : f32 to vector<4x3x14xf32>
    %cst_30 = arith.constant 0.000000e+00 : f32
    %46 = vector.broadcast %cst_30 : f32 to vector<4x8x3xf32>
    %c0_31 = arith.constant 0 : index
    %c0_32 = arith.constant 0 : index
    %c0_33 = arith.constant 0 : index
    %47 = vector.load %arg10[%c0_31, %c0_32, %c0_33] : memref<4x14x14xf32, #tpu.memory_space<vmem>>, vector<4x3x14xf32>
    tpu.vector_store %arg10[%c0_31, %c0_32, %c0_33], %45 {strides = array<i32>} : memref<4x14x14xf32, #tpu.memory_space<vmem>>, vector<4x3x14xf32>,
    %c0_34 = arith.constant 0 : index
    %c11 = arith.constant 11 : index
    %c0_35 = arith.constant 0 : index
    %48 = vector.load %arg10[%c0_34, %c11, %c0_35] : memref<4x14x14xf32, #tpu.memory_space<vmem>>, vector<4x3x14xf32>
    tpu.vector_store %arg10[%c0_34, %c11, %c0_35], %45 {strides = array<i32>} : memref<4x14x14xf32, #tpu.memory_space<vmem>>, vector<4x3x14xf32>,
    %c0_36 = arith.constant 0 : index
    %c3 = arith.constant 3 : index
    %c0_37 = arith.constant 0 : index
    %49 = vector.load %arg10[%c0_36, %c3, %c0_37] : memref<4x14x14xf32, #tpu.memory_space<vmem>>, vector<4x8x3xf32>
    tpu.vector_store %arg10[%c0_36, %c3, %c0_37], %46 {strides = array<i32>} : memref<4x14x14xf32, #tpu.memory_space<vmem>>, vector<4x8x3xf32>,
    %c0_38 = arith.constant 0 : index
    %c3_39 = arith.constant 3 : index
    %c11_40 = arith.constant 11 : index
    %50 = vector.load %arg10[%c0_38, %c3_39, %c11_40] : memref<4x14x14xf32, #tpu.memory_space<vmem>>, vector<4x8x3xf32>
    tpu.vector_store %arg10[%c0_38, %c3_39, %c11_40], %46 {strides = array<i32>} : memref<4x14x14xf32, #tpu.memory_space<vmem>>, vector<4x8x3xf32>,
    %c0_41 = arith.constant 0 : index
    %c3_42 = arith.constant 3 : index
    %c3_43 = arith.constant 3 : index
    %51 = vector.load %arg10[%c0_41, %c3_42, %c3_43] : memref<4x14x14xf32, #tpu.memory_space<vmem>>, vector<2x8x8xf32>
    tpu.vector_store %arg10[%c0_41, %c3_42, %c3_43], %43 {strides = array<i32>} : memref<4x14x14xf32, #tpu.memory_space<vmem>>, vector<2x8x8xf32>,
    %c2 = arith.constant 2 : index
    %c3_44 = arith.constant 3 : index
    %c3_45 = arith.constant 3 : index
    %52 = vector.load %arg10[%c2, %c3_44, %c3_45] : memref<4x14x14xf32, #tpu.memory_space<vmem>>, vector<2x8x8xf32>
    tpu.vector_store %arg10[%c2, %c3_44, %c3_45], %44 {strides = array<i32>} : memref<4x14x14xf32, #tpu.memory_space<vmem>>, vector<2x8x8xf32>,
    %cst_46 = arith.constant 0.000000e+00 : f32
    %53 = vector.broadcast %cst_46 : f32 to vector<2x8x8xf32>
    %cst_47 = arith.constant 0.000000e+00 : f32
    %54 = vector.broadcast %cst_47 : f32 to vector<2x8x8xf32>
    %c0_48 = arith.constant 0 : index
    %c0_49 = arith.constant 0 : index
    %c0_50 = arith.constant 0 : index
    %55 = vector.load %arg10[%c0_48, %c0_49, %c0_50] : memref<4x14x14xf32, #tpu.memory_space<vmem>>, vector<4x8x8xf32>
    %c0_51 = arith.constant 0 : index
    %56 = memref.load %arg8[%c0_51] : memref<98xf32, #tpu.memory_space<smem>>
    %c49 = arith.constant 49 : index
    %57 = memref.load %arg8[%c49] : memref<98xf32, #tpu.memory_space<smem>>
    %58 = vector.extract_strided_slice %55 {offsets = [0, 0, 0], sizes = [2, 8, 8], strides = [1, 1, 1]} : vector<4x8x8xf32> to vector<2x8x8xf32>
    %59 = vector.broadcast %56 : f32 to vector<2x8x8xf32>
    %60 = arith.mulf %59, %58 : vector<2x8x8xf32>
    %61 = arith.addf %53, %60 : vector<2x8x8xf32>
    %62 = vector.extract_strided_slice %55 {offsets = [2, 0, 0], sizes = [2, 8, 8], strides = [1, 1, 1]} : vector<4x8x8xf32> to vector<2x8x8xf32>
    %63 = vector.broadcast %57 : f32 to vector<2x8x8xf32>
    %64 = arith.mulf %63, %62 : vector<2x8x8xf32>
    %65 = arith.addf %54, %64 : vector<2x8x8xf32>
    %c0_52 = arith.constant 0 : index
    %c0_53 = arith.constant 0 : index
    %c1 = arith.constant 1 : index
    %66 = vector.load %arg10[%c0_52, %c0_53, %c1] : memref<4x14x14xf32, #tpu.memory_space<vmem>>, vector<4x8x8xf32>
    %c1_54 = arith.constant 1 : index
    %67 = memref.load %arg8[%c1_54] : memref<98xf32, #tpu.memory_space<smem>>
    %c50 = arith.constant 50 : index
    %68 = memref.load %arg8[%c50] : memref<98xf32, #tpu.memory_space<smem>>
    %69 = vector.extract_strided_slice %66 {offsets = [0, 0, 0], sizes = [2, 8, 8], strides = [1, 1, 1]} : vector<4x8x8xf32> to vector<2x8x8xf32>
    %70 = vector.broadcast %67 : f32 to vector<2x8x8xf32>
    %71 = arith.mulf %70, %69 : vector<2x8x8xf32>
    %72 = arith.addf %61, %71 : vector<2x8x8xf32>
    %73 = vector.extract_strided_slice %66 {offsets = [2, 0, 0], sizes = [2, 8, 8], strides = [1, 1, 1]} : vector<4x8x8xf32> to vector<2x8x8xf32>
    %74 = vector.broadcast %68 : f32 to vector<2x8x8xf32>
    %75 = arith.mulf %74, %73 : vector<2x8x8xf32>
    %76 = arith.addf %65, %75 : vector<2x8x8xf32>
    %c0_55 = arith.constant 0 : index
    %c0_56 = arith.constant 0 : index
    %c2_57 = arith.constant 2 : index
    %77 = vector.load %arg10[%c0_55, %c0_56, %c2_57] : memref<4x14x14xf32, #tpu.memory_space<vmem>>, vector<4x8x8xf32>
    %c2_58 = arith.constant 2 : index
    %78 = memref.load %arg8[%c2_58] : memref<98xf32, #tpu.memory_space<smem>>
    %c51 = arith.constant 51 : index
    %79 = memref.load %arg8[%c51] : memref<98xf32, #tpu.memory_space<smem>>
    %80 = vector.extract_strided_slice %77 {offsets = [0, 0, 0], sizes = [2, 8, 8], strides = [1, 1, 1]} : vector<4x8x8xf32> to vector<2x8x8xf32>
    %81 = vector.broadcast %78 : f32 to vector<2x8x8xf32>
    %82 = arith.mulf %81, %80 : vector<2x8x8xf32>
    %83 = arith.addf %72, %82 : vector<2x8x8xf32>
    %84 = vector.extract_strided_slice %77 {offsets = [2, 0, 0], sizes = [2, 8, 8], strides = [1, 1, 1]} : vector<4x8x8xf32> to vector<2x8x8xf32>
    %85 = vector.broadcast %79 : f32 to vector<2x8x8xf32>
    %86 = arith.mulf %85, %84 : vector<2x8x8xf32>
    %87 = arith.addf %76, %86 : vector<2x8x8xf32>
    %c0_59 = arith.constant 0 : index
    %c0_60 = arith.constant 0 : index
    %c3_61 = arith.constant 3 : index
    %88 = vector.load %arg10[%c0_59, %c0_60, %c3_61] : memref<4x14x14xf32, #tpu.memory_space<vmem>>, vector<4x8x8xf32>
    %c3_62 = arith.constant 3 : index
    %89 = memref.load %arg8[%c3_62] : memref<98xf32, #tpu.memory_space<smem>>
    %c52 = arith.constant 52 : index
    %90 = memref.load %arg8[%c52] : memref<98xf32, #tpu.memory_space<smem>>
    %91 = vector.extract_strided_slice %88 {offsets = [0, 0, 0], sizes = [2, 8, 8], strides = [1, 1, 1]} : vector<4x8x8xf32> to vector<2x8x8xf32>
    %92 = vector.broadcast %89 : f32 to vector<2x8x8xf32>
    %93 = arith.mulf %92, %91 : vector<2x8x8xf32>
    %94 = arith.addf %83, %93 : vector<2x8x8xf32>
    %95 = vector.extract_strided_slice %88 {offsets = [2, 0, 0], sizes = [2, 8, 8], strides = [1, 1, 1]} : vector<4x8x8xf32> to vector<2x8x8xf32>
    %96 = vector.broadcast %90 : f32 to vector<2x8x8xf32>
    %97 = arith.mulf %96, %95 : vector<2x8x8xf32>
    %98 = arith.addf %87, %97 : vector<2x8x8xf32>
    %c0_63 = arith.constant 0 : index
    %c0_64 = arith.constant 0 : index
    %c4 = arith.constant 4 : index
    %99 = vector.load %arg10[%c0_63, %c0_64, %c4] : memref<4x14x14xf32, #tpu.memory_space<vmem>>, vector<4x8x8xf32>
    %c4_65 = arith.constant 4 : index
    %100 = memref.load %arg8[%c4_65] : memref<98xf32, #tpu.memory_space<smem>>
    %c53 = arith.constant 53 : index
    %101 = memref.load %arg8[%c53] : memref<98xf32, #tpu.memory_space<smem>>
    %102 = vector.extract_strided_slice %99 {offsets = [0, 0, 0], sizes = [2, 8, 8], strides = [1, 1, 1]} : vector<4x8x8xf32> to vector<2x8x8xf32>
    %103 = vector.broadcast %100 : f32 to vector<2x8x8xf32>
    %104 = arith.mulf %103, %102 : vector<2x8x8xf32>
    %105 = arith.addf %94, %104 : vector<2x8x8xf32>
    %106 = vector.extract_strided_slice %99 {offsets = [2, 0, 0], sizes = [2, 8, 8], strides = [1, 1, 1]} : vector<4x8x8xf32> to vector<2x8x8xf32>
    %107 = vector.broadcast %101 : f32 to vector<2x8x8xf32>
    %108 = arith.mulf %107, %106 : vector<2x8x8xf32>
    %109 = arith.addf %98, %108 : vector<2x8x8xf32>
    %c0_66 = arith.constant 0 : index
    %c0_67 = arith.constant 0 : index
    %c5 = arith.constant 5 : index
    %110 = vector.load %arg10[%c0_66, %c0_67, %c5] : memref<4x14x14xf32, #tpu.memory_space<vmem>>, vector<4x8x8xf32>
    %c5_68 = arith.constant 5 : index
    %111 = memref.load %arg8[%c5_68] : memref<98xf32, #tpu.memory_space<smem>>
    %c54 = arith.constant 54 : index
    %112 = memref.load %arg8[%c54] : memref<98xf32, #tpu.memory_space<smem>>
    %113 = vector.extract_strided_slice %110 {offsets = [0, 0, 0], sizes = [2, 8, 8], strides = [1, 1, 1]} : vector<4x8x8xf32> to vector<2x8x8xf32>
    %114 = vector.broadcast %111 : f32 to vector<2x8x8xf32>
    %115 = arith.mulf %114, %113 : vector<2x8x8xf32>
    %116 = arith.addf %105, %115 : vector<2x8x8xf32>
    %117 = vector.extract_strided_slice %110 {offsets = [2, 0, 0], sizes = [2, 8, 8], strides = [1, 1, 1]} : vector<4x8x8xf32> to vector<2x8x8xf32>
    %118 = vector.broadcast %112 : f32 to vector<2x8x8xf32>
    %119 = arith.mulf %118, %117 : vector<2x8x8xf32>
    %120 = arith.addf %109, %119 : vector<2x8x8xf32>
    %c0_69 = arith.constant 0 : index
    %c0_70 = arith.constant 0 : index
    %c6 = arith.constant 6 : index
    %121 = vector.load %arg10[%c0_69, %c0_70, %c6] : memref<4x14x14xf32, #tpu.memory_space<vmem>>, vector<4x8x8xf32>
    %c6_71 = arith.constant 6 : index
    %122 = memref.load %arg8[%c6_71] : memref<98xf32, #tpu.memory_space<smem>>
    %c55 = arith.constant 55 : index
    %123 = memref.load %arg8[%c55] : memref<98xf32, #tpu.memory_space<smem>>
    %124 = vector.extract_strided_slice %121 {offsets = [0, 0, 0], sizes = [2, 8, 8], strides = [1, 1, 1]} : vector<4x8x8xf32> to vector<2x8x8xf32>
    %125 = vector.broadcast %122 : f32 to vector<2x8x8xf32>
    %126 = arith.mulf %125, %124 : vector<2x8x8xf32>
    %127 = arith.addf %116, %126 : vector<2x8x8xf32>
    %128 = vector.extract_strided_slice %121 {offsets = [2, 0, 0], sizes = [2, 8, 8], strides = [1, 1, 1]} : vector<4x8x8xf32> to vector<2x8x8xf32>
    %129 = vector.broadcast %123 : f32 to vector<2x8x8xf32>
    %130 = arith.mulf %129, %128 : vector<2x8x8xf32>
    %131 = arith.addf %120, %130 : vector<2x8x8xf32>
    %c0_72 = arith.constant 0 : index
    %c1_73 = arith.constant 1 : index
    %c0_74 = arith.constant 0 : index
    %132 = vector.load %arg10[%c0_72, %c1_73, %c0_74] : memref<4x14x14xf32, #tpu.memory_space<vmem>>, vector<4x8x8xf32>
    %c7 = arith.constant 7 : index
    %133 = memref.load %arg8[%c7] : memref<98xf32, #tpu.memory_space<smem>>
    %c56 = arith.constant 56 : index
    %134 = memref.load %arg8[%c56] : memref<98xf32, #tpu.memory_space<smem>>
    %135 = vector.extract_strided_slice %132 {offsets = [0, 0, 0], sizes = [2, 8, 8], strides = [1, 1, 1]} : vector<4x8x8xf32> to vector<2x8x8xf32>
    %136 = vector.broadcast %133 : f32 to vector<2x8x8xf32>
    %137 = arith.mulf %136, %135 : vector<2x8x8xf32>
    %138 = arith.addf %127, %137 : vector<2x8x8xf32>
    %139 = vector.extract_strided_slice %132 {offsets = [2, 0, 0], sizes = [2, 8, 8], strides = [1, 1, 1]} : vector<4x8x8xf32> to vector<2x8x8xf32>
    %140 = vector.broadcast %134 : f32 to vector<2x8x8xf32>
    %141 = arith.mulf %140, %139 : vector<2x8x8xf32>
    %142 = arith.addf %131, %141 : vector<2x8x8xf32>
    %c0_75 = arith.constant 0 : index
    %c1_76 = arith.constant 1 : index
    %c1_77 = arith.constant 1 : index
    %143 = vector.load %arg10[%c0_75, %c1_76, %c1_77] : memref<4x14x14xf32, #tpu.memory_space<vmem>>, vector<4x8x8xf32>
    %c8 = arith.constant 8 : index
    %144 = memref.load %arg8[%c8] : memref<98xf32, #tpu.memory_space<smem>>
    %c57 = arith.constant 57 : index
    %145 = memref.load %arg8[%c57] : memref<98xf32, #tpu.memory_space<smem>>
    %146 = vector.extract_strided_slice %143 {offsets = [0, 0, 0], sizes = [2, 8, 8], strides = [1, 1, 1]} : vector<4x8x8xf32> to vector<2x8x8xf32>
    %147 = vector.broadcast %144 : f32 to vector<2x8x8xf32>
    %148 = arith.mulf %147, %146 : vector<2x8x8xf32>
    %149 = arith.addf %138, %148 : vector<2x8x8xf32>
    %150 = vector.extract_strided_slice %143 {offsets = [2, 0, 0], sizes = [2, 8, 8], strides = [1, 1, 1]} : vector<4x8x8xf32> to vector<2x8x8xf32>
    %151 = vector.broadcast %145 : f32 to vector<2x8x8xf32>
    %152 = arith.mulf %151, %150 : vector<2x8x8xf32>
    %153 = arith.addf %142, %152 : vector<2x8x8xf32>
    %c0_78 = arith.constant 0 : index
    %c1_79 = arith.constant 1 : index
    %c2_80 = arith.constant 2 : index
    %154 = vector.load %arg10[%c0_78, %c1_79, %c2_80] : memref<4x14x14xf32, #tpu.memory_space<vmem>>, vector<4x8x8xf32>
    %c9 = arith.constant 9 : index
    %155 = memref.load %arg8[%c9] : memref<98xf32, #tpu.memory_space<smem>>
    %c58 = arith.constant 58 : index
    %156 = memref.load %arg8[%c58] : memref<98xf32, #tpu.memory_space<smem>>
    %157 = vector.extract_strided_slice %154 {offsets = [0, 0, 0], sizes = [2, 8, 8], strides = [1, 1, 1]} : vector<4x8x8xf32> to vector<2x8x8xf32>
    %158 = vector.broadcast %155 : f32 to vector<2x8x8xf32>
    %159 = arith.mulf %158, %157 : vector<2x8x8xf32>
    %160 = arith.addf %149, %159 : vector<2x8x8xf32>
    %161 = vector.extract_strided_slice %154 {offsets = [2, 0, 0], sizes = [2, 8, 8], strides = [1, 1, 1]} : vector<4x8x8xf32> to vector<2x8x8xf32>
    %162 = vector.broadcast %156 : f32 to vector<2x8x8xf32>
    %163 = arith.mulf %162, %161 : vector<2x8x8xf32>
    %164 = arith.addf %153, %163 : vector<2x8x8xf32>
    %c0_81 = arith.constant 0 : index
    %c1_82 = arith.constant 1 : index
    %c3_83 = arith.constant 3 : index
    %165 = vector.load %arg10[%c0_81, %c1_82, %c3_83] : memref<4x14x14xf32, #tpu.memory_space<vmem>>, vector<4x8x8xf32>
    %c10 = arith.constant 10 : index
    %166 = memref.load %arg8[%c10] : memref<98xf32, #tpu.memory_space<smem>>
    %c59 = arith.constant 59 : index
    %167 = memref.load %arg8[%c59] : memref<98xf32, #tpu.memory_space<smem>>
    %168 = vector.extract_strided_slice %165 {offsets = [0, 0, 0], sizes = [2, 8, 8], strides = [1, 1, 1]} : vector<4x8x8xf32> to vector<2x8x8xf32>
    %169 = vector.broadcast %166 : f32 to vector<2x8x8xf32>
    %170 = arith.mulf %169, %168 : vector<2x8x8xf32>
    %171 = arith.addf %160, %170 : vector<2x8x8xf32>
    %172 = vector.extract_strided_slice %165 {offsets = [2, 0, 0], sizes = [2, 8, 8], strides = [1, 1, 1]} : vector<4x8x8xf32> to vector<2x8x8xf32>
    %173 = vector.broadcast %167 : f32 to vector<2x8x8xf32>
    %174 = arith.mulf %173, %172 : vector<2x8x8xf32>
    %175 = arith.addf %164, %174 : vector<2x8x8xf32>
    %c0_84 = arith.constant 0 : index
    %c1_85 = arith.constant 1 : index
    %c4_86 = arith.constant 4 : index
    %176 = vector.load %arg10[%c0_84, %c1_85, %c4_86] : memref<4x14x14xf32, #tpu.memory_space<vmem>>, vector<4x8x8xf32>
    %c11_87 = arith.constant 11 : index
    %177 = memref.load %arg8[%c11_87] : memref<98xf32, #tpu.memory_space<smem>>
    %c60 = arith.constant 60 : index
    %178 = memref.load %arg8[%c60] : memref<98xf32, #tpu.memory_space<smem>>
    %179 = vector.extract_strided_slice %176 {offsets = [0, 0, 0], sizes = [2, 8, 8], strides = [1, 1, 1]} : vector<4x8x8xf32> to vector<2x8x8xf32>
    %180 = vector.broadcast %177 : f32 to vector<2x8x8xf32>
    %181 = arith.mulf %180, %179 : vector<2x8x8xf32>
    %182 = arith.addf %171, %181 : vector<2x8x8xf32>
    %183 = vector.extract_strided_slice %176 {offsets = [2, 0, 0], sizes = [2, 8, 8], strides = [1, 1, 1]} : vector<4x8x8xf32> to vector<2x8x8xf32>
    %184 = vector.broadcast %178 : f32 to vector<2x8x8xf32>
    %185 = arith.mulf %184, %183 : vector<2x8x8xf32>
    %186 = arith.addf %175, %185 : vector<2x8x8xf32>
    %c0_88 = arith.constant 0 : index
    %c1_89 = arith.constant 1 : index
    %c5_90 = arith.constant 5 : index
    %187 = vector.load %arg10[%c0_88, %c1_89, %c5_90] : memref<4x14x14xf32, #tpu.memory_space<vmem>>, vector<4x8x8xf32>
    %c12 = arith.constant 12 : index
    %188 = memref.load %arg8[%c12] : memref<98xf32, #tpu.memory_space<smem>>
    %c61 = arith.constant 61 : index
    %189 = memref.load %arg8[%c61] : memref<98xf32, #tpu.memory_space<smem>>
    %190 = vector.extract_strided_slice %187 {offsets = [0, 0, 0], sizes = [2, 8, 8], strides = [1, 1, 1]} : vector<4x8x8xf32> to vector<2x8x8xf32>
    %191 = vector.broadcast %188 : f32 to vector<2x8x8xf32>
    %192 = arith.mulf %191, %190 : vector<2x8x8xf32>
    %193 = arith.addf %182, %192 : vector<2x8x8xf32>
    %194 = vector.extract_strided_slice %187 {offsets = [2, 0, 0], sizes = [2, 8, 8], strides = [1, 1, 1]} : vector<4x8x8xf32> to vector<2x8x8xf32>
    %195 = vector.broadcast %189 : f32 to vector<2x8x8xf32>
    %196 = arith.mulf %195, %194 : vector<2x8x8xf32>
    %197 = arith.addf %186, %196 : vector<2x8x8xf32>
    %c0_91 = arith.constant 0 : index
    %c1_92 = arith.constant 1 : index
    %c6_93 = arith.constant 6 : index
    %198 = vector.load %arg10[%c0_91, %c1_92, %c6_93] : memref<4x14x14xf32, #tpu.memory_space<vmem>>, vector<4x8x8xf32>
    %c13 = arith.constant 13 : index
    %199 = memref.load %arg8[%c13] : memref<98xf32, #tpu.memory_space<smem>>
    %c62 = arith.constant 62 : index
    %200 = memref.load %arg8[%c62] : memref<98xf32, #tpu.memory_space<smem>>
    %201 = vector.extract_strided_slice %198 {offsets = [0, 0, 0], sizes = [2, 8, 8], strides = [1, 1, 1]} : vector<4x8x8xf32> to vector<2x8x8xf32>
    %202 = vector.broadcast %199 : f32 to vector<2x8x8xf32>
    %203 = arith.mulf %202, %201 : vector<2x8x8xf32>
    %204 = arith.addf %193, %203 : vector<2x8x8xf32>
    %205 = vector.extract_strided_slice %198 {offsets = [2, 0, 0], sizes = [2, 8, 8], strides = [1, 1, 1]} : vector<4x8x8xf32> to vector<2x8x8xf32>
    %206 = vector.broadcast %200 : f32 to vector<2x8x8xf32>
    %207 = arith.mulf %206, %205 : vector<2x8x8xf32>
    %208 = arith.addf %197, %207 : vector<2x8x8xf32>
    %c0_94 = arith.constant 0 : index
    %c2_95 = arith.constant 2 : index
    %c0_96 = arith.constant 0 : index
    %209 = vector.load %arg10[%c0_94, %c2_95, %c0_96] : memref<4x14x14xf32, #tpu.memory_space<vmem>>, vector<4x8x8xf32>
    %c14 = arith.constant 14 : index
    %210 = memref.load %arg8[%c14] : memref<98xf32, #tpu.memory_space<smem>>
    %c63 = arith.constant 63 : index
    %211 = memref.load %arg8[%c63] : memref<98xf32, #tpu.memory_space<smem>>
    %212 = vector.extract_strided_slice %209 {offsets = [0, 0, 0], sizes = [2, 8, 8], strides = [1, 1, 1]} : vector<4x8x8xf32> to vector<2x8x8xf32>
    %213 = vector.broadcast %210 : f32 to vector<2x8x8xf32>
    %214 = arith.mulf %213, %212 : vector<2x8x8xf32>
    %215 = arith.addf %204, %214 : vector<2x8x8xf32>
    %216 = vector.extract_strided_slice %209 {offsets = [2, 0, 0], sizes = [2, 8, 8], strides = [1, 1, 1]} : vector<4x8x8xf32> to vector<2x8x8xf32>
    %217 = vector.broadcast %211 : f32 to vector<2x8x8xf32>
    %218 = arith.mulf %217, %216 : vector<2x8x8xf32>
    %219 = arith.addf %208, %218 : vector<2x8x8xf32>
    %c0_97 = arith.constant 0 : index
    %c2_98 = arith.constant 2 : index
    %c1_99 = arith.constant 1 : index
    %220 = vector.load %arg10[%c0_97, %c2_98, %c1_99] : memref<4x14x14xf32, #tpu.memory_space<vmem>>, vector<4x8x8xf32>
    %c15 = arith.constant 15 : index
    %221 = memref.load %arg8[%c15] : memref<98xf32, #tpu.memory_space<smem>>
    %c64 = arith.constant 64 : index
    %222 = memref.load %arg8[%c64] : memref<98xf32, #tpu.memory_space<smem>>
    %223 = vector.extract_strided_slice %220 {offsets = [0, 0, 0], sizes = [2, 8, 8], strides = [1, 1, 1]} : vector<4x8x8xf32> to vector<2x8x8xf32>
    %224 = vector.broadcast %221 : f32 to vector<2x8x8xf32>
    %225 = arith.mulf %224, %223 : vector<2x8x8xf32>
    %226 = arith.addf %215, %225 : vector<2x8x8xf32>
    %227 = vector.extract_strided_slice %220 {offsets = [2, 0, 0], sizes = [2, 8, 8], strides = [1, 1, 1]} : vector<4x8x8xf32> to vector<2x8x8xf32>
    %228 = vector.broadcast %222 : f32 to vector<2x8x8xf32>
    %229 = arith.mulf %228, %227 : vector<2x8x8xf32>
    %230 = arith.addf %219, %229 : vector<2x8x8xf32>
    %c0_100 = arith.constant 0 : index
    %c2_101 = arith.constant 2 : index
    %c2_102 = arith.constant 2 : index
    %231 = vector.load %arg10[%c0_100, %c2_101, %c2_102] : memref<4x14x14xf32, #tpu.memory_space<vmem>>, vector<4x8x8xf32>
    %c16 = arith.constant 16 : index
    %232 = memref.load %arg8[%c16] : memref<98xf32, #tpu.memory_space<smem>>
    %c65 = arith.constant 65 : index
    %233 = memref.load %arg8[%c65] : memref<98xf32, #tpu.memory_space<smem>>
    %234 = vector.extract_strided_slice %231 {offsets = [0, 0, 0], sizes = [2, 8, 8], strides = [1, 1, 1]} : vector<4x8x8xf32> to vector<2x8x8xf32>
    %235 = vector.broadcast %232 : f32 to vector<2x8x8xf32>
    %236 = arith.mulf %235, %234 : vector<2x8x8xf32>
    %237 = arith.addf %226, %236 : vector<2x8x8xf32>
    %238 = vector.extract_strided_slice %231 {offsets = [2, 0, 0], sizes = [2, 8, 8], strides = [1, 1, 1]} : vector<4x8x8xf32> to vector<2x8x8xf32>
    %239 = vector.broadcast %233 : f32 to vector<2x8x8xf32>
    %240 = arith.mulf %239, %238 : vector<2x8x8xf32>
    %241 = arith.addf %230, %240 : vector<2x8x8xf32>
    %c0_103 = arith.constant 0 : index
    %c2_104 = arith.constant 2 : index
    %c3_105 = arith.constant 3 : index
    %242 = vector.load %arg10[%c0_103, %c2_104, %c3_105] : memref<4x14x14xf32, #tpu.memory_space<vmem>>, vector<4x8x8xf32>
    %c17 = arith.constant 17 : index
    %243 = memref.load %arg8[%c17] : memref<98xf32, #tpu.memory_space<smem>>
    %c66 = arith.constant 66 : index
    %244 = memref.load %arg8[%c66] : memref<98xf32, #tpu.memory_space<smem>>
    %245 = vector.extract_strided_slice %242 {offsets = [0, 0, 0], sizes = [2, 8, 8], strides = [1, 1, 1]} : vector<4x8x8xf32> to vector<2x8x8xf32>
    %246 = vector.broadcast %243 : f32 to vector<2x8x8xf32>
    %247 = arith.mulf %246, %245 : vector<2x8x8xf32>
    %248 = arith.addf %237, %247 : vector<2x8x8xf32>
    %249 = vector.extract_strided_slice %242 {offsets = [2, 0, 0], sizes = [2, 8, 8], strides = [1, 1, 1]} : vector<4x8x8xf32> to vector<2x8x8xf32>
    %250 = vector.broadcast %244 : f32 to vector<2x8x8xf32>
    %251 = arith.mulf %250, %249 : vector<2x8x8xf32>
    %252 = arith.addf %241, %251 : vector<2x8x8xf32>
    %c0_106 = arith.constant 0 : index
    %c2_107 = arith.constant 2 : index
    %c4_108 = arith.constant 4 : index
    %253 = vector.load %arg10[%c0_106, %c2_107, %c4_108] : memref<4x14x14xf32, #tpu.memory_space<vmem>>, vector<4x8x8xf32>
    %c18 = arith.constant 18 : index
    %254 = memref.load %arg8[%c18] : memref<98xf32, #tpu.memory_space<smem>>
    %c67 = arith.constant 67 : index
    %255 = memref.load %arg8[%c67] : memref<98xf32, #tpu.memory_space<smem>>
    %256 = vector.extract_strided_slice %253 {offsets = [0, 0, 0], sizes = [2, 8, 8], strides = [1, 1, 1]} : vector<4x8x8xf32> to vector<2x8x8xf32>
    %257 = vector.broadcast %254 : f32 to vector<2x8x8xf32>
    %258 = arith.mulf %257, %256 : vector<2x8x8xf32>
    %259 = arith.addf %248, %258 : vector<2x8x8xf32>
    %260 = vector.extract_strided_slice %253 {offsets = [2, 0, 0], sizes = [2, 8, 8], strides = [1, 1, 1]} : vector<4x8x8xf32> to vector<2x8x8xf32>
    %261 = vector.broadcast %255 : f32 to vector<2x8x8xf32>
    %262 = arith.mulf %261, %260 : vector<2x8x8xf32>
    %263 = arith.addf %252, %262 : vector<2x8x8xf32>
    %c0_109 = arith.constant 0 : index
    %c2_110 = arith.constant 2 : index
    %c5_111 = arith.constant 5 : index
    %264 = vector.load %arg10[%c0_109, %c2_110, %c5_111] : memref<4x14x14xf32, #tpu.memory_space<vmem>>, vector<4x8x8xf32>
    %c19 = arith.constant 19 : index
    %265 = memref.load %arg8[%c19] : memref<98xf32, #tpu.memory_space<smem>>
    %c68 = arith.constant 68 : index
    %266 = memref.load %arg8[%c68] : memref<98xf32, #tpu.memory_space<smem>>
    %267 = vector.extract_strided_slice %264 {offsets = [0, 0, 0], sizes = [2, 8, 8], strides = [1, 1, 1]} : vector<4x8x8xf32> to vector<2x8x8xf32>
    %268 = vector.broadcast %265 : f32 to vector<2x8x8xf32>
    %269 = arith.mulf %268, %267 : vector<2x8x8xf32>
    %270 = arith.addf %259, %269 : vector<2x8x8xf32>
    %271 = vector.extract_strided_slice %264 {offsets = [2, 0, 0], sizes = [2, 8, 8], strides = [1, 1, 1]} : vector<4x8x8xf32> to vector<2x8x8xf32>
    %272 = vector.broadcast %266 : f32 to vector<2x8x8xf32>
    %273 = arith.mulf %272, %271 : vector<2x8x8xf32>
    %274 = arith.addf %263, %273 : vector<2x8x8xf32>
    %c0_112 = arith.constant 0 : index
    %c2_113 = arith.constant 2 : index
    %c6_114 = arith.constant 6 : index
    %275 = vector.load %arg10[%c0_112, %c2_113, %c6_114] : memref<4x14x14xf32, #tpu.memory_space<vmem>>, vector<4x8x8xf32>
    %c20 = arith.constant 20 : index
    %276 = memref.load %arg8[%c20] : memref<98xf32, #tpu.memory_space<smem>>
    %c69 = arith.constant 69 : index
    %277 = memref.load %arg8[%c69] : memref<98xf32, #tpu.memory_space<smem>>
    %278 = vector.extract_strided_slice %275 {offsets = [0, 0, 0], sizes = [2, 8, 8], strides = [1, 1, 1]} : vector<4x8x8xf32> to vector<2x8x8xf32>
    %279 = vector.broadcast %276 : f32 to vector<2x8x8xf32>
    %280 = arith.mulf %279, %278 : vector<2x8x8xf32>
    %281 = arith.addf %270, %280 : vector<2x8x8xf32>
    %282 = vector.extract_strided_slice %275 {offsets = [2, 0, 0], sizes = [2, 8, 8], strides = [1, 1, 1]} : vector<4x8x8xf32> to vector<2x8x8xf32>
    %283 = vector.broadcast %277 : f32 to vector<2x8x8xf32>
    %284 = arith.mulf %283, %282 : vector<2x8x8xf32>
    %285 = arith.addf %274, %284 : vector<2x8x8xf32>
    %c0_115 = arith.constant 0 : index
    %c3_116 = arith.constant 3 : index
    %c0_117 = arith.constant 0 : index
    %286 = vector.load %arg10[%c0_115, %c3_116, %c0_117] : memref<4x14x14xf32, #tpu.memory_space<vmem>>, vector<4x8x8xf32>
    %c21 = arith.constant 21 : index
    %287 = memref.load %arg8[%c21] : memref<98xf32, #tpu.memory_space<smem>>
    %c70 = arith.constant 70 : index
    %288 = memref.load %arg8[%c70] : memref<98xf32, #tpu.memory_space<smem>>
    %289 = vector.extract_strided_slice %286 {offsets = [0, 0, 0], sizes = [2, 8, 8], strides = [1, 1, 1]} : vector<4x8x8xf32> to vector<2x8x8xf32>
    %290 = vector.broadcast %287 : f32 to vector<2x8x8xf32>
    %291 = arith.mulf %290, %289 : vector<2x8x8xf32>
    %292 = arith.addf %281, %291 : vector<2x8x8xf32>
    %293 = vector.extract_strided_slice %286 {offsets = [2, 0, 0], sizes = [2, 8, 8], strides = [1, 1, 1]} : vector<4x8x8xf32> to vector<2x8x8xf32>
    %294 = vector.broadcast %288 : f32 to vector<2x8x8xf32>
    %295 = arith.mulf %294, %293 : vector<2x8x8xf32>
    %296 = arith.addf %285, %295 : vector<2x8x8xf32>
    %c0_118 = arith.constant 0 : index
    %c3_119 = arith.constant 3 : index
    %c1_120 = arith.constant 1 : index
    %297 = vector.load %arg10[%c0_118, %c3_119, %c1_120] : memref<4x14x14xf32, #tpu.memory_space<vmem>>, vector<4x8x8xf32>
    %c22 = arith.constant 22 : index
    %298 = memref.load %arg8[%c22] : memref<98xf32, #tpu.memory_space<smem>>
    %c71 = arith.constant 71 : index
    %299 = memref.load %arg8[%c71] : memref<98xf32, #tpu.memory_space<smem>>
    %300 = vector.extract_strided_slice %297 {offsets = [0, 0, 0], sizes = [2, 8, 8], strides = [1, 1, 1]} : vector<4x8x8xf32> to vector<2x8x8xf32>
    %301 = vector.broadcast %298 : f32 to vector<2x8x8xf32>
    %302 = arith.mulf %301, %300 : vector<2x8x8xf32>
    %303 = arith.addf %292, %302 : vector<2x8x8xf32>
    %304 = vector.extract_strided_slice %297 {offsets = [2, 0, 0], sizes = [2, 8, 8], strides = [1, 1, 1]} : vector<4x8x8xf32> to vector<2x8x8xf32>
    %305 = vector.broadcast %299 : f32 to vector<2x8x8xf32>
    %306 = arith.mulf %305, %304 : vector<2x8x8xf32>
    %307 = arith.addf %296, %306 : vector<2x8x8xf32>
    %c0_121 = arith.constant 0 : index
    %c3_122 = arith.constant 3 : index
    %c2_123 = arith.constant 2 : index
    %308 = vector.load %arg10[%c0_121, %c3_122, %c2_123] : memref<4x14x14xf32, #tpu.memory_space<vmem>>, vector<4x8x8xf32>
    %c23 = arith.constant 23 : index
    %309 = memref.load %arg8[%c23] : memref<98xf32, #tpu.memory_space<smem>>
    %c72 = arith.constant 72 : index
    %310 = memref.load %arg8[%c72] : memref<98xf32, #tpu.memory_space<smem>>
    %311 = vector.extract_strided_slice %308 {offsets = [0, 0, 0], sizes = [2, 8, 8], strides = [1, 1, 1]} : vector<4x8x8xf32> to vector<2x8x8xf32>
    %312 = vector.broadcast %309 : f32 to vector<2x8x8xf32>
    %313 = arith.mulf %312, %311 : vector<2x8x8xf32>
    %314 = arith.addf %303, %313 : vector<2x8x8xf32>
    %315 = vector.extract_strided_slice %308 {offsets = [2, 0, 0], sizes = [2, 8, 8], strides = [1, 1, 1]} : vector<4x8x8xf32> to vector<2x8x8xf32>
    %316 = vector.broadcast %310 : f32 to vector<2x8x8xf32>
    %317 = arith.mulf %316, %315 : vector<2x8x8xf32>
    %318 = arith.addf %307, %317 : vector<2x8x8xf32>
    %c0_124 = arith.constant 0 : index
    %c3_125 = arith.constant 3 : index
    %c3_126 = arith.constant 3 : index
    %319 = vector.load %arg10[%c0_124, %c3_125, %c3_126] : memref<4x14x14xf32, #tpu.memory_space<vmem>>, vector<4x8x8xf32>
    %c24 = arith.constant 24 : index
    %320 = memref.load %arg8[%c24] : memref<98xf32, #tpu.memory_space<smem>>
    %c73 = arith.constant 73 : index
    %321 = memref.load %arg8[%c73] : memref<98xf32, #tpu.memory_space<smem>>
    %322 = vector.extract_strided_slice %319 {offsets = [0, 0, 0], sizes = [2, 8, 8], strides = [1, 1, 1]} : vector<4x8x8xf32> to vector<2x8x8xf32>
    %323 = vector.broadcast %320 : f32 to vector<2x8x8xf32>
    %324 = arith.mulf %323, %322 : vector<2x8x8xf32>
    %325 = arith.addf %314, %324 : vector<2x8x8xf32>
    %326 = vector.extract_strided_slice %319 {offsets = [2, 0, 0], sizes = [2, 8, 8], strides = [1, 1, 1]} : vector<4x8x8xf32> to vector<2x8x8xf32>
    %327 = vector.broadcast %321 : f32 to vector<2x8x8xf32>
    %328 = arith.mulf %327, %326 : vector<2x8x8xf32>
    %329 = arith.addf %318, %328 : vector<2x8x8xf32>
    %c0_127 = arith.constant 0 : index
    %c3_128 = arith.constant 3 : index
    %c4_129 = arith.constant 4 : index
    %330 = vector.load %arg10[%c0_127, %c3_128, %c4_129] : memref<4x14x14xf32, #tpu.memory_space<vmem>>, vector<4x8x8xf32>
    %c25 = arith.constant 25 : index
    %331 = memref.load %arg8[%c25] : memref<98xf32, #tpu.memory_space<smem>>
    %c74 = arith.constant 74 : index
    %332 = memref.load %arg8[%c74] : memref<98xf32, #tpu.memory_space<smem>>
    %333 = vector.extract_strided_slice %330 {offsets = [0, 0, 0], sizes = [2, 8, 8], strides = [1, 1, 1]} : vector<4x8x8xf32> to vector<2x8x8xf32>
    %334 = vector.broadcast %331 : f32 to vector<2x8x8xf32>
    %335 = arith.mulf %334, %333 : vector<2x8x8xf32>
    %336 = arith.addf %325, %335 : vector<2x8x8xf32>
    %337 = vector.extract_strided_slice %330 {offsets = [2, 0, 0], sizes = [2, 8, 8], strides = [1, 1, 1]} : vector<4x8x8xf32> to vector<2x8x8xf32>
    %338 = vector.broadcast %332 : f32 to vector<2x8x8xf32>
    %339 = arith.mulf %338, %337 : vector<2x8x8xf32>
    %340 = arith.addf %329, %339 : vector<2x8x8xf32>
    %c0_130 = arith.constant 0 : index
    %c3_131 = arith.constant 3 : index
    %c5_132 = arith.constant 5 : index
    %341 = vector.load %arg10[%c0_130, %c3_131, %c5_132] : memref<4x14x14xf32, #tpu.memory_space<vmem>>, vector<4x8x8xf32>
    %c26 = arith.constant 26 : index
    %342 = memref.load %arg8[%c26] : memref<98xf32, #tpu.memory_space<smem>>
    %c75 = arith.constant 75 : index
    %343 = memref.load %arg8[%c75] : memref<98xf32, #tpu.memory_space<smem>>
    %344 = vector.extract_strided_slice %341 {offsets = [0, 0, 0], sizes = [2, 8, 8], strides = [1, 1, 1]} : vector<4x8x8xf32> to vector<2x8x8xf32>
    %345 = vector.broadcast %342 : f32 to vector<2x8x8xf32>
    %346 = arith.mulf %345, %344 : vector<2x8x8xf32>
    %347 = arith.addf %336, %346 : vector<2x8x8xf32>
    %348 = vector.extract_strided_slice %341 {offsets = [2, 0, 0], sizes = [2, 8, 8], strides = [1, 1, 1]} : vector<4x8x8xf32> to vector<2x8x8xf32>
    %349 = vector.broadcast %343 : f32 to vector<2x8x8xf32>
    %350 = arith.mulf %349, %348 : vector<2x8x8xf32>
    %351 = arith.addf %340, %350 : vector<2x8x8xf32>
    %c0_133 = arith.constant 0 : index
    %c3_134 = arith.constant 3 : index
    %c6_135 = arith.constant 6 : index
    %352 = vector.load %arg10[%c0_133, %c3_134, %c6_135] : memref<4x14x14xf32, #tpu.memory_space<vmem>>, vector<4x8x8xf32>
    %c27 = arith.constant 27 : index
    %353 = memref.load %arg8[%c27] : memref<98xf32, #tpu.memory_space<smem>>
    %c76 = arith.constant 76 : index
    %354 = memref.load %arg8[%c76] : memref<98xf32, #tpu.memory_space<smem>>
    %355 = vector.extract_strided_slice %352 {offsets = [0, 0, 0], sizes = [2, 8, 8], strides = [1, 1, 1]} : vector<4x8x8xf32> to vector<2x8x8xf32>
    %356 = vector.broadcast %353 : f32 to vector<2x8x8xf32>
    %357 = arith.mulf %356, %355 : vector<2x8x8xf32>
    %358 = arith.addf %347, %357 : vector<2x8x8xf32>
    %359 = vector.extract_strided_slice %352 {offsets = [2, 0, 0], sizes = [2, 8, 8], strides = [1, 1, 1]} : vector<4x8x8xf32> to vector<2x8x8xf32>
    %360 = vector.broadcast %354 : f32 to vector<2x8x8xf32>
    %361 = arith.mulf %360, %359 : vector<2x8x8xf32>
    %362 = arith.addf %351, %361 : vector<2x8x8xf32>
    %c0_136 = arith.constant 0 : index
    %c4_137 = arith.constant 4 : index
    %c0_138 = arith.constant 0 : index
    %363 = vector.load %arg10[%c0_136, %c4_137, %c0_138] : memref<4x14x14xf32, #tpu.memory_space<vmem>>, vector<4x8x8xf32>
    %c28 = arith.constant 28 : index
    %364 = memref.load %arg8[%c28] : memref<98xf32, #tpu.memory_space<smem>>
    %c77 = arith.constant 77 : index
    %365 = memref.load %arg8[%c77] : memref<98xf32, #tpu.memory_space<smem>>
    %366 = vector.extract_strided_slice %363 {offsets = [0, 0, 0], sizes = [2, 8, 8], strides = [1, 1, 1]} : vector<4x8x8xf32> to vector<2x8x8xf32>
    %367 = vector.broadcast %364 : f32 to vector<2x8x8xf32>
    %368 = arith.mulf %367, %366 : vector<2x8x8xf32>
    %369 = arith.addf %358, %368 : vector<2x8x8xf32>
    %370 = vector.extract_strided_slice %363 {offsets = [2, 0, 0], sizes = [2, 8, 8], strides = [1, 1, 1]} : vector<4x8x8xf32> to vector<2x8x8xf32>
    %371 = vector.broadcast %365 : f32 to vector<2x8x8xf32>
    %372 = arith.mulf %371, %370 : vector<2x8x8xf32>
    %373 = arith.addf %362, %372 : vector<2x8x8xf32>
    %c0_139 = arith.constant 0 : index
    %c4_140 = arith.constant 4 : index
    %c1_141 = arith.constant 1 : index
    %374 = vector.load %arg10[%c0_139, %c4_140, %c1_141] : memref<4x14x14xf32, #tpu.memory_space<vmem>>, vector<4x8x8xf32>
    %c29 = arith.constant 29 : index
    %375 = memref.load %arg8[%c29] : memref<98xf32, #tpu.memory_space<smem>>
    %c78 = arith.constant 78 : index
    %376 = memref.load %arg8[%c78] : memref<98xf32, #tpu.memory_space<smem>>
    %377 = vector.extract_strided_slice %374 {offsets = [0, 0, 0], sizes = [2, 8, 8], strides = [1, 1, 1]} : vector<4x8x8xf32> to vector<2x8x8xf32>
    %378 = vector.broadcast %375 : f32 to vector<2x8x8xf32>
    %379 = arith.mulf %378, %377 : vector<2x8x8xf32>
    %380 = arith.addf %369, %379 : vector<2x8x8xf32>
    %381 = vector.extract_strided_slice %374 {offsets = [2, 0, 0], sizes = [2, 8, 8], strides = [1, 1, 1]} : vector<4x8x8xf32> to vector<2x8x8xf32>
    %382 = vector.broadcast %376 : f32 to vector<2x8x8xf32>
    %383 = arith.mulf %382, %381 : vector<2x8x8xf32>
    %384 = arith.addf %373, %383 : vector<2x8x8xf32>
    %c0_142 = arith.constant 0 : index
    %c4_143 = arith.constant 4 : index
    %c2_144 = arith.constant 2 : index
    %385 = vector.load %arg10[%c0_142, %c4_143, %c2_144] : memref<4x14x14xf32, #tpu.memory_space<vmem>>, vector<4x8x8xf32>
    %c30 = arith.constant 30 : index
    %386 = memref.load %arg8[%c30] : memref<98xf32, #tpu.memory_space<smem>>
    %c79 = arith.constant 79 : index
    %387 = memref.load %arg8[%c79] : memref<98xf32, #tpu.memory_space<smem>>
    %388 = vector.extract_strided_slice %385 {offsets = [0, 0, 0], sizes = [2, 8, 8], strides = [1, 1, 1]} : vector<4x8x8xf32> to vector<2x8x8xf32>
    %389 = vector.broadcast %386 : f32 to vector<2x8x8xf32>
    %390 = arith.mulf %389, %388 : vector<2x8x8xf32>
    %391 = arith.addf %380, %390 : vector<2x8x8xf32>
    %392 = vector.extract_strided_slice %385 {offsets = [2, 0, 0], sizes = [2, 8, 8], strides = [1, 1, 1]} : vector<4x8x8xf32> to vector<2x8x8xf32>
    %393 = vector.broadcast %387 : f32 to vector<2x8x8xf32>
    %394 = arith.mulf %393, %392 : vector<2x8x8xf32>
    %395 = arith.addf %384, %394 : vector<2x8x8xf32>
    %c0_145 = arith.constant 0 : index
    %c4_146 = arith.constant 4 : index
    %c3_147 = arith.constant 3 : index
    %396 = vector.load %arg10[%c0_145, %c4_146, %c3_147] : memref<4x14x14xf32, #tpu.memory_space<vmem>>, vector<4x8x8xf32>
    %c31 = arith.constant 31 : index
    %397 = memref.load %arg8[%c31] : memref<98xf32, #tpu.memory_space<smem>>
    %c80 = arith.constant 80 : index
    %398 = memref.load %arg8[%c80] : memref<98xf32, #tpu.memory_space<smem>>
    %399 = vector.extract_strided_slice %396 {offsets = [0, 0, 0], sizes = [2, 8, 8], strides = [1, 1, 1]} : vector<4x8x8xf32> to vector<2x8x8xf32>
    %400 = vector.broadcast %397 : f32 to vector<2x8x8xf32>
    %401 = arith.mulf %400, %399 : vector<2x8x8xf32>
    %402 = arith.addf %391, %401 : vector<2x8x8xf32>
    %403 = vector.extract_strided_slice %396 {offsets = [2, 0, 0], sizes = [2, 8, 8], strides = [1, 1, 1]} : vector<4x8x8xf32> to vector<2x8x8xf32>
    %404 = vector.broadcast %398 : f32 to vector<2x8x8xf32>
    %405 = arith.mulf %404, %403 : vector<2x8x8xf32>
    %406 = arith.addf %395, %405 : vector<2x8x8xf32>
    %c0_148 = arith.constant 0 : index
    %c4_149 = arith.constant 4 : index
    %c4_150 = arith.constant 4 : index
    %407 = vector.load %arg10[%c0_148, %c4_149, %c4_150] : memref<4x14x14xf32, #tpu.memory_space<vmem>>, vector<4x8x8xf32>
    %c32 = arith.constant 32 : index
    %408 = memref.load %arg8[%c32] : memref<98xf32, #tpu.memory_space<smem>>
    %c81 = arith.constant 81 : index
    %409 = memref.load %arg8[%c81] : memref<98xf32, #tpu.memory_space<smem>>
    %410 = vector.extract_strided_slice %407 {offsets = [0, 0, 0], sizes = [2, 8, 8], strides = [1, 1, 1]} : vector<4x8x8xf32> to vector<2x8x8xf32>
    %411 = vector.broadcast %408 : f32 to vector<2x8x8xf32>
    %412 = arith.mulf %411, %410 : vector<2x8x8xf32>
    %413 = arith.addf %402, %412 : vector<2x8x8xf32>
    %414 = vector.extract_strided_slice %407 {offsets = [2, 0, 0], sizes = [2, 8, 8], strides = [1, 1, 1]} : vector<4x8x8xf32> to vector<2x8x8xf32>
    %415 = vector.broadcast %409 : f32 to vector<2x8x8xf32>
    %416 = arith.mulf %415, %414 : vector<2x8x8xf32>
    %417 = arith.addf %406, %416 : vector<2x8x8xf32>
    %c0_151 = arith.constant 0 : index
    %c4_152 = arith.constant 4 : index
    %c5_153 = arith.constant 5 : index
    %418 = vector.load %arg10[%c0_151, %c4_152, %c5_153] : memref<4x14x14xf32, #tpu.memory_space<vmem>>, vector<4x8x8xf32>
    %c33 = arith.constant 33 : index
    %419 = memref.load %arg8[%c33] : memref<98xf32, #tpu.memory_space<smem>>
    %c82 = arith.constant 82 : index
    %420 = memref.load %arg8[%c82] : memref<98xf32, #tpu.memory_space<smem>>
    %421 = vector.extract_strided_slice %418 {offsets = [0, 0, 0], sizes = [2, 8, 8], strides = [1, 1, 1]} : vector<4x8x8xf32> to vector<2x8x8xf32>
    %422 = vector.broadcast %419 : f32 to vector<2x8x8xf32>
    %423 = arith.mulf %422, %421 : vector<2x8x8xf32>
    %424 = arith.addf %413, %423 : vector<2x8x8xf32>
    %425 = vector.extract_strided_slice %418 {offsets = [2, 0, 0], sizes = [2, 8, 8], strides = [1, 1, 1]} : vector<4x8x8xf32> to vector<2x8x8xf32>
    %426 = vector.broadcast %420 : f32 to vector<2x8x8xf32>
    %427 = arith.mulf %426, %425 : vector<2x8x8xf32>
    %428 = arith.addf %417, %427 : vector<2x8x8xf32>
    %c0_154 = arith.constant 0 : index
    %c4_155 = arith.constant 4 : index
    %c6_156 = arith.constant 6 : index
    %429 = vector.load %arg10[%c0_154, %c4_155, %c6_156] : memref<4x14x14xf32, #tpu.memory_space<vmem>>, vector<4x8x8xf32>
    %c34 = arith.constant 34 : index
    %430 = memref.load %arg8[%c34] : memref<98xf32, #tpu.memory_space<smem>>
    %c83 = arith.constant 83 : index
    %431 = memref.load %arg8[%c83] : memref<98xf32, #tpu.memory_space<smem>>
    %432 = vector.extract_strided_slice %429 {offsets = [0, 0, 0], sizes = [2, 8, 8], strides = [1, 1, 1]} : vector<4x8x8xf32> to vector<2x8x8xf32>
    %433 = vector.broadcast %430 : f32 to vector<2x8x8xf32>
    %434 = arith.mulf %433, %432 : vector<2x8x8xf32>
    %435 = arith.addf %424, %434 : vector<2x8x8xf32>
    %436 = vector.extract_strided_slice %429 {offsets = [2, 0, 0], sizes = [2, 8, 8], strides = [1, 1, 1]} : vector<4x8x8xf32> to vector<2x8x8xf32>
    %437 = vector.broadcast %431 : f32 to vector<2x8x8xf32>
    %438 = arith.mulf %437, %436 : vector<2x8x8xf32>
    %439 = arith.addf %428, %438 : vector<2x8x8xf32>
    %c0_157 = arith.constant 0 : index
    %c5_158 = arith.constant 5 : index
    %c0_159 = arith.constant 0 : index
    %440 = vector.load %arg10[%c0_157, %c5_158, %c0_159] : memref<4x14x14xf32, #tpu.memory_space<vmem>>, vector<4x8x8xf32>
    %c35 = arith.constant 35 : index
    %441 = memref.load %arg8[%c35] : memref<98xf32, #tpu.memory_space<smem>>
    %c84 = arith.constant 84 : index
    %442 = memref.load %arg8[%c84] : memref<98xf32, #tpu.memory_space<smem>>
    %443 = vector.extract_strided_slice %440 {offsets = [0, 0, 0], sizes = [2, 8, 8], strides = [1, 1, 1]} : vector<4x8x8xf32> to vector<2x8x8xf32>
    %444 = vector.broadcast %441 : f32 to vector<2x8x8xf32>
    %445 = arith.mulf %444, %443 : vector<2x8x8xf32>
    %446 = arith.addf %435, %445 : vector<2x8x8xf32>
    %447 = vector.extract_strided_slice %440 {offsets = [2, 0, 0], sizes = [2, 8, 8], strides = [1, 1, 1]} : vector<4x8x8xf32> to vector<2x8x8xf32>
    %448 = vector.broadcast %442 : f32 to vector<2x8x8xf32>
    %449 = arith.mulf %448, %447 : vector<2x8x8xf32>
    %450 = arith.addf %439, %449 : vector<2x8x8xf32>
    %c0_160 = arith.constant 0 : index
    %c5_161 = arith.constant 5 : index
    %c1_162 = arith.constant 1 : index
    %451 = vector.load %arg10[%c0_160, %c5_161, %c1_162] : memref<4x14x14xf32, #tpu.memory_space<vmem>>, vector<4x8x8xf32>
    %c36 = arith.constant 36 : index
    %452 = memref.load %arg8[%c36] : memref<98xf32, #tpu.memory_space<smem>>
    %c85 = arith.constant 85 : index
    %453 = memref.load %arg8[%c85] : memref<98xf32, #tpu.memory_space<smem>>
    %454 = vector.extract_strided_slice %451 {offsets = [0, 0, 0], sizes = [2, 8, 8], strides = [1, 1, 1]} : vector<4x8x8xf32> to vector<2x8x8xf32>
    %455 = vector.broadcast %452 : f32 to vector<2x8x8xf32>
    %456 = arith.mulf %455, %454 : vector<2x8x8xf32>
    %457 = arith.addf %446, %456 : vector<2x8x8xf32>
    %458 = vector.extract_strided_slice %451 {offsets = [2, 0, 0], sizes = [2, 8, 8], strides = [1, 1, 1]} : vector<4x8x8xf32> to vector<2x8x8xf32>
    %459 = vector.broadcast %453 : f32 to vector<2x8x8xf32>
    %460 = arith.mulf %459, %458 : vector<2x8x8xf32>
    %461 = arith.addf %450, %460 : vector<2x8x8xf32>
    %c0_163 = arith.constant 0 : index
    %c5_164 = arith.constant 5 : index
    %c2_165 = arith.constant 2 : index
    %462 = vector.load %arg10[%c0_163, %c5_164, %c2_165] : memref<4x14x14xf32, #tpu.memory_space<vmem>>, vector<4x8x8xf32>
    %c37 = arith.constant 37 : index
    %463 = memref.load %arg8[%c37] : memref<98xf32, #tpu.memory_space<smem>>
    %c86 = arith.constant 86 : index
    %464 = memref.load %arg8[%c86] : memref<98xf32, #tpu.memory_space<smem>>
    %465 = vector.extract_strided_slice %462 {offsets = [0, 0, 0], sizes = [2, 8, 8], strides = [1, 1, 1]} : vector<4x8x8xf32> to vector<2x8x8xf32>
    %466 = vector.broadcast %463 : f32 to vector<2x8x8xf32>
    %467 = arith.mulf %466, %465 : vector<2x8x8xf32>
    %468 = arith.addf %457, %467 : vector<2x8x8xf32>
    %469 = vector.extract_strided_slice %462 {offsets = [2, 0, 0], sizes = [2, 8, 8], strides = [1, 1, 1]} : vector<4x8x8xf32> to vector<2x8x8xf32>
    %470 = vector.broadcast %464 : f32 to vector<2x8x8xf32>
    %471 = arith.mulf %470, %469 : vector<2x8x8xf32>
    %472 = arith.addf %461, %471 : vector<2x8x8xf32>
    %c0_166 = arith.constant 0 : index
    %c5_167 = arith.constant 5 : index
    %c3_168 = arith.constant 3 : index
    %473 = vector.load %arg10[%c0_166, %c5_167, %c3_168] : memref<4x14x14xf32, #tpu.memory_space<vmem>>, vector<4x8x8xf32>
    %c38 = arith.constant 38 : index
    %474 = memref.load %arg8[%c38] : memref<98xf32, #tpu.memory_space<smem>>
    %c87 = arith.constant 87 : index
    %475 = memref.load %arg8[%c87] : memref<98xf32, #tpu.memory_space<smem>>
    %476 = vector.extract_strided_slice %473 {offsets = [0, 0, 0], sizes = [2, 8, 8], strides = [1, 1, 1]} : vector<4x8x8xf32> to vector<2x8x8xf32>
    %477 = vector.broadcast %474 : f32 to vector<2x8x8xf32>
    %478 = arith.mulf %477, %476 : vector<2x8x8xf32>
    %479 = arith.addf %468, %478 : vector<2x8x8xf32>
    %480 = vector.extract_strided_slice %473 {offsets = [2, 0, 0], sizes = [2, 8, 8], strides = [1, 1, 1]} : vector<4x8x8xf32> to vector<2x8x8xf32>
    %481 = vector.broadcast %475 : f32 to vector<2x8x8xf32>
    %482 = arith.mulf %481, %480 : vector<2x8x8xf32>
    %483 = arith.addf %472, %482 : vector<2x8x8xf32>
    %c0_169 = arith.constant 0 : index
    %c5_170 = arith.constant 5 : index
    %c4_171 = arith.constant 4 : index
    %484 = vector.load %arg10[%c0_169, %c5_170, %c4_171] : memref<4x14x14xf32, #tpu.memory_space<vmem>>, vector<4x8x8xf32>
    %c39 = arith.constant 39 : index
    %485 = memref.load %arg8[%c39] : memref<98xf32, #tpu.memory_space<smem>>
    %c88 = arith.constant 88 : index
    %486 = memref.load %arg8[%c88] : memref<98xf32, #tpu.memory_space<smem>>
    %487 = vector.extract_strided_slice %484 {offsets = [0, 0, 0], sizes = [2, 8, 8], strides = [1, 1, 1]} : vector<4x8x8xf32> to vector<2x8x8xf32>
    %488 = vector.broadcast %485 : f32 to vector<2x8x8xf32>
    %489 = arith.mulf %488, %487 : vector<2x8x8xf32>
    %490 = arith.addf %479, %489 : vector<2x8x8xf32>
    %491 = vector.extract_strided_slice %484 {offsets = [2, 0, 0], sizes = [2, 8, 8], strides = [1, 1, 1]} : vector<4x8x8xf32> to vector<2x8x8xf32>
    %492 = vector.broadcast %486 : f32 to vector<2x8x8xf32>
    %493 = arith.mulf %492, %491 : vector<2x8x8xf32>
    %494 = arith.addf %483, %493 : vector<2x8x8xf32>
    %c0_172 = arith.constant 0 : index
    %c5_173 = arith.constant 5 : index
    %c5_174 = arith.constant 5 : index
    %495 = vector.load %arg10[%c0_172, %c5_173, %c5_174] : memref<4x14x14xf32, #tpu.memory_space<vmem>>, vector<4x8x8xf32>
    %c40 = arith.constant 40 : index
    %496 = memref.load %arg8[%c40] : memref<98xf32, #tpu.memory_space<smem>>
    %c89 = arith.constant 89 : index
    %497 = memref.load %arg8[%c89] : memref<98xf32, #tpu.memory_space<smem>>
    %498 = vector.extract_strided_slice %495 {offsets = [0, 0, 0], sizes = [2, 8, 8], strides = [1, 1, 1]} : vector<4x8x8xf32> to vector<2x8x8xf32>
    %499 = vector.broadcast %496 : f32 to vector<2x8x8xf32>
    %500 = arith.mulf %499, %498 : vector<2x8x8xf32>
    %501 = arith.addf %490, %500 : vector<2x8x8xf32>
    %502 = vector.extract_strided_slice %495 {offsets = [2, 0, 0], sizes = [2, 8, 8], strides = [1, 1, 1]} : vector<4x8x8xf32> to vector<2x8x8xf32>
    %503 = vector.broadcast %497 : f32 to vector<2x8x8xf32>
    %504 = arith.mulf %503, %502 : vector<2x8x8xf32>
    %505 = arith.addf %494, %504 : vector<2x8x8xf32>
    %c0_175 = arith.constant 0 : index
    %c5_176 = arith.constant 5 : index
    %c6_177 = arith.constant 6 : index
    %506 = vector.load %arg10[%c0_175, %c5_176, %c6_177] : memref<4x14x14xf32, #tpu.memory_space<vmem>>, vector<4x8x8xf32>
    %c41 = arith.constant 41 : index
    %507 = memref.load %arg8[%c41] : memref<98xf32, #tpu.memory_space<smem>>
    %c90 = arith.constant 90 : index
    %508 = memref.load %arg8[%c90] : memref<98xf32, #tpu.memory_space<smem>>
    %509 = vector.extract_strided_slice %506 {offsets = [0, 0, 0], sizes = [2, 8, 8], strides = [1, 1, 1]} : vector<4x8x8xf32> to vector<2x8x8xf32>
    %510 = vector.broadcast %507 : f32 to vector<2x8x8xf32>
    %511 = arith.mulf %510, %509 : vector<2x8x8xf32>
    %512 = arith.addf %501, %511 : vector<2x8x8xf32>
    %513 = vector.extract_strided_slice %506 {offsets = [2, 0, 0], sizes = [2, 8, 8], strides = [1, 1, 1]} : vector<4x8x8xf32> to vector<2x8x8xf32>
    %514 = vector.broadcast %508 : f32 to vector<2x8x8xf32>
    %515 = arith.mulf %514, %513 : vector<2x8x8xf32>
    %516 = arith.addf %505, %515 : vector<2x8x8xf32>
    %c0_178 = arith.constant 0 : index
    %c6_179 = arith.constant 6 : index
    %c0_180 = arith.constant 0 : index
    %517 = vector.load %arg10[%c0_178, %c6_179, %c0_180] : memref<4x14x14xf32, #tpu.memory_space<vmem>>, vector<4x8x8xf32>
    %c42 = arith.constant 42 : index
    %518 = memref.load %arg8[%c42] : memref<98xf32, #tpu.memory_space<smem>>
    %c91 = arith.constant 91 : index
    %519 = memref.load %arg8[%c91] : memref<98xf32, #tpu.memory_space<smem>>
    %520 = vector.extract_strided_slice %517 {offsets = [0, 0, 0], sizes = [2, 8, 8], strides = [1, 1, 1]} : vector<4x8x8xf32> to vector<2x8x8xf32>
    %521 = vector.broadcast %518 : f32 to vector<2x8x8xf32>
    %522 = arith.mulf %521, %520 : vector<2x8x8xf32>
    %523 = arith.addf %512, %522 : vector<2x8x8xf32>
    %524 = vector.extract_strided_slice %517 {offsets = [2, 0, 0], sizes = [2, 8, 8], strides = [1, 1, 1]} : vector<4x8x8xf32> to vector<2x8x8xf32>
    %525 = vector.broadcast %519 : f32 to vector<2x8x8xf32>
    %526 = arith.mulf %525, %524 : vector<2x8x8xf32>
    %527 = arith.addf %516, %526 : vector<2x8x8xf32>
    %c0_181 = arith.constant 0 : index
    %c6_182 = arith.constant 6 : index
    %c1_183 = arith.constant 1 : index
    %528 = vector.load %arg10[%c0_181, %c6_182, %c1_183] : memref<4x14x14xf32, #tpu.memory_space<vmem>>, vector<4x8x8xf32>
    %c43 = arith.constant 43 : index
    %529 = memref.load %arg8[%c43] : memref<98xf32, #tpu.memory_space<smem>>
    %c92 = arith.constant 92 : index
    %530 = memref.load %arg8[%c92] : memref<98xf32, #tpu.memory_space<smem>>
    %531 = vector.extract_strided_slice %528 {offsets = [0, 0, 0], sizes = [2, 8, 8], strides = [1, 1, 1]} : vector<4x8x8xf32> to vector<2x8x8xf32>
    %532 = vector.broadcast %529 : f32 to vector<2x8x8xf32>
    %533 = arith.mulf %532, %531 : vector<2x8x8xf32>
    %534 = arith.addf %523, %533 : vector<2x8x8xf32>
    %535 = vector.extract_strided_slice %528 {offsets = [2, 0, 0], sizes = [2, 8, 8], strides = [1, 1, 1]} : vector<4x8x8xf32> to vector<2x8x8xf32>
    %536 = vector.broadcast %530 : f32 to vector<2x8x8xf32>
    %537 = arith.mulf %536, %535 : vector<2x8x8xf32>
    %538 = arith.addf %527, %537 : vector<2x8x8xf32>
    %c0_184 = arith.constant 0 : index
    %c6_185 = arith.constant 6 : index
    %c2_186 = arith.constant 2 : index
    %539 = vector.load %arg10[%c0_184, %c6_185, %c2_186] : memref<4x14x14xf32, #tpu.memory_space<vmem>>, vector<4x8x8xf32>
    %c44 = arith.constant 44 : index
    %540 = memref.load %arg8[%c44] : memref<98xf32, #tpu.memory_space<smem>>
    %c93 = arith.constant 93 : index
    %541 = memref.load %arg8[%c93] : memref<98xf32, #tpu.memory_space<smem>>
    %542 = vector.extract_strided_slice %539 {offsets = [0, 0, 0], sizes = [2, 8, 8], strides = [1, 1, 1]} : vector<4x8x8xf32> to vector<2x8x8xf32>
    %543 = vector.broadcast %540 : f32 to vector<2x8x8xf32>
    %544 = arith.mulf %543, %542 : vector<2x8x8xf32>
    %545 = arith.addf %534, %544 : vector<2x8x8xf32>
    %546 = vector.extract_strided_slice %539 {offsets = [2, 0, 0], sizes = [2, 8, 8], strides = [1, 1, 1]} : vector<4x8x8xf32> to vector<2x8x8xf32>
    %547 = vector.broadcast %541 : f32 to vector<2x8x8xf32>
    %548 = arith.mulf %547, %546 : vector<2x8x8xf32>
    %549 = arith.addf %538, %548 : vector<2x8x8xf32>
    %c0_187 = arith.constant 0 : index
    %c6_188 = arith.constant 6 : index
    %c3_189 = arith.constant 3 : index
    %550 = vector.load %arg10[%c0_187, %c6_188, %c3_189] : memref<4x14x14xf32, #tpu.memory_space<vmem>>, vector<4x8x8xf32>
    %c45 = arith.constant 45 : index
    %551 = memref.load %arg8[%c45] : memref<98xf32, #tpu.memory_space<smem>>
    %c94 = arith.constant 94 : index
    %552 = memref.load %arg8[%c94] : memref<98xf32, #tpu.memory_space<smem>>
    %553 = vector.extract_strided_slice %550 {offsets = [0, 0, 0], sizes = [2, 8, 8], strides = [1, 1, 1]} : vector<4x8x8xf32> to vector<2x8x8xf32>
    %554 = vector.broadcast %551 : f32 to vector<2x8x8xf32>
    %555 = arith.mulf %554, %553 : vector<2x8x8xf32>
    %556 = arith.addf %545, %555 : vector<2x8x8xf32>
    %557 = vector.extract_strided_slice %550 {offsets = [2, 0, 0], sizes = [2, 8, 8], strides = [1, 1, 1]} : vector<4x8x8xf32> to vector<2x8x8xf32>
    %558 = vector.broadcast %552 : f32 to vector<2x8x8xf32>
    %559 = arith.mulf %558, %557 : vector<2x8x8xf32>
    %560 = arith.addf %549, %559 : vector<2x8x8xf32>
    %c0_190 = arith.constant 0 : index
    %c6_191 = arith.constant 6 : index
    %c4_192 = arith.constant 4 : index
    %561 = vector.load %arg10[%c0_190, %c6_191, %c4_192] : memref<4x14x14xf32, #tpu.memory_space<vmem>>, vector<4x8x8xf32>
    %c46 = arith.constant 46 : index
    %562 = memref.load %arg8[%c46] : memref<98xf32, #tpu.memory_space<smem>>
    %c95 = arith.constant 95 : index
    %563 = memref.load %arg8[%c95] : memref<98xf32, #tpu.memory_space<smem>>
    %564 = vector.extract_strided_slice %561 {offsets = [0, 0, 0], sizes = [2, 8, 8], strides = [1, 1, 1]} : vector<4x8x8xf32> to vector<2x8x8xf32>
    %565 = vector.broadcast %562 : f32 to vector<2x8x8xf32>
    %566 = arith.mulf %565, %564 : vector<2x8x8xf32>
    %567 = arith.addf %556, %566 : vector<2x8x8xf32>
    %568 = vector.extract_strided_slice %561 {offsets = [2, 0, 0], sizes = [2, 8, 8], strides = [1, 1, 1]} : vector<4x8x8xf32> to vector<2x8x8xf32>
    %569 = vector.broadcast %563 : f32 to vector<2x8x8xf32>
    %570 = arith.mulf %569, %568 : vector<2x8x8xf32>
    %571 = arith.addf %560, %570 : vector<2x8x8xf32>
    %c0_193 = arith.constant 0 : index
    %c6_194 = arith.constant 6 : index
    %c5_195 = arith.constant 5 : index
    %572 = vector.load %arg10[%c0_193, %c6_194, %c5_195] : memref<4x14x14xf32, #tpu.memory_space<vmem>>, vector<4x8x8xf32>
    %c47 = arith.constant 47 : index
    %573 = memref.load %arg8[%c47] : memref<98xf32, #tpu.memory_space<smem>>
    %c96 = arith.constant 96 : index
    %574 = memref.load %arg8[%c96] : memref<98xf32, #tpu.memory_space<smem>>
    %575 = vector.extract_strided_slice %572 {offsets = [0, 0, 0], sizes = [2, 8, 8], strides = [1, 1, 1]} : vector<4x8x8xf32> to vector<2x8x8xf32>
    %576 = vector.broadcast %573 : f32 to vector<2x8x8xf32>
    %577 = arith.mulf %576, %575 : vector<2x8x8xf32>
    %578 = arith.addf %567, %577 : vector<2x8x8xf32>
    %579 = vector.extract_strided_slice %572 {offsets = [2, 0, 0], sizes = [2, 8, 8], strides = [1, 1, 1]} : vector<4x8x8xf32> to vector<2x8x8xf32>
    %580 = vector.broadcast %574 : f32 to vector<2x8x8xf32>
    %581 = arith.mulf %580, %579 : vector<2x8x8xf32>
    %582 = arith.addf %571, %581 : vector<2x8x8xf32>
    %c0_196 = arith.constant 0 : index
    %c6_197 = arith.constant 6 : index
    %c6_198 = arith.constant 6 : index
    %583 = vector.load %arg10[%c0_196, %c6_197, %c6_198] : memref<4x14x14xf32, #tpu.memory_space<vmem>>, vector<4x8x8xf32>
    %c48 = arith.constant 48 : index
    %584 = memref.load %arg8[%c48] : memref<98xf32, #tpu.memory_space<smem>>
    %c97 = arith.constant 97 : index
    %585 = memref.load %arg8[%c97] : memref<98xf32, #tpu.memory_space<smem>>
    %586 = vector.extract_strided_slice %583 {offsets = [0, 0, 0], sizes = [2, 8, 8], strides = [1, 1, 1]} : vector<4x8x8xf32> to vector<2x8x8xf32>
    %587 = vector.broadcast %584 : f32 to vector<2x8x8xf32>
    %588 = arith.mulf %587, %586 : vector<2x8x8xf32>
    %589 = arith.addf %578, %588 : vector<2x8x8xf32>
    %590 = vector.extract_strided_slice %583 {offsets = [2, 0, 0], sizes = [2, 8, 8], strides = [1, 1, 1]} : vector<4x8x8xf32> to vector<2x8x8xf32>
    %591 = vector.broadcast %585 : f32 to vector<2x8x8xf32>
    %592 = arith.mulf %591, %590 : vector<2x8x8xf32>
    %593 = arith.addf %582, %592 : vector<2x8x8xf32>
    %594 = arith.addf %589, %593 : vector<2x8x8xf32>
    %595 = arith.negf %594 : vector<2x8x8xf32>
    %596 = math.exp %595 : vector<2x8x8xf32>
    %cst_199 = arith.constant 1.000000e+00 : f32
    %597 = vector.broadcast %cst_199 : f32 to vector<2x8x8xf32>
    %598 = arith.addf %597, %596 : vector<2x8x8xf32>
    %599 = arith.divf %597, %598 : vector<2x8x8xf32>
    %600 = vector.shape_cast %36 : vector<2x384xf32> to vector<2x1x1x384xf32>
    %601 = vector.shape_cast %599 : vector<2x8x8xf32> to vector<2x8x8x1xf32>
    %602 = vector.broadcast %600 : vector<2x1x1x384xf32> to vector<2x8x8x384xf32>
    %603 = vector.broadcast %601 : vector<2x8x8x1xf32> to vector<2x8x8x384xf32>
    %604 = arith.mulf %602, %603 : vector<2x8x8x384xf32>
    %cst_200 = arith.constant 1.000000e+00 : f32
    %605 = vector.broadcast %cst_200 : f32 to vector<2x8x8x384xf32>
    %606 = arith.addf %605, %604 : vector<2x8x8x384xf32>
    %607 = arith.mulf %37, %606 : vector<2x8x8x384xf32>
    %c0_201 = arith.constant 0 : index
    %c0_202 = arith.constant 0 : index
    %c0_203 = arith.constant 0 : index
    %c0_204 = arith.constant 0 : index
    %608 = vector.load %arg9[%c0_201, %c0_202, %c0_203, %c0_204] : memref<2x8x8x384xf32, #tpu.memory_space<vmem>>, vector<2x8x8x384xf32>
    tpu.vector_store %arg9[%c0_201, %c0_202, %c0_203, %c0_204], %607 {strides = array<i32>} : memref<2x8x8x384xf32, #tpu.memory_space<vmem>>, vector<2x8x8x384xf32>,
    return
  }
  func.func @transform_0(%arg0: i32) -> (i32, i32, i32, i32) {
    %c0_i32 = arith.constant 0 : i32
    %c0_i32_0 = arith.constant 0 : i32
    %c0_i32_1 = arith.constant 0 : i32
    %c0_i32_2 = arith.constant 0 : i32
    return %arg0, %c0_i32, %c0_i32_0, %c0_i32_1 : i32, i32, i32, i32
  }
  func.func @transform_1(%arg0: i32) -> (i32, i32, i32, i32) {
    %c0_i32 = arith.constant 0 : i32
    %c0_i32_0 = arith.constant 0 : i32
    %c0_i32_1 = arith.constant 0 : i32
    %c0_i32_2 = arith.constant 0 : i32
    return %arg0, %c0_i32, %c0_i32_0, %c0_i32_1 : i32, i32, i32, i32
  }
  func.func @transform_2(%arg0: i32) -> (i32, i32) {
    %c0_i32 = arith.constant 0 : i32
    %c0_i32_0 = arith.constant 0 : i32
    %c0_i32_1 = arith.constant 0 : i32
    return %c0_i32, %c0_i32_0 : i32, i32
  }
  func.func @transform_3(%arg0: i32) -> (i32, i32) {
    %c0_i32 = arith.constant 0 : i32
    %c0_i32_0 = arith.constant 0 : i32
    %c0_i32_1 = arith.constant 0 : i32
    return %c0_i32, %c0_i32_0 : i32, i32
  }
  func.func @transform_4(%arg0: i32) -> (i32, i32) {
    %c0_i32 = arith.constant 0 : i32
    %c0_i32_0 = arith.constant 0 : i32
    %c0_i32_1 = arith.constant 0 : i32
    return %c0_i32, %c0_i32_0 : i32, i32
  }
  func.func @transform_5(%arg0: i32) -> (i32, i32) {
    %c0_i32 = arith.constant 0 : i32
    %c0_i32_0 = arith.constant 0 : i32
    %c0_i32_1 = arith.constant 0 : i32
    return %c0_i32, %c0_i32_0 : i32, i32
  }
  func.func @transform_6(%arg0: i32) -> (i32, i32) {
    %c0_i32 = arith.constant 0 : i32
    %c0_i32_0 = arith.constant 0 : i32
    %c0_i32_1 = arith.constant 0 : i32
    return %c0_i32, %c0_i32_0 : i32, i32
  }
  func.func @transform_7(%arg0: i32) -> i32 {
    %c0_i32 = arith.constant 0 : i32
    %c0_i32_0 = arith.constant 0 : i32
    return %c0_i32 : i32
  }
  func.func @transform_8(%arg0: i32) -> (i32, i32, i32, i32) {
    %c0_i32 = arith.constant 0 : i32
    %c0_i32_0 = arith.constant 0 : i32
    %c0_i32_1 = arith.constant 0 : i32
    %c0_i32_2 = arith.constant 0 : i32
    return %arg0, %c0_i32, %c0_i32_0, %c0_i32_1 : i32, i32, i32, i32
  }
}

</mosaic_0001>

<llo_original>
// kernel: stage3_gif_forward.1
$region0: #{stage3_gif_forward.1}
  #allocation0 [shape = 'u32[]', space=smem, size = 0x4, offset = 0x4, fixed_abs, tag = 'smem constant byte address 0x4 - core index']
  #allocation1 [shape = 'u32[144,128]{1,0:T(1,128)}', space=vmem, size = 0x12000, scoped, tag = 'internal scratch']
  #allocation2 [shape = 'f32[4,14,14]{2,1,0:T(8,128)}', space=vmem, size = 0x8000, scoped, tag = 'scratch operand']
  %s0 = inlined_call_operand.vmem [shape: bf16[2,8,8,128], index: 0, kind: input, shape index: {}]
  %s1 = inlined_call_operand.hbm [shape: f32[2,8,8,384], index: 1, kind: input, shape index: {}]
  %s2 = inlined_call_operand.vmem [shape: bf16[128,384], index: 2, kind: input, shape index: {}]
  %s3 = inlined_call_operand.hbm [shape: bf16[384,384], index: 3, kind: input, shape index: {}]
  %s4 = inlined_call_operand.vmem [shape: f32[1,384], index: 4, kind: input, shape index: {}]
  %s5 = inlined_call_operand.hbm [shape: bf16[384,128], index: 5, kind: input, shape index: {}]
  %s6 = inlined_call_operand.hbm [shape: bf16[128,384], index: 6, kind: input, shape index: {}]
  %s7 = inlined_call_operand.vmem [shape: f32[98], index: 7, kind: input, shape index: {}]
  %s8 = inlined_call_operand.vmem [shape: f32[2,8,8,384], index: 8, kind: output, shape index: {}]
  %s9 = sld [smem:[#allocation0]]
  $region62: #{stage3_gif_forward.1} parent=0
    _
  %s11 = ssub.s32 1, %s9
  %s12 = scalar_select 0, %s11, %s9
  $region1: #{stage3_gif_forward.1} parent=0
    #allocation3 [shape = 'u8[196608]{0}', space=vmem, size = 0x30000, scoped, tag = 'input window, operand 1, single buffered']
    #allocation4 [shape = 's32[1]{0}', space=sflag, size = 0x4, scoped, tag = 'scoped memory for stage3_gif_forward.1']
    #allocation5 [shape = 's32[1]{0}', space=sflag, size = 0x4, scoped, tag = 'scoped memory for stage3_gif_forward.1']
    #allocation6 [shape = 'u8[294912]{0}', space=vmem, size = 0x48000, scoped, tag = 'input window, operand 3, single buffered']
    #allocation7 [shape = 's32[1]{0}', space=sflag, size = 0x4, scoped, tag = 'scoped memory for stage3_gif_forward.1']
    #allocation8 [shape = 'u8[98304]{0}', space=vmem, size = 0x18000, scoped, tag = 'input window, operand 5, single buffered']
    #allocation9 [shape = 'u8[98304]{0}', space=vmem, size = 0x18000, scoped, tag = 'input window, operand 6, single buffered']
    #allocation10 [shape = 's32[1]{0}', space=sflag, size = 0x4, scoped, tag = 'scoped memory for stage3_gif_forward.1']
    #allocation11 [shape = 'u8[512]{0}', space=smem, size = 0x200, scoped, tag = 'input window, operand 7, single buffered']
    %13 = vsyncpa [#allocation4], 0
    %14 = vsyncpa [#allocation7], 0
    %15 = vsyncpa [#allocation10], 0
    %16 = vsyncpa [#allocation5], 0
    // Predicated region
    $region2: #{stage3_gif_forward.1} parent=1 // pred_check
      _
    $region3: #{stage3_gif_forward.1} parent=1 // pred_check_branch
      %18 = sbr.rel (0) target = $region5
    $region4: #{stage3_gif_forward.1} parent=1 // pred_region
      _
    $region5: #{stage3_gif_forward.1} parent=1 // pred_fallthru
      _
    // Predicated region
    $region6: #{stage3_gif_forward.1} parent=1 // pred_check
      _
    $region7: #{stage3_gif_forward.1} parent=1 // pred_check_branch
      %20 = sbr.rel (0) target = $region9
    $region8: #{stage3_gif_forward.1} parent=1 // pred_region
      %s22 = ssub.s32 6144, 6144
      %23 = vsyncadd [#allocation4], %s22
      %s24 = sshll.u32 [#allocation3], 4
      %s25 = int_to_ptr.vmem [resolvable:$true] %s24
      %30 = dma.hbm_to_vmem [thread:$0]  %s1, 6144, %s25, [#allocation4], 384, 384, 24
    $region9: #{stage3_gif_forward.1} parent=1 // pred_fallthru
      _
    // Predicated region
    $region10: #{stage3_gif_forward.1} parent=1 // pred_check
      _
    $region11: #{stage3_gif_forward.1} parent=1 // pred_check_branch
      %32 = sbr.rel (0) target = $region13
    $region12: #{stage3_gif_forward.1} parent=1 // pred_region
      _
    $region13: #{stage3_gif_forward.1} parent=1 // pred_fallthru
      _
    // Predicated region
    $region14: #{stage3_gif_forward.1} parent=1 // pred_check
      _
    $region15: #{stage3_gif_forward.1} parent=1 // pred_check_branch
      %34 = sbr.rel (0) target = $region17
    $region16: #{stage3_gif_forward.1} parent=1 // pred_region
      %s36 = ssub.s32 9216, 9216
      %37 = vsyncadd [#allocation7], %s36
      %s38 = sshll.u32 [#allocation6], 4
      %s39 = int_to_ptr.vmem [resolvable:$true] %s38
      %44 = dma.hbm_to_vmem [thread:$0]  %s3, 9216, %s39, [#allocation7], 192, 192, 12
    $region17: #{stage3_gif_forward.1} parent=1 // pred_fallthru
      _
    // Predicated region
    $region18: #{stage3_gif_forward.1} parent=1 // pred_check
      _
    $region19: #{stage3_gif_forward.1} parent=1 // pred_check_branch
      %46 = sbr.rel (0) target = $region21
    $region20: #{stage3_gif_forward.1} parent=1 // pred_region
      _
    $region21: #{stage3_gif_forward.1} parent=1 // pred_fallthru
      _
    // Predicated region
    $region22: #{stage3_gif_forward.1} parent=1 // pred_check
      _
    $region23: #{stage3_gif_forward.1} parent=1 // pred_check_branch
      %48 = sbr.rel (0) target = $region25
    $region24: #{stage3_gif_forward.1} parent=1 // pred_region
      %s50 = ssub.s32 3072, 3072
      %51 = vsyncadd [#allocation7], %s50
      %s52 = sshll.u32 [#allocation8], 4
      %s53 = int_to_ptr.vmem [resolvable:$true] %s52
      %58 = dma.hbm_to_vmem [thread:$0]  %s5, 3072, %s53, [#allocation7], 64, 64, 4
    $region25: #{stage3_gif_forward.1} parent=1 // pred_fallthru
      _
    // Predicated region
    $region26: #{stage3_gif_forward.1} parent=1 // pred_check
      _
    $region27: #{stage3_gif_forward.1} parent=1 // pred_check_branch
      %60 = sbr.rel (0) target = $region29
    $region28: #{stage3_gif_forward.1} parent=1 // pred_region
      %s62 = ssub.s32 3072, 3072
      %63 = vsyncadd [#allocation10], %s62
      %s64 = sshll.u32 [#allocation9], 4
      %s65 = int_to_ptr.vmem [resolvable:$true] %s64
      %70 = dma.hbm_to_vmem [thread:$0]  %s6, 3072, %s65, [#allocation10], 192, 192, 12
    $region29: #{stage3_gif_forward.1} parent=1 // pred_fallthru
      _
    // Predicated region
    $region30: #{stage3_gif_forward.1} parent=1 // pred_check
      _
    $region31: #{stage3_gif_forward.1} parent=1 // pred_check_branch
      %72 = sbr.rel (0) target = $region33
    $region32: #{stage3_gif_forward.1} parent=1 // pred_region
      %s74 = ssub.s32 16, 16
      %75 = vsyncadd [#allocation5], %s74
      %s77 = sshll.u32 %s7, 4
      %s78 = int_to_ptr.vmem [resolvable:$true] %s77
      %80 = dma.vmem_to_smem %s78, 16, [#allocation11], [#allocation5]
    $region33: #{stage3_gif_forward.1} parent=1 // pred_fallthru
      _
    // Predicated region
    $region34: #{stage3_gif_forward.1} parent=1 // pred_check
      _
    $region35: #{stage3_gif_forward.1} parent=1 // pred_check_branch
      %82 = sbr.rel (0) target = $region37
    $region36: #{stage3_gif_forward.1} parent=1 // pred_region
      %83 = dma.done [#allocation4], 6144
    $region37: #{stage3_gif_forward.1} parent=1 // pred_fallthru
      _
    // Predicated region
    $region38: #{stage3_gif_forward.1} parent=1 // pred_check
      _
    $region39: #{stage3_gif_forward.1} parent=1 // pred_check_branch
      %85 = sbr.rel (0) target = $region41
    $region40: #{stage3_gif_forward.1} parent=1 // pred_region
      %86 = dma.done [#allocation7], 9216
    $region41: #{stage3_gif_forward.1} parent=1 // pred_fallthru
      _
    // Predicated region
    $region42: #{stage3_gif_forward.1} parent=1 // pred_check
      _
    $region43: #{stage3_gif_forward.1} parent=1 // pred_check_branch
      %88 = sbr.rel (0) target = $region45
    $region44: #{stage3_gif_forward.1} parent=1 // pred_region
      %89 = dma.done [#allocation7], 3072
    $region45: #{stage3_gif_forward.1} parent=1 // pred_fallthru
      _
    // Predicated region
    $region46: #{stage3_gif_forward.1} parent=1 // pred_check
      _
    $region47: #{stage3_gif_forward.1} parent=1 // pred_check_branch
      %91 = sbr.rel (0) target = $region49
    $region48: #{stage3_gif_forward.1} parent=1 // pred_region
      %92 = dma.done [#allocation10], 3072
    $region49: #{stage3_gif_forward.1} parent=1 // pred_fallthru
      _
    // Predicated region
    $region50: #{stage3_gif_forward.1} parent=1 // pred_check
      _
    $region51: #{stage3_gif_forward.1} parent=1 // pred_check_branch
      %94 = sbr.rel (0) target = $region53
    $region52: #{stage3_gif_forward.1} parent=1 // pred_region
      %95 = dma.done [#allocation5], 16
    $region53: #{stage3_gif_forward.1} parent=1 // pred_fallthru
      _
    %96 = sfence
    %v98 = vld [vmem:[%s0] sm:$0xf]
    %v99 = vld [vmem:[%s0 + $0x4] sm:$0xf]
    %v100 = vld [vmem:[%s0 + $0x8] sm:$0xf]
    %v101 = vld [vmem:[%s0 + $0xc] sm:$0xf]
    %v102 = vld [vmem:[%s0 + $0x10] sm:$0xf]
    %v103 = vld [vmem:[%s0 + $0x14] sm:$0xf]
    %v104 = vld [vmem:[%s0 + $0x18] sm:$0xf]
    %v105 = vld [vmem:[%s0 + $0x1c] sm:$0xf]
    %v106 = vld [vmem:[%s0 + $0x20] sm:$0xf]
    %v107 = vld [vmem:[%s0 + $0x24] sm:$0xf]
    %v108 = vld [vmem:[%s0 + $0x28] sm:$0xf]
    %v109 = vld [vmem:[%s0 + $0x2c] sm:$0xf]
    %v110 = vld [vmem:[%s0 + $0x30] sm:$0xf]
    %v111 = vld [vmem:[%s0 + $0x34] sm:$0xf]
    %v112 = vld [vmem:[%s0 + $0x38] sm:$0xf]
    %v113 = vld [vmem:[%s0 + $0x3c] sm:$0xf]
    %v114 = vld [vmem:[#allocation3] sm:$0xff]
    %v115 = vld [vmem:[#allocation3 + $0x8] sm:$0xff]
    %v116 = vld [vmem:[#allocation3 + $0x10] sm:$0xff]
    %v117 = vld [vmem:[#allocation3 + $0x18] sm:$0xff]
    %v118 = vld [vmem:[#allocation3 + $0x20] sm:$0xff]
    %v119 = vld [vmem:[#allocation3 + $0x28] sm:$0xff]
    %v120 = vld [vmem:[#allocation3 + $0x30] sm:$0xff]
    %v121 = vld [vmem:[#allocation3 + $0x38] sm:$0xff]
    %v122 = vld [vmem:[#allocation3 + $0x40] sm:$0xff]
    %v123 = vld [vmem:[#allocation3 + $0x48] sm:$0xff]
    %v124 = vld [vmem:[#allocation3 + $0x50] sm:$0xff]
    %v125 = vld [vmem:[#allocation3 + $0x58] sm:$0xff]
    %v126 = vld [vmem:[#allocation3 + $0x60] sm:$0xff]
    %v127 = vld [vmem:[#allocation3 + $0x68] sm:$0xff]
    %v128 = vld [vmem:[#allocation3 + $0x70] sm:$0xff]
    %v129 = vld [vmem:[#allocation3 + $0x78] sm:$0xff]
    %v130 = vld [vmem:[#allocation3 + $0x80] sm:$0xff]
    %v131 = vld [vmem:[#allocation3 + $0x88] sm:$0xff]
    %v132 = vld [vmem:[#allocation3 + $0x90] sm:$0xff]
    %v133 = vld [vmem:[#allocation3 + $0x98] sm:$0xff]
    %v134 = vld [vmem:[#allocation3 + $0xa0] sm:$0xff]
    %v135 = vld [vmem:[#allocation3 + $0xa8] sm:$0xff]
    %v136 = vld [vmem:[#allocation3 + $0xb0] sm:$0xff]
    %v137 = vld [vmem:[#allocation3 + $0xb8] sm:$0xff]
    %v138 = vld [vmem:[#allocation3 + $0xc0] sm:$0xff]
    %v139 = vld [vmem:[#allocation3 + $0xc8] sm:$0xff]
    %v140 = vld [vmem:[#allocation3 + $0xd0] sm:$0xff]
    %v141 = vld [vmem:[#allocation3 + $0xd8] sm:$0xff]
    %v142 = vld [vmem:[#allocation3 + $0xe0] sm:$0xff]
    %v143 = vld [vmem:[#allocation3 + $0xe8] sm:$0xff]
    %v144 = vld [vmem:[#allocation3 + $0xf0] sm:$0xff]
    %v145 = vld [vmem:[#allocation3 + $0xf8] sm:$0xff]
    %v146 = vld [vmem:[#allocation3 + $0x100] sm:$0xff]
    %v147 = vld [vmem:[#allocation3 + $0x108] sm:$0xff]
    %v148 = vld [vmem:[#allocation3 + $0x110] sm:$0xff]
    %v149 = vld [vmem:[#allocation3 + $0x118] sm:$0xff]
    %v150 = vld [vmem:[#allocation3 + $0x120] sm:$0xff]
    %v151 = vld [vmem:[#allocation3 + $0x128] sm:$0xff]
    %v152 = vld [vmem:[#allocation3 + $0x130] sm:$0xff]
    %v153 = vld [vmem:[#allocation3 + $0x138] sm:$0xff]
    %v154 = vld [vmem:[#allocation3 + $0x140] sm:$0xff]
    %v155 = vld [vmem:[#allocation3 + $0x148] sm:$0xff]
    %v156 = vld [vmem:[#allocation3 + $0x150] sm:$0xff]
    %v157 = vld [vmem:[#allocation3 + $0x158] sm:$0xff]
    %v158 = vld [vmem:[#allocation3 + $0x160] sm:$0xff]
    %v159 = vld [vmem:[#allocation3 + $0x168] sm:$0xff]
    %v160 = vld [vmem:[#allocation3 + $0x170] sm:$0xff]
    %v161 = vld [vmem:[#allocation3 + $0x178] sm:$0xff]
    %v162 = vpack.c.bf16 %v117, %v114
    %v163 = vpack.c.bf16 %v118, %v115
    %v164 = vpack.c.bf16 %v119, %v116
    %v165 = vpack.c.bf16 %v123, %v120
    %v166 = vpack.c.bf16 %v124, %v121
    %v167 = vpack.c.bf16 %v125, %v122
    %v168 = vpack.c.bf16 %v129, %v126
    %v169 = vpack.c.bf16 %v130, %v127
    %v170 = vpack.c.bf16 %v131, %v128
    %v171 = vpack.c.bf16 %v135, %v132
    %v172 = vpack.c.bf16 %v136, %v133
    %v173 = vpack.c.bf16 %v137, %v134
    %v174 = vpack.c.bf16 %v141, %v138
    %v175 = vpack.c.bf16 %v142, %v139
    %v176 = vpack.c.bf16 %v143, %v140
    %v177 = vpack.c.bf16 %v147, %v144
    %v178 = vpack.c.bf16 %v148, %v145
    %v179 = vpack.c.bf16 %v149, %v146
    %v180 = vpack.c.bf16 %v153, %v150
    %v181 = vpack.c.bf16 %v154, %v151
    %v182 = vpack.c.bf16 %v155, %v152
    %v183 = vpack.c.bf16 %v159, %v156
    %v184 = vpack.c.bf16 %v160, %v157
    %v185 = vpack.c.bf16 %v161, %v158
    %v186 = vld [vmem:[%s2] sm:$0xff]
    %v187 = vld [vmem:[%s2 + $0x8] sm:$0xf]
    %v188 = vld [vmem:[%s2 + $0xc] sm:$0xff]
    %v189 = vld [vmem:[%s2 + $0x14] sm:$0xf]
    %v190 = vld [vmem:[%s2 + $0x18] sm:$0xff]
    %v191 = vld [vmem:[%s2 + $0x20] sm:$0xf]
    %v192 = vld [vmem:[%s2 + $0x24] sm:$0xff]
    %v193 = vld [vmem:[%s2 + $0x2c] sm:$0xf]
    %v194 = vld [vmem:[%s2 + $0x30] sm:$0xff]
    %v195 = vld [vmem:[%s2 + $0x38] sm:$0xf]
    %v196 = vld [vmem:[%s2 + $0x3c] sm:$0xff]
    %v197 = vld [vmem:[%s2 + $0x44] sm:$0xf]
    %v198 = vld [vmem:[%s2 + $0x48] sm:$0xff]
    %v199 = vld [vmem:[%s2 + $0x50] sm:$0xf]
    %v200 = vld [vmem:[%s2 + $0x54] sm:$0xff]
    %v201 = vld [vmem:[%s2 + $0x5c] sm:$0xf]
    %v202 = vld [vmem:[%s2 + $0x60] sm:$0xff]
    %v203 = vld [vmem:[%s2 + $0x68] sm:$0xf]
    %v204 = vld [vmem:[%s2 + $0x6c] sm:$0xff]
    %v205 = vld [vmem:[%s2 + $0x74] sm:$0xf]
    %v206 = vld [vmem:[%s2 + $0x78] sm:$0xff]
    %v207 = vld [vmem:[%s2 + $0x80] sm:$0xf]
    %v208 = vld [vmem:[%s2 + $0x84] sm:$0xff]
    %v209 = vld [vmem:[%s2 + $0x8c] sm:$0xf]
    %v210 = vld [vmem:[%s2 + $0x90] sm:$0xff]
    %v211 = vld [vmem:[%s2 + $0x98] sm:$0xf]
    %v212 = vld [vmem:[%s2 + $0x9c] sm:$0xff]
    %v213 = vld [vmem:[%s2 + $0xa4] sm:$0xf]
    %v214 = vld [vmem:[%s2 + $0xa8] sm:$0xff]
    %v215 = vld [vmem:[%s2 + $0xb0] sm:$0xf]
    %v216 = vld [vmem:[%s2 + $0xb4] sm:$0xff]
    %v217 = vld [vmem:[%s2 + $0xbc] sm:$0xf]
    %v218 = vld [vmem:[#allocation6] sm:$0xff]
    %v219 = vld [vmem:[#allocation6 + $0x8] sm:$0xf]
    %v220 = vld [vmem:[#allocation6 + $0xc] sm:$0xff]
    %v221 = vld [vmem:[#allocation6 + $0x14] sm:$0xf]
    %v222 = vld [vmem:[#allocation6 + $0x18] sm:$0xff]
    %v223 = vld [vmem:[#allocation6 + $0x20] sm:$0xf]
    %v224 = vld [vmem:[#allocation6 + $0x24] sm:$0xff]
    %v225 = vld [vmem:[#allocation6 + $0x2c] sm:$0xf]
    %v226 = vld [vmem:[#allocation6 + $0x30] sm:$0xff]
    %v227 = vld [vmem:[#allocation6 + $0x38] sm:$0xf]
    %v228 = vld [vmem:[#allocation6 + $0x3c] sm:$0xff]
    %v229 = vld [vmem:[#allocation6 + $0x44] sm:$0xf]
    %v230 = vld [vmem:[#allocation6 + $0x48] sm:$0xff]
    %v231 = vld [vmem:[#allocation6 + $0x50] sm:$0xf]
    %v232 = vld [vmem:[#allocation6 + $0x54] sm:$0xff]
    %v233 = vld [vmem:[#allocation6 + $0x5c] sm:$0xf]
    %v234 = vld [vmem:[#allocation6 + $0x60] sm:$0xff]
    %v235 = vld [vmem:[#allocation6 + $0x68] sm:$0xf]
    %v236 = vld [vmem:[#allocation6 + $0x6c] sm:$0xff]
    %v237 = vld [vmem:[#allocation6 + $0x74] sm:$0xf]
    %v238 = vld [vmem:[#allocation6 + $0x78] sm:$0xff]
    %v239 = vld [vmem:[#allocation6 + $0x80] sm:$0xf]
    %v240 = vld [vmem:[#allocation6 + $0x84] sm:$0xff]
    %v241 = vld [vmem:[#allocation6 + $0x8c] sm:$0xf]
    %v242 = vld [vmem:[#allocation6 + $0x90] sm:$0xff]
    %v243 = vld [vmem:[#allocation6 + $0x98] sm:$0xf]
    %v244 = vld [vmem:[#allocation6 + $0x9c] sm:$0xff]
    %v245 = vld [vmem:[#allocation6 + $0xa4] sm:$0xf]
    %v246 = vld [vmem:[#allocation6 + $0xa8] sm:$0xff]
    %v247 = vld [vmem:[#allocation6 + $0xb0] sm:$0xf]
    %v248 = vld [vmem:[#allocation6 + $0xb4] sm:$0xff]
    %v249 = vld [vmem:[#allocation6 + $0xbc] sm:$0xf]
    %v250 = vld [vmem:[#allocation6 + $0xc0] sm:$0xff]
    %v251 = vld [vmem:[#allocation6 + $0xc8] sm:$0xf]
    %v252 = vld [vmem:[#allocation6 + $0xcc] sm:$0xff]
    %v253 = vld [vmem:[#allocation6 + $0xd4] sm:$0xf]
    %v254 = vld [vmem:[#allocation6 + $0xd8] sm:$0xff]
    %v255 = vld [vmem:[#allocation6 + $0xe0] sm:$0xf]
    %v256 = vld [vmem:[#allocation6 + $0xe4] sm:$0xff]
    %v257 = vld [vmem:[#allocation6 + $0xec] sm:$0xf]
    %v258 = vld [vmem:[#allocation6 + $0xf0] sm:$0xff]
    %v259 = vld [vmem:[#allocation6 + $0xf8] sm:$0xf]
    %v260 = vld [vmem:[#allocation6 + $0xfc] sm:$0xff]
    %v261 = vld [vmem:[#allocation6 + $0x104] sm:$0xf]
    %v262 = vld [vmem:[#allocation6 + $0x108] sm:$0xff]
    %v263 = vld [vmem:[#allocation6 + $0x110] sm:$0xf]
    %v264 = vld [vmem:[#allocation6 + $0x114] sm:$0xff]
    %v265 = vld [vmem:[#allocation6 + $0x11c] sm:$0xf]
    %v266 = vld [vmem:[#allocation6 + $0x120] sm:$0xff]
    %v267 = vld [vmem:[#allocation6 + $0x128] sm:$0xf]
    %v268 = vld [vmem:[#allocation6 + $0x12c] sm:$0xff]
    %v269 = vld [vmem:[#allocation6 + $0x134] sm:$0xf]
    %v270 = vld [vmem:[#allocation6 + $0x138] sm:$0xff]
    %v271 = vld [vmem:[#allocation6 + $0x140] sm:$0xf]
    %v272 = vld [vmem:[#allocation6 + $0x144] sm:$0xff]
    %v273 = vld [vmem:[#allocation6 + $0x14c] sm:$0xf]
    %v274 = vld [vmem:[#allocation6 + $0x150] sm:$0xff]
    %v275 = vld [vmem:[#allocation6 + $0x158] sm:$0xf]
    %v276 = vld [vmem:[#allocation6 + $0x15c] sm:$0xff]
    %v277 = vld [vmem:[#allocation6 + $0x164] sm:$0xf]
    %v278 = vld [vmem:[#allocation6 + $0x168] sm:$0xff]
    %v279 = vld [vmem:[#allocation6 + $0x170] sm:$0xf]
    %v280 = vld [vmem:[#allocation6 + $0x174] sm:$0xff]
    %v281 = vld [vmem:[#allocation6 + $0x17c] sm:$0xf]
    %v282 = vld [vmem:[#allocation6 + $0x180] sm:$0xff]
    %v283 = vld [vmem:[#allocation6 + $0x188] sm:$0xf]
    %v284 = vld [vmem:[#allocation6 + $0x18c] sm:$0xff]
    %v285 = vld [vmem:[#allocation6 + $0x194] sm:$0xf]
    %v286 = vld [vmem:[#allocation6 + $0x198] sm:$0xff]
    %v287 = vld [vmem:[#allocation6 + $0x1a0] sm:$0xf]
    %v288 = vld [vmem:[#allocation6 + $0x1a4] sm:$0xff]
    %v289 = vld [vmem:[#allocation6 + $0x1ac] sm:$0xf]
    %v290 = vld [vmem:[#allocation6 + $0x1b0] sm:$0xff]
    %v291 = vld [vmem:[#allocation6 + $0x1b8] sm:$0xf]
    %v292 = vld [vmem:[#allocation6 + $0x1bc] sm:$0xff]
    %v293 = vld [vmem:[#allocation6 + $0x1c4] sm:$0xf]
    %v294 = vld [vmem:[#allocation6 + $0x1c8] sm:$0xff]
    %v295 = vld [vmem:[#allocation6 + $0x1d0] sm:$0xf]
    %v296 = vld [vmem:[#allocation6 + $0x1d4] sm:$0xff]
    %v297 = vld [vmem:[#allocation6 + $0x1dc] sm:$0xf]
    %v298 = vld [vmem:[#allocation6 + $0x1e0] sm:$0xff]
    %v299 = vld [vmem:[#allocation6 + $0x1e8] sm:$0xf]
    %v300 = vld [vmem:[#allocation6 + $0x1ec] sm:$0xff]
    %v301 = vld [vmem:[#allocation6 + $0x1f4] sm:$0xf]
    %v302 = vld [vmem:[#allocation6 + $0x1f8] sm:$0xff]
    %v303 = vld [vmem:[#allocation6 + $0x200] sm:$0xf]
    %v304 = vld [vmem:[#allocation6 + $0x204] sm:$0xff]
    %v305 = vld [vmem:[#allocation6 + $0x20c] sm:$0xf]
    %v306 = vld [vmem:[#allocation6 + $0x210] sm:$0xff]
    %v307 = vld [vmem:[#allocation6 + $0x218] sm:$0xf]
    %v308 = vld [vmem:[#allocation6 + $0x21c] sm:$0xff]
    %v309 = vld [vmem:[#allocation6 + $0x224] sm:$0xf]
    %v310 = vld [vmem:[#allocation6 + $0x228] sm:$0xff]
    %v311 = vld [vmem:[#allocation6 + $0x230] sm:$0xf]
    %v312 = vld [vmem:[#allocation6 + $0x234] sm:$0xff]
    %v313 = vld [vmem:[#allocation6 + $0x23c] sm:$0xf]
    %v410 = vunpack.c.l.b16 %v218
    %v411 = vunpack.c.h.b16 %v218
    %v412 = vunpack.c.l.b16 %v219
    %v413 = vunpack.c.l.b16 %v220
    %v414 = vunpack.c.h.b16 %v220
    %v415 = vunpack.c.l.b16 %v221
    %v416 = vunpack.c.l.b16 %v222
    %v417 = vunpack.c.h.b16 %v222
    %v418 = vunpack.c.l.b16 %v223
    %v419 = vunpack.c.l.b16 %v224
    %v420 = vunpack.c.h.b16 %v224
    %v421 = vunpack.c.l.b16 %v225
    %v422 = vunpack.c.l.b16 %v226
    %v423 = vunpack.c.h.b16 %v226
    %v424 = vunpack.c.l.b16 %v227
    %v425 = vunpack.c.l.b16 %v228
    %v426 = vunpack.c.h.b16 %v228
    %v427 = vunpack.c.l.b16 %v229
    %v428 = vunpack.c.l.b16 %v230
    %v429 = vunpack.c.h.b16 %v230
    %v430 = vunpack.c.l.b16 %v231
    %v431 = vunpack.c.l.b16 %v232
    %v432 = vunpack.c.h.b16 %v232
    %v433 = vunpack.c.l.b16 %v233
    %v434 = vunpack.c.l.b16 %v234
    %v435 = vunpack.c.h.b16 %v234
    %v436 = vunpack.c.l.b16 %v235
    %v437 = vunpack.c.l.b16 %v236
    %v438 = vunpack.c.h.b16 %v236
    %v439 = vunpack.c.l.b16 %v237
    %v440 = vunpack.c.l.b16 %v238
    %v441 = vunpack.c.h.b16 %v238
    %v442 = vunpack.c.l.b16 %v239
    %v443 = vunpack.c.l.b16 %v240
    %v444 = vunpack.c.h.b16 %v240
    %v445 = vunpack.c.l.b16 %v241
    %v446 = vunpack.c.l.b16 %v242
    %v447 = vunpack.c.h.b16 %v242
    %v448 = vunpack.c.l.b16 %v243
    %v449 = vunpack.c.l.b16 %v244
    %v450 = vunpack.c.h.b16 %v244
    %v451 = vunpack.c.l.b16 %v245
    %v452 = vunpack.c.l.b16 %v246
    %v453 = vunpack.c.h.b16 %v246
    %v454 = vunpack.c.l.b16 %v247
    %v455 = vunpack.c.l.b16 %v248
    %v456 = vunpack.c.h.b16 %v248
    %v457 = vunpack.c.l.b16 %v249
    %v458 = vunpack.c.l.b16 %v250
    %v459 = vunpack.c.h.b16 %v250
    %v460 = vunpack.c.l.b16 %v251
    %v461 = vunpack.c.l.b16 %v252
    %v462 = vunpack.c.h.b16 %v252
    %v463 = vunpack.c.l.b16 %v253
    %v464 = vunpack.c.l.b16 %v254
    %v465 = vunpack.c.h.b16 %v254
    %v466 = vunpack.c.l.b16 %v255
    %v467 = vunpack.c.l.b16 %v256
    %v468 = vunpack.c.h.b16 %v256
    %v469 = vunpack.c.l.b16 %v257
    %v470 = vunpack.c.l.b16 %v258
    %v471 = vunpack.c.h.b16 %v258
    %v472 = vunpack.c.l.b16 %v259
    %v473 = vunpack.c.l.b16 %v260
    %v474 = vunpack.c.h.b16 %v260
    %v475 = vunpack.c.l.b16 %v261
    %v476 = vunpack.c.l.b16 %v262
    %v477 = vunpack.c.h.b16 %v262
    %v478 = vunpack.c.l.b16 %v263
    %v479 = vunpack.c.l.b16 %v264
    %v480 = vunpack.c.h.b16 %v264
    %v481 = vunpack.c.l.b16 %v265
    %v482 = vunpack.c.l.b16 %v266
    %v483 = vunpack.c.h.b16 %v266
    %v484 = vunpack.c.l.b16 %v267
    %v485 = vunpack.c.l.b16 %v268
    %v486 = vunpack.c.h.b16 %v268
    %v487 = vunpack.c.l.b16 %v269
    %v488 = vunpack.c.l.b16 %v270
    %v489 = vunpack.c.h.b16 %v270
    %v490 = vunpack.c.l.b16 %v271
    %v491 = vunpack.c.l.b16 %v272
    %v492 = vunpack.c.h.b16 %v272
    %v493 = vunpack.c.l.b16 %v273
    %v494 = vunpack.c.l.b16 %v274
    %v495 = vunpack.c.h.b16 %v274
    %v496 = vunpack.c.l.b16 %v275
    %v497 = vunpack.c.l.b16 %v276
    %v498 = vunpack.c.h.b16 %v276
    %v499 = vunpack.c.l.b16 %v277
    %v500 = vunpack.c.l.b16 %v278
    %v501 = vunpack.c.h.b16 %v278
    %v502 = vunpack.c.l.b16 %v279
    %v503 = vunpack.c.l.b16 %v280
    %v504 = vunpack.c.h.b16 %v280
    %v505 = vunpack.c.l.b16 %v281
    %v506 = vunpack.c.l.b16 %v282
    %v507 = vunpack.c.h.b16 %v282
    %v508 = vunpack.c.l.b16 %v283
    %v509 = vunpack.c.l.b16 %v284
    %v510 = vunpack.c.h.b16 %v284
    %v511 = vunpack.c.l.b16 %v285
    %v512 = vunpack.c.l.b16 %v286
    %v513 = vunpack.c.h.b16 %v286
    %v514 = vunpack.c.l.b16 %v287
    %v515 = vunpack.c.l.b16 %v288
    %v516 = vunpack.c.h.b16 %v288
    %v517 = vunpack.c.l.b16 %v289
    %v518 = vunpack.c.l.b16 %v290
    %v519 = vunpack.c.h.b16 %v290
    %v520 = vunpack.c.l.b16 %v291
    %v521 = vunpack.c.l.b16 %v292
    %v522 = vunpack.c.h.b16 %v292
    %v523 = vunpack.c.l.b16 %v293
    %v524 = vunpack.c.l.b16 %v294
    %v525 = vunpack.c.h.b16 %v294
    %v526 = vunpack.c.l.b16 %v295
    %v527 = vunpack.c.l.b16 %v296
    %v528 = vunpack.c.h.b16 %v296
    %v529 = vunpack.c.l.b16 %v297
    %v530 = vunpack.c.l.b16 %v298
    %v531 = vunpack.c.h.b16 %v298
    %v532 = vunpack.c.l.b16 %v299
    %v533 = vunpack.c.l.b16 %v300
    %v534 = vunpack.c.h.b16 %v300
    %v535 = vunpack.c.l.b16 %v301
    %v536 = vunpack.c.l.b16 %v302
    %v537 = vunpack.c.h.b16 %v302
    %v538 = vunpack.c.l.b16 %v303
    %v539 = vunpack.c.l.b16 %v304
    %v540 = vunpack.c.h.b16 %v304
    %v541 = vunpack.c.l.b16 %v305
    %v542 = vunpack.c.l.b16 %v306
    %v543 = vunpack.c.h.b16 %v306
    %v544 = vunpack.c.l.b16 %v307
    %v545 = vunpack.c.l.b16 %v308
    %v546 = vunpack.c.h.b16 %v308
    %v547 = vunpack.c.l.b16 %v309
    %v548 = vunpack.c.l.b16 %v310
    %v549 = vunpack.c.h.b16 %v310
    %v550 = vunpack.c.l.b16 %v311
    %v551 = vunpack.c.l.b16 %v312
    %v552 = vunpack.c.h.b16 %v312
    %v553 = vunpack.c.l.b16 %v313
    %v554 = vpack.c.b16 %v413, %v410
    %v555 = vpack.c.b16 %v414, %v411
    %v556 = vpack.c.b16 %v415, %v412
    %v557 = vpack.c.b16 %v419, %v416
    %v558 = vpack.c.b16 %v420, %v417
    %v559 = vpack.c.b16 %v421, %v418
    %v560 = vpack.c.b16 %v425, %v422
    %v561 = vpack.c.b16 %v426, %v423
    %v562 = vpack.c.b16 %v427, %v424
    %v563 = vpack.c.b16 %v431, %v428
    %v564 = vpack.c.b16 %v432, %v429
    %v565 = vpack.c.b16 %v433, %v430
    %v566 = vpack.c.b16 %v437, %v434
    %v567 = vpack.c.b16 %v438, %v435
    %v568 = vpack.c.b16 %v439, %v436
    %v569 = vpack.c.b16 %v443, %v440
    %v570 = vpack.c.b16 %v444, %v441
    %v571 = vpack.c.b16 %v445, %v442
    %v572 = vpack.c.b16 %v449, %v446
    %v573 = vpack.c.b16 %v450, %v447
    %v574 = vpack.c.b16 %v451, %v448
    %v575 = vpack.c.b16 %v455, %v452
    %v576 = vpack.c.b16 %v456, %v453
    %v577 = vpack.c.b16 %v457, %v454
    %v578 = vpack.c.b16 %v461, %v458
    %v579 = vpack.c.b16 %v462, %v459
    %v580 = vpack.c.b16 %v463, %v460
    %v581 = vpack.c.b16 %v467, %v464
    %v582 = vpack.c.b16 %v468, %v465
    %v583 = vpack.c.b16 %v469, %v466
    %v584 = vpack.c.b16 %v473, %v470
    %v585 = vpack.c.b16 %v474, %v471
    %v586 = vpack.c.b16 %v475, %v472
    %v587 = vpack.c.b16 %v479, %v476
    %v588 = vpack.c.b16 %v480, %v477
    %v589 = vpack.c.b16 %v481, %v478
    %v590 = vpack.c.b16 %v485, %v482
    %v591 = vpack.c.b16 %v486, %v483
    %v592 = vpack.c.b16 %v487, %v484
    %v593 = vpack.c.b16 %v491, %v488
    %v594 = vpack.c.b16 %v492, %v489
    %v595 = vpack.c.b16 %v493, %v490
    %v596 = vpack.c.b16 %v497, %v494
    %v597 = vpack.c.b16 %v498, %v495
    %v598 = vpack.c.b16 %v499, %v496
    %v599 = vpack.c.b16 %v503, %v500
    %v600 = vpack.c.b16 %v504, %v501
    %v601 = vpack.c.b16 %v505, %v502
    %v602 = vpack.c.b16 %v509, %v506
    %v603 = vpack.c.b16 %v510, %v507
    %v604 = vpack.c.b16 %v511, %v508
    %v605 = vpack.c.b16 %v515, %v512
    %v606 = vpack.c.b16 %v516, %v513
    %v607 = vpack.c.b16 %v517, %v514
    %v608 = vpack.c.b16 %v521, %v518
    %v609 = vpack.c.b16 %v522, %v519
    %v610 = vpack.c.b16 %v523, %v520
    %v611 = vpack.c.b16 %v527, %v524
    %v612 = vpack.c.b16 %v528, %v525
    %v613 = vpack.c.b16 %v529, %v526
    %v614 = vpack.c.b16 %v533, %v530
    %v615 = vpack.c.b16 %v534, %v531
    %v616 = vpack.c.b16 %v535, %v532
    %v617 = vpack.c.b16 %v539, %v536
    %v618 = vpack.c.b16 %v540, %v537
    %v619 = vpack.c.b16 %v541, %v538
    %v620 = vpack.c.b16 %v545, %v542
    %v621 = vpack.c.b16 %v546, %v543
    %v622 = vpack.c.b16 %v547, %v544
    %v623 = vpack.c.b16 %v551, %v548
    %v624 = vpack.c.b16 %v552, %v549
    %v625 = vpack.c.b16 %v553, %v550
    %698 = vmatprep.subr.bf16.mxu0 %v555
    %699 = vmatpush1.bf16.msra.mxu0 %v554
    %700 = vmatprep.subr.bf16.mxu0 %v558
    %701 = vmatpush1.bf16.msra.mxu0 %v557
    %702 = vmatprep.subr.bf16.mxu0 %v561
    %703 = vmatpush1.bf16.msra.mxu0 %v560
    %704 = vmatprep.subr.bf16.mxu0 %v564
    %705 = vmatpush1.bf16.msra.mxu0 %v563
    %706 = vmatprep.subr.bf16.mxu0 %v567
    %707 = vmatpush1.bf16.msra.mxu0 %v566
    %708 = vmatprep.subr.bf16.mxu0 %v570
    %709 = vmatpush1.bf16.msra.mxu0 %v569
    %710 = vmatprep.subr.bf16.mxu0 %v573
    %711 = vmatpush1.bf16.msra.mxu0 %v572
    %712 = vmatprep.subr.bf16.mxu0 %v576
    %713 = vmatpush1.bf16.msra.mxu0 %v575
    %714 = vmatprep.subr.bf16.mxu0 %v579
    %715 = vmatpush1.bf16.msra.mxu0 %v578
    %716 = vmatprep.subr.bf16.mxu0 %v582
    %717 = vmatpush1.bf16.msra.mxu0 %v581
    %718 = vmatprep.subr.bf16.mxu0 %v585
    %719 = vmatpush1.bf16.msra.mxu0 %v584
    %720 = vmatprep.subr.bf16.mxu0 %v588
    %721 = vmatpush1.bf16.msra.mxu0 %v587
    %722 = vmatprep.subr.bf16.mxu0 %v591
    %723 = vmatpush1.bf16.msra.mxu0 %v590
    %724 = vmatprep.subr.bf16.mxu0 %v594
    %725 = vmatpush1.bf16.msra.mxu0 %v593
    %726 = vmatprep.subr.bf16.mxu0 %v597
    %727 = vmatpush1.bf16.msra.mxu0 %v596
    %728 = vmatprep.subr.bf16.mxu0 %v600
    %729 = vmatpush1.bf16.msra.mxu0 %v599
    %730 = vmatprep.mubr.bf16.mxu0 %v163
    %731 = vmatmul.mubr.bf16.gmra.mrb[0].mxu0 %v162
    %v732 = vpop.f32.mrb[0].mxu0
    %v733 = vadd.f32 0.0, %v732
    %v734 = vpop.f32.mrb[0].mxu0
    %v735 = vadd.f32 0.0, %v734
    %v736 = vpop.f32.mrb[0].mxu0
    %v737 = vadd.f32 0.0, %v736
    %v738 = vpop.f32.mrb[0].mxu0
    %v739 = vadd.f32 0.0, %v738
    %740 = vmatprep.mubr.bf16.mxu0 %v166
    %741 = vmatmul.mubr.bf16.gmra.mrb[0].mxu0 %v165
    %v742 = vpop.f32.mrb[0].mxu0
    %v743 = vadd.f32 0.0, %v742
    %v744 = vpop.f32.mrb[0].mxu0
    %v745 = vadd.f32 0.0, %v744
    %v746 = vpop.f32.mrb[0].mxu0
    %v747 = vadd.f32 0.0, %v746
    %v748 = vpop.f32.mrb[0].mxu0
    %v749 = vadd.f32 0.0, %v748
    %750 = vmatprep.mubr.bf16.mxu0 %v169
    %751 = vmatmul.mubr.bf16.gmra.mrb[0].mxu0 %v168
    %v752 = vpop.f32.mrb[0].mxu0
    %v753 = vadd.f32 0.0, %v752
    %v754 = vpop.f32.mrb[0].mxu0
    %v755 = vadd.f32 0.0, %v754
    %v756 = vpop.f32.mrb[0].mxu0
    %v757 = vadd.f32 0.0, %v756
    %v758 = vpop.f32.mrb[0].mxu0
    %v759 = vadd.f32 0.0, %v758
    %760 = vmatprep.mubr.bf16.mxu0 %v172
    %761 = vmatmul.mubr.bf16.gmra.mrb[0].mxu0 %v171
    %v762 = vpop.f32.mrb[0].mxu0
    %v763 = vadd.f32 0.0, %v762
    %v764 = vpop.f32.mrb[0].mxu0
    %v765 = vadd.f32 0.0, %v764
    %v766 = vpop.f32.mrb[0].mxu0
    %v767 = vadd.f32 0.0, %v766
    %v768 = vpop.f32.mrb[0].mxu0
    %v769 = vadd.f32 0.0, %v768
    %770 = vmatprep.mubr.bf16.mxu0 %v175
    %771 = vmatmul.mubr.bf16.gmra.mrb[0].mxu0 %v174
    %v772 = vpop.f32.mrb[0].mxu0
    %v773 = vadd.f32 0.0, %v772
    %v774 = vpop.f32.mrb[0].mxu0
    %v775 = vadd.f32 0.0, %v774
    %v776 = vpop.f32.mrb[0].mxu0
    %v777 = vadd.f32 0.0, %v776
    %v778 = vpop.f32.mrb[0].mxu0
    %v779 = vadd.f32 0.0, %v778
    %780 = vmatprep.mubr.bf16.mxu0 %v178
    %781 = vmatmul.mubr.bf16.gmra.mrb[0].mxu0 %v177
    %v782 = vpop.f32.mrb[0].mxu0
    %v783 = vadd.f32 0.0, %v782
    %v784 = vpop.f32.mrb[0].mxu0
    %v785 = vadd.f32 0.0, %v784
    %v786 = vpop.f32.mrb[0].mxu0
    %v787 = vadd.f32 0.0, %v786
    %v788 = vpop.f32.mrb[0].mxu0
    %v789 = vadd.f32 0.0, %v788
    %790 = vmatprep.mubr.bf16.mxu0 %v181
    %791 = vmatmul.mubr.bf16.gmra.mrb[0].mxu0 %v180
    %v792 = vpop.f32.mrb[0].mxu0
    %v793 = vadd.f32 0.0, %v792
    %v794 = vpop.f32.mrb[0].mxu0
    %v795 = vadd.f32 0.0, %v794
    %v796 = vpop.f32.mrb[0].mxu0
    %v797 = vadd.f32 0.0, %v796
    %v798 = vpop.f32.mrb[0].mxu0
    %v799 = vadd.f32 0.0, %v798
    %800 = vmatprep.mubr.bf16.mxu0 %v184
    %801 = vmatmul.mubr.bf16.gmra.mrb[0].mxu0 %v183
    %v802 = vpop.f32.mrb[0].mxu0
    %v803 = vadd.f32 0.0, %v802
    %v804 = vpop.f32.mrb[0].mxu0
    %v805 = vadd.f32 0.0, %v804
    %v806 = vpop.f32.mrb[0].mxu0
    %v807 = vadd.f32 0.0, %v806
    %v808 = vpop.f32.mrb[0].mxu0
    %v809 = vadd.f32 0.0, %v808
    %810 = vdwg.mxu0
    %811 = vmatprep.subr.bf16.mxu0 %v603
    %812 = vmatpush1.bf16.msra.mxu0 %v602
    %813 = vmatprep.subr.bf16.mxu0 %v606
    %814 = vmatpush1.bf16.msra.mxu0 %v605
    %815 = vmatprep.subr.bf16.mxu0 %v609
    %816 = vmatpush1.bf16.msra.mxu0 %v608
    %817 = vmatprep.subr.bf16.mxu0 %v612
    %818 = vmatpush1.bf16.msra.mxu0 %v611
    %819 = vmatprep.subr.bf16.mxu0 %v615
    %820 = vmatpush1.bf16.msra.mxu0 %v614
    %821 = vmatprep.subr.bf16.mxu0 %v618
    %822 = vmatpush1.bf16.msra.mxu0 %v617
    %823 = vmatprep.subr.bf16.mxu0 %v621
    %824 = vmatpush1.bf16.msra.mxu0 %v620
    %825 = vmatprep.subr.bf16.mxu0 %v624
    %826 = vmatpush1.bf16.msra.mxu0 %v623
    %827 = vmatprep.subr.bf16.mxu0 0
    %828 = vmatpush1.bf16.msra.mxu0 0
    %829 = vmatprep.subr.bf16.mxu0 0
    %830 = vmatpush1.bf16.msra.mxu0 0
    %831 = vmatprep.subr.bf16.mxu0 0
    %832 = vmatpush1.bf16.msra.mxu0 0
    %833 = vmatprep.subr.bf16.mxu0 0
    %834 = vmatpush1.bf16.msra.mxu0 0
    %835 = vmatprep.subr.bf16.mxu0 0
    %836 = vmatpush1.bf16.msra.mxu0 0
    %837 = vmatprep.subr.bf16.mxu0 0
    %838 = vmatpush1.bf16.msra.mxu0 0
    %839 = vmatprep.subr.bf16.mxu0 0
    %840 = vmatpush1.bf16.msra.mxu0 0
    %841 = vmatprep.subr.bf16.mxu0 0
    %842 = vmatpush1.bf16.msra.mxu0 0
    %843 = vmatprep.mubr.bf16.mxu0 0
    %844 = vmatmul.mubr.bf16.gmra.mrb[0].mxu0 %v164
    %v845 = vpop.f32.mrb[0].mxu0
    %v846 = vadd.f32 %v733, %v845
    %v847 = vpop.f32.mrb[0].mxu0
    %v848 = vadd.f32 %v735, %v847
    %v849 = vpop.f32.mrb[0].mxu0
    %v850 = vadd.f32 %v737, %v849
    %v851 = vpop.f32.mrb[0].mxu0
    %v852 = vadd.f32 %v739, %v851
    %853 = vmatprep.mubr.bf16.mxu0 0
    %854 = vmatmul.mubr.bf16.gmra.mrb[0].mxu0 %v167
    %v855 = vpop.f32.mrb[0].mxu0
    %v856 = vadd.f32 %v743, %v855
    %v857 = vpop.f32.mrb[0].mxu0
    %v858 = vadd.f32 %v745, %v857
    %v859 = vpop.f32.mrb[0].mxu0
    %v860 = vadd.f32 %v747, %v859
    %v861 = vpop.f32.mrb[0].mxu0
    %v862 = vadd.f32 %v749, %v861
    %863 = vmatprep.mubr.bf16.mxu0 0
    %864 = vmatmul.mubr.bf16.gmra.mrb[0].mxu0 %v170
    %v865 = vpop.f32.mrb[0].mxu0
    %v866 = vadd.f32 %v753, %v865
    %v867 = vpop.f32.mrb[0].mxu0
    %v868 = vadd.f32 %v755, %v867
    %v869 = vpop.f32.mrb[0].mxu0
    %v870 = vadd.f32 %v757, %v869
    %v871 = vpop.f32.mrb[0].mxu0
    %v872 = vadd.f32 %v759, %v871
    %873 = vmatprep.mubr.bf16.mxu0 0
    %874 = vmatmul.mubr.bf16.gmra.mrb[0].mxu0 %v173
    %v875 = vpop.f32.mrb[0].mxu0
    %v876 = vadd.f32 %v763, %v875
    %v877 = vpop.f32.mrb[0].mxu0
    %v878 = vadd.f32 %v765, %v877
    %v879 = vpop.f32.mrb[0].mxu0
    %v880 = vadd.f32 %v767, %v879
    %v881 = vpop.f32.mrb[0].mxu0
    %v882 = vadd.f32 %v769, %v881
    %883 = vmatprep.mubr.bf16.mxu0 0
    %884 = vmatmul.mubr.bf16.gmra.mrb[0].mxu0 %v176
    %v885 = vpop.f32.mrb[0].mxu0
    %v886 = vadd.f32 %v773, %v885
    %v887 = vpop.f32.mrb[0].mxu0
    %v888 = vadd.f32 %v775, %v887
    %v889 = vpop.f32.mrb[0].mxu0
    %v890 = vadd.f32 %v777, %v889
    %v891 = vpop.f32.mrb[0].mxu0
    %v892 = vadd.f32 %v779, %v891
    %893 = vmatprep.mubr.bf16.mxu0 0
    %894 = vmatmul.mubr.bf16.gmra.mrb[0].mxu0 %v179
    %v895 = vpop.f32.mrb[0].mxu0
    %v896 = vadd.f32 %v783, %v895
    %v897 = vpop.f32.mrb[0].mxu0
    %v898 = vadd.f32 %v785, %v897
    %v899 = vpop.f32.mrb[0].mxu0
    %v900 = vadd.f32 %v787, %v899
    %v901 = vpop.f32.mrb[0].mxu0
    %v902 = vadd.f32 %v789, %v901
    %903 = vmatprep.mubr.bf16.mxu0 0
    %904 = vmatmul.mubr.bf16.gmra.mrb[0].mxu0 %v182
    %v905 = vpop.f32.mrb[0].mxu0
    %v906 = vadd.f32 %v793, %v905
    %v907 = vpop.f32.mrb[0].mxu0
    %v908 = vadd.f32 %v795, %v907
    %v909 = vpop.f32.mrb[0].mxu0
    %v910 = vadd.f32 %v797, %v909
    %v911 = vpop.f32.mrb[0].mxu0
    %v912 = vadd.f32 %v799, %v911
    %913 = vmatprep.mubr.bf16.mxu0 0
    %914 = vmatmul.mubr.bf16.gmra.mrb[0].mxu0 %v185
    %v915 = vpop.f32.mrb[0].mxu0
    %v916 = vadd.f32 %v803, %v915
    %v917 = vpop.f32.mrb[0].mxu0
    %v918 = vadd.f32 %v805, %v917
    %v919 = vpop.f32.mrb[0].mxu0
    %v920 = vadd.f32 %v807, %v919
    %v921 = vpop.f32.mrb[0].mxu0
    %v922 = vadd.f32 %v809, %v921
    %923 = vdwg.mxu0
    %924 = vmatprep.subr.bf16.mxu0 0
    %925 = vmatpush1.bf16.msra.mxu0 %v556
    %926 = vmatprep.subr.bf16.mxu0 0
    %927 = vmatpush1.bf16.msra.mxu0 %v559
    %928 = vmatprep.subr.bf16.mxu0 0
    %929 = vmatpush1.bf16.msra.mxu0 %v562
    %930 = vmatprep.subr.bf16.mxu0 0
    %931 = vmatpush1.bf16.msra.mxu0 %v565
    %932 = vmatprep.subr.bf16.mxu0 0
    %933 = vmatpush1.bf16.msra.mxu0 %v568
    %934 = vmatprep.subr.bf16.mxu0 0
    %935 = vmatpush1.bf16.msra.mxu0 %v571
    %936 = vmatprep.subr.bf16.mxu0 0
    %937 = vmatpush1.bf16.msra.mxu0 %v574
    %938 = vmatprep.subr.bf16.mxu0 0
    %939 = vmatpush1.bf16.msra.mxu0 %v577
    %940 = vmatprep.subr.bf16.mxu0 0
    %941 = vmatpush1.bf16.msra.mxu0 %v580
    %942 = vmatprep.subr.bf16.mxu0 0
    %943 = vmatpush1.bf16.msra.mxu0 %v583
    %944 = vmatprep.subr.bf16.mxu0 0
    %945 = vmatpush1.bf16.msra.mxu0 %v586
    %946 = vmatprep.subr.bf16.mxu0 0
    %947 = vmatpush1.bf16.msra.mxu0 %v589
    %948 = vmatprep.subr.bf16.mxu0 0
    %949 = vmatpush1.bf16.msra.mxu0 %v592
    %950 = vmatprep.subr.bf16.mxu0 0
    %951 = vmatpush1.bf16.msra.mxu0 %v595
    %952 = vmatprep.subr.bf16.mxu0 0
    %953 = vmatpush1.bf16.msra.mxu0 %v598
    %954 = vmatprep.subr.bf16.mxu0 0
    %955 = vmatpush1.bf16.msra.mxu0 %v601
    %956 = vmatprep.mubr.bf16.mxu0 %v163
    %957 = vmatmul.mubr.bf16.gmra.mrb[0].mxu0 %v162
    %v958 = vpop.f32.mrb[0].mxu0
    %v959 = vadd.f32 0.0, %v958
    %v960 = vpop.f32.mrb[0].mxu0
    %v961 = vpop.f32.mrb[0].mxu0
    %v962 = vadd.f32 0.0, %v961
    %v963 = vpop.f32.mrb[0].mxu0
    %964 = vmatprep.mubr.bf16.mxu0 %v166
    %965 = vmatmul.mubr.bf16.gmra.mrb[0].mxu0 %v165
    %v966 = vpop.f32.mrb[0].mxu0
    %v967 = vadd.f32 0.0, %v966
    %v968 = vpop.f32.mrb[0].mxu0
    %v969 = vpop.f32.mrb[0].mxu0
    %v970 = vadd.f32 0.0, %v969
    %v971 = vpop.f32.mrb[0].mxu0
    %972 = vmatprep.mubr.bf16.mxu0 %v169
    %973 = vmatmul.mubr.bf16.gmra.mrb[0].mxu0 %v168
    %v974 = vpop.f32.mrb[0].mxu0
    %v975 = vadd.f32 0.0, %v974
    %v976 = vpop.f32.mrb[0].mxu0
    %v977 = vpop.f32.mrb[0].mxu0
    %v978 = vadd.f32 0.0, %v977
    %v979 = vpop.f32.mrb[0].mxu0
    %980 = vmatprep.mubr.bf16.mxu0 %v172
    %981 = vmatmul.mubr.bf16.gmra.mrb[0].mxu0 %v171
    %v982 = vpop.f32.mrb[0].mxu0
    %v983 = vadd.f32 0.0, %v982
    %v984 = vpop.f32.mrb[0].mxu0
    %v985 = vpop.f32.mrb[0].mxu0
    %v986 = vadd.f32 0.0, %v985
    %v987 = vpop.f32.mrb[0].mxu0
    %988 = vmatprep.mubr.bf16.mxu0 %v175
    %989 = vmatmul.mubr.bf16.gmra.mrb[0].mxu0 %v174
    %v990 = vpop.f32.mrb[0].mxu0
    %v991 = vadd.f32 0.0, %v990
    %v992 = vpop.f32.mrb[0].mxu0
    %v993 = vpop.f32.mrb[0].mxu0
    %v994 = vadd.f32 0.0, %v993
    %v995 = vpop.f32.mrb[0].mxu0
    %996 = vmatprep.mubr.bf16.mxu0 %v178
    %997 = vmatmul.mubr.bf16.gmra.mrb[0].mxu0 %v177
    %v998 = vpop.f32.mrb[0].mxu0
    %v999 = vadd.f32 0.0, %v998
    %v1000 = vpop.f32.mrb[0].mxu0
    %v1001 = vpop.f32.mrb[0].mxu0
    %v1002 = vadd.f32 0.0, %v1001
    %v1003 = vpop.f32.mrb[0].mxu0
    %1004 = vmatprep.mubr.bf16.mxu0 %v181
    %1005 = vmatmul.mubr.bf16.gmra.mrb[0].mxu0 %v180
    %v1006 = vpop.f32.mrb[0].mxu0
    %v1007 = vadd.f32 0.0, %v1006
    %v1008 = vpop.f32.mrb[0].mxu0
    %v1009 = vpop.f32.mrb[0].mxu0
    %v1010 = vadd.f32 0.0, %v1009
    %v1011 = vpop.f32.mrb[0].mxu0
    %1012 = vmatprep.mubr.bf16.mxu0 %v184
    %1013 = vmatmul.mubr.bf16.gmra.mrb[0].mxu0 %v183
    %v1014 = vpop.f32.mrb[0].mxu0
    %v1015 = vadd.f32 0.0, %v1014
    %v1016 = vpop.f32.mrb[0].mxu0
    %v1017 = vpop.f32.mrb[0].mxu0
    %v1018 = vadd.f32 0.0, %v1017
    %v1019 = vpop.f32.mrb[0].mxu0
    %1020 = vdwg.mxu0
    %1021 = vmatprep.subr.bf16.mxu0 0
    %1022 = vmatpush1.bf16.msra.mxu0 %v604
    %1023 = vmatprep.subr.bf16.mxu0 0
    %1024 = vmatpush1.bf16.msra.mxu0 %v607
    %1025 = vmatprep.subr.bf16.mxu0 0
    %1026 = vmatpush1.bf16.msra.mxu0 %v610
    %1027 = vmatprep.subr.bf16.mxu0 0
    %1028 = vmatpush1.bf16.msra.mxu0 %v613
    %1029 = vmatprep.subr.bf16.mxu0 0
    %1030 = vmatpush1.bf16.msra.mxu0 %v616
    %1031 = vmatprep.subr.bf16.mxu0 0
    %1032 = vmatpush1.bf16.msra.mxu0 %v619
    %1033 = vmatprep.subr.bf16.mxu0 0
    %1034 = vmatpush1.bf16.msra.mxu0 %v622
    %1035 = vmatprep.subr.bf16.mxu0 0
    %1036 = vmatpush1.bf16.msra.mxu0 %v625
    %1037 = vmatprep.subr.bf16.mxu0 0
    %1038 = vmatpush1.bf16.msra.mxu0 0
    %1039 = vmatprep.subr.bf16.mxu0 0
    %1040 = vmatpush1.bf16.msra.mxu0 0
    %1041 = vmatprep.subr.bf16.mxu0 0
    %1042 = vmatpush1.bf16.msra.mxu0 0
    %1043 = vmatprep.subr.bf16.mxu0 0
    %1044 = vmatpush1.bf16.msra.mxu0 0
    %1045 = vmatprep.subr.bf16.mxu0 0
    %1046 = vmatpush1.bf16.msra.mxu0 0
    %1047 = vmatprep.subr.bf16.mxu0 0
    %1048 = vmatpush1.bf16.msra.mxu0 0
    %1049 = vmatprep.subr.bf16.mxu0 0
    %1050 = vmatpush1.bf16.msra.mxu0 0
    %1051 = vmatprep.subr.bf16.mxu0 0
    %1052 = vmatpush1.bf16.msra.mxu0 0
    %1053 = vmatprep.mubr.bf16.mxu0 0
    %1054 = vmatmul.mubr.bf16.gmra.mrb[0].mxu0 %v164
    %v1055 = vpop.f32.mrb[0].mxu0
    %v1056 = vadd.f32 %v959, %v1055
    %v1057 = vpop.f32.mrb[0].mxu0
    %v1058 = vpop.f32.mrb[0].mxu0
    %v1059 = vadd.f32 %v962, %v1058
    %v1060 = vpop.f32.mrb[0].mxu0
    %1061 = vmatprep.mubr.bf16.mxu0 0
    %1062 = vmatmul.mubr.bf16.gmra.mrb[0].mxu0 %v167
    %v1063 = vpop.f32.mrb[0].mxu0
    %v1064 = vadd.f32 %v967, %v1063
    %v1065 = vpop.f32.mrb[0].mxu0
    %v1066 = vpop.f32.mrb[0].mxu0
    %v1067 = vadd.f32 %v970, %v1066
    %v1068 = vpop.f32.mrb[0].mxu0
    %1069 = vmatprep.mubr.bf16.mxu0 0
    %1070 = vmatmul.mubr.bf16.gmra.mrb[0].mxu0 %v170
    %v1071 = vpop.f32.mrb[0].mxu0
    %v1072 = vadd.f32 %v975, %v1071
    %v1073 = vpop.f32.mrb[0].mxu0
    %v1074 = vpop.f32.mrb[0].mxu0
    %v1075 = vadd.f32 %v978, %v1074
    %v1076 = vpop.f32.mrb[0].mxu0
    %1077 = vmatprep.mubr.bf16.mxu0 0
    %1078 = vmatmul.mubr.bf16.gmra.mrb[0].mxu0 %v173
    %v1079 = vpop.f32.mrb[0].mxu0
    %v1080 = vadd.f32 %v983, %v1079
    %v1081 = vpop.f32.mrb[0].mxu0
    %v1082 = vpop.f32.mrb[0].mxu0
    %v1083 = vadd.f32 %v986, %v1082
    %v1084 = vpop.f32.mrb[0].mxu0
    %1085 = vmatprep.mubr.bf16.mxu0 0
    %1086 = vmatmul.mubr.bf16.gmra.mrb[0].mxu0 %v176
    %v1087 = vpop.f32.mrb[0].mxu0
    %v1088 = vadd.f32 %v991, %v1087
    %v1089 = vpop.f32.mrb[0].mxu0
    %v1090 = vpop.f32.mrb[0].mxu0
    %v1091 = vadd.f32 %v994, %v1090
    %v1092 = vpop.f32.mrb[0].mxu0
    %1093 = vmatprep.mubr.bf16.mxu0 0
    %1094 = vmatmul.mubr.bf16.gmra.mrb[0].mxu0 %v179
    %v1095 = vpop.f32.mrb[0].mxu0
    %v1096 = vadd.f32 %v999, %v1095
    %v1097 = vpop.f32.mrb[0].mxu0
    %v1098 = vpop.f32.mrb[0].mxu0
    %v1099 = vadd.f32 %v1002, %v1098
    %v1100 = vpop.f32.mrb[0].mxu0
    %1101 = vmatprep.mubr.bf16.mxu0 0
    %1102 = vmatmul.mubr.bf16.gmra.mrb[0].mxu0 %v182
    %v1103 = vpop.f32.mrb[0].mxu0
    %v1104 = vadd.f32 %v1007, %v1103
    %v1105 = vpop.f32.mrb[0].mxu0
    %v1106 = vpop.f32.mrb[0].mxu0
    %v1107 = vadd.f32 %v1010, %v1106
    %v1108 = vpop.f32.mrb[0].mxu0
    %1109 = vmatprep.mubr.bf16.mxu0 0
    %1110 = vmatmul.mubr.bf16.gmra.mrb[0].mxu0 %v185
    %v1111 = vpop.f32.mrb[0].mxu0
    %v1112 = vadd.f32 %v1015, %v1111
    %v1113 = vpop.f32.mrb[0].mxu0
    %v1114 = vpop.f32.mrb[0].mxu0
    %v1115 = vadd.f32 %v1018, %v1114
    %v1116 = vpop.f32.mrb[0].mxu0
    %1117 = vdwg.mxu0
    %v1134 = vunpack.c.l.b16 %v98
    %v1135 = vunpack.c.l.b16 %v99
    %v1136 = vunpack.c.l.b16 %v100
    %v1137 = vunpack.c.l.b16 %v101
    %v1138 = vunpack.c.l.b16 %v102
    %v1139 = vunpack.c.l.b16 %v103
    %v1140 = vunpack.c.l.b16 %v104
    %v1141 = vunpack.c.l.b16 %v105
    %v1142 = vunpack.c.l.b16 %v106
    %v1143 = vunpack.c.l.b16 %v107
    %v1144 = vunpack.c.l.b16 %v108
    %v1145 = vunpack.c.l.b16 %v109
    %v1146 = vunpack.c.l.b16 %v110
    %v1147 = vunpack.c.l.b16 %v111
    %v1148 = vunpack.c.l.b16 %v112
    %v1149 = vunpack.c.l.b16 %v113
    %v1150 = vpack.c.b16 %v1135, %v1134
    %v1151 = vpack.c.b16 %v1137, %v1136
    %v1152 = vpack.c.b16 %v1139, %v1138
    %v1153 = vpack.c.b16 %v1141, %v1140
    %v1154 = vpack.c.b16 %v1143, %v1142
    %v1155 = vpack.c.b16 %v1145, %v1144
    %v1156 = vpack.c.b16 %v1147, %v1146
    %v1157 = vpack.c.b16 %v1149, %v1148
    %v1198 = vunpack.c.l.b16 %v186
    %v1199 = vunpack.c.h.b16 %v186
    %v1200 = vunpack.c.l.b16 %v187
    %v1201 = vunpack.c.l.b16 %v188
    %v1202 = vunpack.c.h.b16 %v188
    %v1203 = vunpack.c.l.b16 %v189
    %v1204 = vunpack.c.l.b16 %v190
    %v1205 = vunpack.c.h.b16 %v190
    %v1206 = vunpack.c.l.b16 %v191
    %v1207 = vunpack.c.l.b16 %v192
    %v1208 = vunpack.c.h.b16 %v192
    %v1209 = vunpack.c.l.b16 %v193
    %v1210 = vunpack.c.l.b16 %v194
    %v1211 = vunpack.c.h.b16 %v194
    %v1212 = vunpack.c.l.b16 %v195
    %v1213 = vunpack.c.l.b16 %v196
    %v1214 = vunpack.c.h.b16 %v196
    %v1215 = vunpack.c.l.b16 %v197
    %v1216 = vunpack.c.l.b16 %v198
    %v1217 = vunpack.c.h.b16 %v198
    %v1218 = vunpack.c.l.b16 %v199
    %v1219 = vunpack.c.l.b16 %v200
    %v1220 = vunpack.c.h.b16 %v200
    %v1221 = vunpack.c.l.b16 %v201
    %v1222 = vunpack.c.l.b16 %v202
    %v1223 = vunpack.c.h.b16 %v202
    %v1224 = vunpack.c.l.b16 %v203
    %v1225 = vunpack.c.l.b16 %v204
    %v1226 = vunpack.c.h.b16 %v204
    %v1227 = vunpack.c.l.b16 %v205
    %v1228 = vunpack.c.l.b16 %v206
    %v1229 = vunpack.c.h.b16 %v206
    %v1230 = vunpack.c.l.b16 %v207
    %v1231 = vunpack.c.l.b16 %v208
    %v1232 = vunpack.c.h.b16 %v208
    %v1233 = vunpack.c.l.b16 %v209
    %v1234 = vunpack.c.l.b16 %v210
    %v1235 = vunpack.c.h.b16 %v210
    %v1236 = vunpack.c.l.b16 %v211
    %v1237 = vunpack.c.l.b16 %v212
    %v1238 = vunpack.c.h.b16 %v212
    %v1239 = vunpack.c.l.b16 %v213
    %v1240 = vunpack.c.l.b16 %v214
    %v1241 = vunpack.c.h.b16 %v214
    %v1242 = vunpack.c.l.b16 %v215
    %v1243 = vunpack.c.l.b16 %v216
    %v1244 = vunpack.c.h.b16 %v216
    %v1245 = vunpack.c.l.b16 %v217
    %v1246 = vpack.c.b16 %v1201, %v1198
    %v1247 = vpack.c.b16 %v1202, %v1199
    %v1248 = vpack.c.b16 %v1203, %v1200
    %v1249 = vpack.c.b16 %v1207, %v1204
    %v1250 = vpack.c.b16 %v1208, %v1205
    %v1251 = vpack.c.b16 %v1209, %v1206
    %v1252 = vpack.c.b16 %v1213, %v1210
    %v1253 = vpack.c.b16 %v1214, %v1211
    %v1254 = vpack.c.b16 %v1215, %v1212
    %v1255 = vpack.c.b16 %v1219, %v1216
    %v1256 = vpack.c.b16 %v1220, %v1217
    %v1257 = vpack.c.b16 %v1221, %v1218
    %v1258 = vpack.c.b16 %v1225, %v1222
    %v1259 = vpack.c.b16 %v1226, %v1223
    %v1260 = vpack.c.b16 %v1227, %v1224
    %v1261 = vpack.c.b16 %v1231, %v1228
    %v1262 = vpack.c.b16 %v1232, %v1229
    %v1263 = vpack.c.b16 %v1233, %v1230
    %v1264 = vpack.c.b16 %v1237, %v1234
    %v1265 = vpack.c.b16 %v1238, %v1235
    %v1266 = vpack.c.b16 %v1239, %v1236
    %v1267 = vpack.c.b16 %v1243, %v1240
    %v1268 = vpack.c.b16 %v1244, %v1241
    %v1269 = vpack.c.b16 %v1245, %v1242
    %1294 = vmatprep.subr.bf16.mxu0 %v1247
    %1295 = vmatpush1.bf16.msra.mxu0 %v1246
    %1296 = vmatprep.subr.bf16.mxu0 %v1250
    %1297 = vmatpush1.bf16.msra.mxu0 %v1249
    %1298 = vmatprep.subr.bf16.mxu0 %v1253
    %1299 = vmatpush1.bf16.msra.mxu0 %v1252
    %1300 = vmatprep.subr.bf16.mxu0 %v1256
    %1301 = vmatpush1.bf16.msra.mxu0 %v1255
    %1302 = vmatprep.subr.bf16.mxu0 %v1259
    %1303 = vmatpush1.bf16.msra.mxu0 %v1258
    %1304 = vmatprep.subr.bf16.mxu0 %v1262
    %1305 = vmatpush1.bf16.msra.mxu0 %v1261
    %1306 = vmatprep.subr.bf16.mxu0 %v1265
    %1307 = vmatpush1.bf16.msra.mxu0 %v1264
    %1308 = vmatprep.subr.bf16.mxu0 %v1268
    %1309 = vmatpush1.bf16.msra.mxu0 %v1267
    %1310 = vmatprep.subr.bf16.mxu0 0
    %1311 = vmatpush1.bf16.msra.mxu0 0
    %1312 = vmatprep.subr.bf16.mxu0 0
    %1313 = vmatpush1.bf16.msra.mxu0 0
    %1314 = vmatprep.subr.bf16.mxu0 0
    %1315 = vmatpush1.bf16.msra.mxu0 0
    %1316 = vmatprep.subr.bf16.mxu0 0
    %1317 = vmatpush1.bf16.msra.mxu0 0
    %1318 = vmatprep.subr.bf16.mxu0 0
    %1319 = vmatpush1.bf16.msra.mxu0 0
    %1320 = vmatprep.subr.bf16.mxu0 0
    %1321 = vmatpush1.bf16.msra.mxu0 0
    %1322 = vmatprep.subr.bf16.mxu0 0
    %1323 = vmatpush1.bf16.msra.mxu0 0
    %1324 = vmatprep.subr.bf16.mxu0 0
    %1325 = vmatpush1.bf16.msra.mxu0 0
    %1326 = vmatprep.mubr.bf16.mxu0 0
    %1327 = vmatmul.mubr.bf16.gmra.mrb[0].mxu0 %v1150
    %v1328 = vpop.f32.mrb[0].mxu0
    %v1329 = vadd.f32 %v846, %v1328
    %v1330 = vpop.f32.mrb[0].mxu0
    %v1331 = vadd.f32 %v848, %v1330
    %v1332 = vpop.f32.mrb[0].mxu0
    %v1333 = vadd.f32 %v850, %v1332
    %v1334 = vpop.f32.mrb[0].mxu0
    %v1335 = vadd.f32 %v852, %v1334
    %1336 = vmatprep.mubr.bf16.mxu0 0
    %1337 = vmatmul.mubr.bf16.gmra.mrb[0].mxu0 %v1151
    %v1338 = vpop.f32.mrb[0].mxu0
    %v1339 = vadd.f32 %v856, %v1338
    %v1340 = vpop.f32.mrb[0].mxu0
    %v1341 = vadd.f32 %v858, %v1340
    %v1342 = vpop.f32.mrb[0].mxu0
    %v1343 = vadd.f32 %v860, %v1342
    %v1344 = vpop.f32.mrb[0].mxu0
    %v1345 = vadd.f32 %v862, %v1344
    %1346 = vmatprep.mubr.bf16.mxu0 0
    %1347 = vmatmul.mubr.bf16.gmra.mrb[0].mxu0 %v1152
    %v1348 = vpop.f32.mrb[0].mxu0
    %v1349 = vadd.f32 %v866, %v1348
    %v1350 = vpop.f32.mrb[0].mxu0
    %v1351 = vadd.f32 %v868, %v1350
    %v1352 = vpop.f32.mrb[0].mxu0
    %v1353 = vadd.f32 %v870, %v1352
    %v1354 = vpop.f32.mrb[0].mxu0
    %v1355 = vadd.f32 %v872, %v1354
    %1356 = vmatprep.mubr.bf16.mxu0 0
    %1357 = vmatmul.mubr.bf16.gmra.mrb[0].mxu0 %v1153
    %v1358 = vpop.f32.mrb[0].mxu0
    %v1359 = vadd.f32 %v876, %v1358
    %v1360 = vpop.f32.mrb[0].mxu0
    %v1361 = vadd.f32 %v878, %v1360
    %v1362 = vpop.f32.mrb[0].mxu0
    %v1363 = vadd.f32 %v880, %v1362
    %v1364 = vpop.f32.mrb[0].mxu0
    %v1365 = vadd.f32 %v882, %v1364
    %1366 = vmatprep.mubr.bf16.mxu0 0
    %1367 = vmatmul.mubr.bf16.gmra.mrb[0].mxu0 %v1154
    %v1368 = vpop.f32.mrb[0].mxu0
    %v1369 = vadd.f32 %v886, %v1368
    %v1370 = vpop.f32.mrb[0].mxu0
    %v1371 = vadd.f32 %v888, %v1370
    %v1372 = vpop.f32.mrb[0].mxu0
    %v1373 = vadd.f32 %v890, %v1372
    %v1374 = vpop.f32.mrb[0].mxu0
    %v1375 = vadd.f32 %v892, %v1374
    %1376 = vmatprep.mubr.bf16.mxu0 0
    %1377 = vmatmul.mubr.bf16.gmra.mrb[0].mxu0 %v1155
    %v1378 = vpop.f32.mrb[0].mxu0
    %v1379 = vadd.f32 %v896, %v1378
    %v1380 = vpop.f32.mrb[0].mxu0
    %v1381 = vadd.f32 %v898, %v1380
    %v1382 = vpop.f32.mrb[0].mxu0
    %v1383 = vadd.f32 %v900, %v1382
    %v1384 = vpop.f32.mrb[0].mxu0
    %v1385 = vadd.f32 %v902, %v1384
    %1386 = vmatprep.mubr.bf16.mxu0 0
    %1387 = vmatmul.mubr.bf16.gmra.mrb[0].mxu0 %v1156
    %v1388 = vpop.f32.mrb[0].mxu0
    %v1389 = vadd.f32 %v906, %v1388
    %v1390 = vpop.f32.mrb[0].mxu0
    %v1391 = vadd.f32 %v908, %v1390
    %v1392 = vpop.f32.mrb[0].mxu0
    %v1393 = vadd.f32 %v910, %v1392
    %v1394 = vpop.f32.mrb[0].mxu0
    %v1395 = vadd.f32 %v912, %v1394
    %1396 = vmatprep.mubr.bf16.mxu0 0
    %1397 = vmatmul.mubr.bf16.gmra.mrb[0].mxu0 %v1157
    %v1398 = vpop.f32.mrb[0].mxu0
    %v1399 = vadd.f32 %v916, %v1398
    %v1400 = vpop.f32.mrb[0].mxu0
    %v1401 = vadd.f32 %v918, %v1400
    %v1402 = vpop.f32.mrb[0].mxu0
    %v1403 = vadd.f32 %v920, %v1402
    %v1404 = vpop.f32.mrb[0].mxu0
    %v1405 = vadd.f32 %v922, %v1404
    %1406 = vdwg.mxu0
    %1407 = vmatprep.subr.bf16.mxu0 0
    %1408 = vmatpush1.bf16.msra.mxu0 %v1248
    %1409 = vmatprep.subr.bf16.mxu0 0
    %1410 = vmatpush1.bf16.msra.mxu0 %v1251
    %1411 = vmatprep.subr.bf16.mxu0 0
    %1412 = vmatpush1.bf16.msra.mxu0 %v1254
    %1413 = vmatprep.subr.bf16.mxu0 0
    %1414 = vmatpush1.bf16.msra.mxu0 %v1257
    %1415 = vmatprep.subr.bf16.mxu0 0
    %1416 = vmatpush1.bf16.msra.mxu0 %v1260
    %1417 = vmatprep.subr.bf16.mxu0 0
    %1418 = vmatpush1.bf16.msra.mxu0 %v1263
    %1419 = vmatprep.subr.bf16.mxu0 0
    %1420 = vmatpush1.bf16.msra.mxu0 %v1266
    %1421 = vmatprep.subr.bf16.mxu0 0
    %1422 = vmatpush1.bf16.msra.mxu0 %v1269
    %1423 = vmatprep.subr.bf16.mxu0 0
    %1424 = vmatpush1.bf16.msra.mxu0 0
    %1425 = vmatprep.subr.bf16.mxu0 0
    %1426 = vmatpush1.bf16.msra.mxu0 0
    %1427 = vmatprep.subr.bf16.mxu0 0
    %1428 = vmatpush1.bf16.msra.mxu0 0
    %1429 = vmatprep.subr.bf16.mxu0 0
    %1430 = vmatpush1.bf16.msra.mxu0 0
    %1431 = vmatprep.subr.bf16.mxu0 0
    %1432 = vmatpush1.bf16.msra.mxu0 0
    %1433 = vmatprep.subr.bf16.mxu0 0
    %1434 = vmatpush1.bf16.msra.mxu0 0
    %1435 = vmatprep.subr.bf16.mxu0 0
    %1436 = vmatpush1.bf16.msra.mxu0 0
    %1437 = vmatprep.subr.bf16.mxu0 0
    %1438 = vmatpush1.bf16.msra.mxu0 0
    %1439 = vmatprep.mubr.bf16.mxu0 0
    %1440 = vmatmul.mubr.bf16.gmra.mrb[0].mxu0 %v1150
    %v1441 = vpop.f32.mrb[0].mxu0
    %v1442 = vadd.f32 %v1056, %v1441
    %v1443 = vpop.f32.mrb[0].mxu0
    %v1444 = vpop.f32.mrb[0].mxu0
    %v1445 = vadd.f32 %v1059, %v1444
    %v1446 = vpop.f32.mrb[0].mxu0
    %1447 = vmatprep.mubr.bf16.mxu0 0
    %1448 = vmatmul.mubr.bf16.gmra.mrb[0].mxu0 %v1151
    %v1449 = vpop.f32.mrb[0].mxu0
    %v1450 = vadd.f32 %v1064, %v1449
    %v1451 = vpop.f32.mrb[0].mxu0
    %v1452 = vpop.f32.mrb[0].mxu0
    %v1453 = vadd.f32 %v1067, %v1452
    %v1454 = vpop.f32.mrb[0].mxu0
    %1455 = vmatprep.mubr.bf16.mxu0 0
    %1456 = vmatmul.mubr.bf16.gmra.mrb[0].mxu0 %v1152
    %v1457 = vpop.f32.mrb[0].mxu0
    %v1458 = vadd.f32 %v1072, %v1457
    %v1459 = vpop.f32.mrb[0].mxu0
    %v1460 = vpop.f32.mrb[0].mxu0
    %v1461 = vadd.f32 %v1075, %v1460
    %v1462 = vpop.f32.mrb[0].mxu0
    %1463 = vmatprep.mubr.bf16.mxu0 0
    %1464 = vmatmul.mubr.bf16.gmra.mrb[0].mxu0 %v1153
    %v1465 = vpop.f32.mrb[0].mxu0
    %v1466 = vadd.f32 %v1080, %v1465
    %v1467 = vpop.f32.mrb[0].mxu0
    %v1468 = vpop.f32.mrb[0].mxu0
    %v1469 = vadd.f32 %v1083, %v1468
    %v1470 = vpop.f32.mrb[0].mxu0
    %1471 = vmatprep.mubr.bf16.mxu0 0
    %1472 = vmatmul.mubr.bf16.gmra.mrb[0].mxu0 %v1154
    %v1473 = vpop.f32.mrb[0].mxu0
    %v1474 = vadd.f32 %v1088, %v1473
    %v1475 = vpop.f32.mrb[0].mxu0
    %v1476 = vpop.f32.mrb[0].mxu0
    %v1477 = vadd.f32 %v1091, %v1476
    %v1478 = vpop.f32.mrb[0].mxu0
    %1479 = vmatprep.mubr.bf16.mxu0 0
    %1480 = vmatmul.mubr.bf16.gmra.mrb[0].mxu0 %v1155
    %v1481 = vpop.f32.mrb[0].mxu0
    %v1482 = vadd.f32 %v1096, %v1481
    %v1483 = vpop.f32.mrb[0].mxu0
    %v1484 = vpop.f32.mrb[0].mxu0
    %v1485 = vadd.f32 %v1099, %v1484
    %v1486 = vpop.f32.mrb[0].mxu0
    %1487 = vmatprep.mubr.bf16.mxu0 0
    %1488 = vmatmul.mubr.bf16.gmra.mrb[0].mxu0 %v1156
    %v1489 = vpop.f32.mrb[0].mxu0
    %v1490 = vadd.f32 %v1104, %v1489
    %v1491 = vpop.f32.mrb[0].mxu0
    %v1492 = vpop.f32.mrb[0].mxu0
    %v1493 = vadd.f32 %v1107, %v1492
    %v1494 = vpop.f32.mrb[0].mxu0
    %1495 = vmatprep.mubr.bf16.mxu0 0
    %1496 = vmatmul.mubr.bf16.gmra.mrb[0].mxu0 %v1157
    %v1497 = vpop.f32.mrb[0].mxu0
    %v1498 = vadd.f32 %v1112, %v1497
    %v1499 = vpop.f32.mrb[0].mxu0
    %v1500 = vpop.f32.mrb[0].mxu0
    %v1501 = vadd.f32 %v1115, %v1500
    %v1502 = vpop.f32.mrb[0].mxu0
    %1503 = vdwg.mxu0
    %v1504 = vld [vmem:[%s4] sm:$0x7]
    %v1506 = vlaneseq
    %v1507 = vshrl.u32 %v1506, 7
    %v1508 = vsub.s32 0, %v1507
    %v1509 = vrot.slane %v1504, %v1508
    %v1510 = vlaneseq
    %v1511 = vshrl.u32 %v1510, 7
    %v1512 = vsub.s32 1, %v1511
    %v1513 = vrot.slane %v1504, %v1512
    %v1514 = vlaneseq
    %v1515 = vshrl.u32 %v1514, 7
    %v1516 = vsub.s32 2, %v1515
    %v1517 = vrot.slane %v1504, %v1516
    %v1521 = vadd.f32 %v1329, %v1509
    %v1522 = vadd.f32 %v1331, %v1513
    %v1523 = vadd.f32 %v1442, %v1517
    %v1524 = vadd.f32 %v1333, %v1509
    %v1525 = vadd.f32 %v1335, %v1513
    %v1526 = vadd.f32 %v1445, %v1517
    %v1527 = vadd.f32 %v1339, %v1509
    %v1528 = vadd.f32 %v1341, %v1513
    %v1529 = vadd.f32 %v1450, %v1517
    %v1530 = vadd.f32 %v1343, %v1509
    %v1531 = vadd.f32 %v1345, %v1513
    %v1532 = vadd.f32 %v1453, %v1517
    %v1533 = vadd.f32 %v1349, %v1509
    %v1534 = vadd.f32 %v1351, %v1513
    %v1535 = vadd.f32 %v1458, %v1517
    %v1536 = vadd.f32 %v1353, %v1509
    %v1537 = vadd.f32 %v1355, %v1513
    %v1538 = vadd.f32 %v1461, %v1517
    %v1539 = vadd.f32 %v1359, %v1509
    %v1540 = vadd.f32 %v1361, %v1513
    %v1541 = vadd.f32 %v1466, %v1517
    %v1542 = vadd.f32 %v1363, %v1509
    %v1543 = vadd.f32 %v1365, %v1513
    %v1544 = vadd.f32 %v1469, %v1517
    %v1545 = vadd.f32 %v1369, %v1509
    %v1546 = vadd.f32 %v1371, %v1513
    %v1547 = vadd.f32 %v1474, %v1517
    %v1548 = vadd.f32 %v1373, %v1509
    %v1549 = vadd.f32 %v1375, %v1513
    %v1550 = vadd.f32 %v1477, %v1517
    %v1551 = vadd.f32 %v1379, %v1509
    %v1552 = vadd.f32 %v1381, %v1513
    %v1553 = vadd.f32 %v1482, %v1517
    %v1554 = vadd.f32 %v1383, %v1509
    %v1555 = vadd.f32 %v1385, %v1513
    %v1556 = vadd.f32 %v1485, %v1517
    %v1557 = vadd.f32 %v1389, %v1509
    %v1558 = vadd.f32 %v1391, %v1513
    %v1559 = vadd.f32 %v1490, %v1517
    %v1560 = vadd.f32 %v1393, %v1509
    %v1561 = vadd.f32 %v1395, %v1513
    %v1562 = vadd.f32 %v1493, %v1517
    %v1563 = vadd.f32 %v1399, %v1509
    %v1564 = vadd.f32 %v1401, %v1513
    %v1565 = vadd.f32 %v1498, %v1517
    %v1566 = vadd.f32 %v1403, %v1509
    %v1567 = vadd.f32 %v1405, %v1513
    %v1568 = vadd.f32 %v1501, %v1517
    %v1569 = vmax.f32 %v1521, 0.0
    %v1570 = vmax.f32 %v1522, 0.0
    %v1571 = vmax.f32 %v1523, 0.0
    %v1572 = vmax.f32 %v1524, 0.0
    %v1573 = vmax.f32 %v1525, 0.0
    %v1574 = vmax.f32 %v1526, 0.0
    %v1575 = vmax.f32 %v1527, 0.0
    %v1576 = vmax.f32 %v1528, 0.0
    %v1577 = vmax.f32 %v1529, 0.0
    %v1578 = vmax.f32 %v1530, 0.0
    %v1579 = vmax.f32 %v1531, 0.0
    %v1580 = vmax.f32 %v1532, 0.0
    %v1581 = vmax.f32 %v1533, 0.0
    %v1582 = vmax.f32 %v1534, 0.0
    %v1583 = vmax.f32 %v1535, 0.0
    %v1584 = vmax.f32 %v1536, 0.0
    %v1585 = vmax.f32 %v1537, 0.0
    %v1586 = vmax.f32 %v1538, 0.0
    %v1587 = vmax.f32 %v1539, 0.0
    %v1588 = vmax.f32 %v1540, 0.0
    %v1589 = vmax.f32 %v1541, 0.0
    %v1590 = vmax.f32 %v1542, 0.0
    %v1591 = vmax.f32 %v1543, 0.0
    %v1592 = vmax.f32 %v1544, 0.0
    %v1593 = vmax.f32 %v1545, 0.0
    %v1594 = vmax.f32 %v1546, 0.0
    %v1595 = vmax.f32 %v1547, 0.0
    %v1596 = vmax.f32 %v1548, 0.0
    %v1597 = vmax.f32 %v1549, 0.0
    %v1598 = vmax.f32 %v1550, 0.0
    %v1599 = vmax.f32 %v1551, 0.0
    %v1600 = vmax.f32 %v1552, 0.0
    %v1601 = vmax.f32 %v1553, 0.0
    %v1602 = vmax.f32 %v1554, 0.0
    %v1603 = vmax.f32 %v1555, 0.0
    %v1604 = vmax.f32 %v1556, 0.0
    %v1605 = vmax.f32 %v1557, 0.0
    %v1606 = vmax.f32 %v1558, 0.0
    %v1607 = vmax.f32 %v1559, 0.0
    %v1608 = vmax.f32 %v1560, 0.0
    %v1609 = vmax.f32 %v1561, 0.0
    %v1610 = vmax.f32 %v1562, 0.0
    %v1611 = vmax.f32 %v1563, 0.0
    %v1612 = vmax.f32 %v1564, 0.0
    %v1613 = vmax.f32 %v1565, 0.0
    %v1614 = vmax.f32 %v1566, 0.0
    %v1615 = vmax.f32 %v1567, 0.0
    %v1616 = vmax.f32 %v1568, 0.0
    %v1617 = vadd.f32 %v1569, %v1572
    %v1618 = vadd.f32 %v1617, %v1575
    %v1619 = vadd.f32 %v1618, %v1578
    %v1620 = vadd.f32 %v1619, %v1581
    %v1621 = vadd.f32 %v1620, %v1584
    %v1622 = vadd.f32 %v1621, %v1587
    %v1623 = vadd.f32 %v1622, %v1590
    %v1624 = vrot.slane %v1623, 4
    %v1625 = vadd.f32 %v1623, %v1624
    %v1626 = vrot.slane %v1625, 2
    %v1627 = vadd.f32 %v1625, %v1626
    %v1628 = vrot.slane %v1627, 1
    %v1629 = vadd.f32 %v1627, %v1628
    %v1630 = vadd.f32 %v1570, %v1573
    %v1631 = vadd.f32 %v1630, %v1576
    %v1632 = vadd.f32 %v1631, %v1579
    %v1633 = vadd.f32 %v1632, %v1582
    %v1634 = vadd.f32 %v1633, %v1585
    %v1635 = vadd.f32 %v1634, %v1588
    %v1636 = vadd.f32 %v1635, %v1591
    %v1637 = vrot.slane %v1636, 4
    %v1638 = vadd.f32 %v1636, %v1637
    %v1639 = vrot.slane %v1638, 2
    %v1640 = vadd.f32 %v1638, %v1639
    %v1641 = vrot.slane %v1640, 1
    %v1642 = vadd.f32 %v1640, %v1641
    %v1643 = vadd.f32 %v1571, %v1574
    %v1644 = vadd.f32 %v1643, %v1577
    %v1645 = vadd.f32 %v1644, %v1580
    %v1646 = vadd.f32 %v1645, %v1583
    %v1647 = vadd.f32 %v1646, %v1586
    %v1648 = vadd.f32 %v1647, %v1589
    %v1649 = vadd.f32 %v1648, %v1592
    %v1650 = vrot.slane %v1649, 4
    %v1651 = vadd.f32 %v1649, %v1650
    %v1652 = vrot.slane %v1651, 2
    %v1653 = vadd.f32 %v1651, %v1652
    %v1654 = vrot.slane %v1653, 1
    %v1655 = vadd.f32 %v1653, %v1654
    %v1656 = vadd.f32 %v1593, %v1596
    %v1657 = vadd.f32 %v1656, %v1599
    %v1658 = vadd.f32 %v1657, %v1602
    %v1659 = vadd.f32 %v1658, %v1605
    %v1660 = vadd.f32 %v1659, %v1608
    %v1661 = vadd.f32 %v1660, %v1611
    %v1662 = vadd.f32 %v1661, %v1614
    %v1663 = vrot.slane %v1662, 4
    %v1664 = vadd.f32 %v1662, %v1663
    %v1665 = vrot.slane %v1664, 2
    %v1666 = vadd.f32 %v1664, %v1665
    %v1667 = vrot.slane %v1666, 1
    %v1668 = vadd.f32 %v1666, %v1667
    %v1669 = vadd.f32 %v1594, %v1597
    %v1670 = vadd.f32 %v1669, %v1600
    %v1671 = vadd.f32 %v1670, %v1603
    %v1672 = vadd.f32 %v1671, %v1606
    %v1673 = vadd.f32 %v1672, %v1609
    %v1674 = vadd.f32 %v1673, %v1612
    %v1675 = vadd.f32 %v1674, %v1615
    %v1676 = vrot.slane %v1675, 4
    %v1677 = vadd.f32 %v1675, %v1676
    %v1678 = vrot.slane %v1677, 2
    %v1679 = vadd.f32 %v1677, %v1678
    %v1680 = vrot.slane %v1679, 1
    %v1681 = vadd.f32 %v1679, %v1680
    %v1682 = vadd.f32 %v1595, %v1598
    %v1683 = vadd.f32 %v1682, %v1601
    %v1684 = vadd.f32 %v1683, %v1604
    %v1685 = vadd.f32 %v1684, %v1607
    %v1686 = vadd.f32 %v1685, %v1610
    %v1687 = vadd.f32 %v1686, %v1613
    %v1688 = vadd.f32 %v1687, %v1616
    %v1689 = vrot.slane %v1688, 4
    %v1690 = vadd.f32 %v1688, %v1689
    %v1691 = vrot.slane %v1690, 2
    %v1692 = vadd.f32 %v1690, %v1691
    %v1693 = vrot.slane %v1692, 1
    %v1694 = vadd.f32 %v1692, %v1693
    %v1695 = vmul.f32 %v1629, 0.015625
    %v1696 = vmul.f32 %v1642, 0.015625
    %v1697 = vmul.f32 %v1655, 0.015625
    %v1698 = vmul.f32 %v1668, 0.015625
    %v1699 = vmul.f32 %v1681, 0.015625
    %v1700 = vmul.f32 %v1694, 0.015625
    %v1701 = vmax.f32 %v1569, %v1572
    %v1702 = vmax.f32 %v1701, %v1575
    %v1703 = vmax.f32 %v1702, %v1578
    %v1704 = vmax.f32 %v1703, %v1581
    %v1705 = vmax.f32 %v1704, %v1584
    %v1706 = vmax.f32 %v1705, %v1587
    %v1707 = vmax.f32 %v1706, %v1590
    %v1708 = vrot.slane %v1707, 4
    %v1709 = vmax.f32 %v1707, %v1708
    %v1710 = vrot.slane %v1709, 2
    %v1711 = vmax.f32 %v1709, %v1710
    %v1712 = vrot.slane %v1711, 1
    %v1713 = vmax.f32 %v1711, %v1712
    %v1714 = vmax.f32 %v1570, %v1573
    %v1715 = vmax.f32 %v1714, %v1576
    %v1716 = vmax.f32 %v1715, %v1579
    %v1717 = vmax.f32 %v1716, %v1582
    %v1718 = vmax.f32 %v1717, %v1585
    %v1719 = vmax.f32 %v1718, %v1588
    %v1720 = vmax.f32 %v1719, %v1591
    %v1721 = vrot.slane %v1720, 4
    %v1722 = vmax.f32 %v1720, %v1721
    %v1723 = vrot.slane %v1722, 2
    %v1724 = vmax.f32 %v1722, %v1723
    %v1725 = vrot.slane %v1724, 1
    %v1726 = vmax.f32 %v1724, %v1725
    %v1727 = vmax.f32 %v1571, %v1574
    %v1728 = vmax.f32 %v1727, %v1577
    %v1729 = vmax.f32 %v1728, %v1580
    %v1730 = vmax.f32 %v1729, %v1583
    %v1731 = vmax.f32 %v1730, %v1586
    %v1732 = vmax.f32 %v1731, %v1589
    %v1733 = vmax.f32 %v1732, %v1592
    %v1734 = vrot.slane %v1733, 4
    %v1735 = vmax.f32 %v1733, %v1734
    %v1736 = vrot.slane %v1735, 2
    %v1737 = vmax.f32 %v1735, %v1736
    %v1738 = vrot.slane %v1737, 1
    %v1739 = vmax.f32 %v1737, %v1738
    %v1740 = vmax.f32 %v1593, %v1596
    %v1741 = vmax.f32 %v1740, %v1599
    %v1742 = vmax.f32 %v1741, %v1602
    %v1743 = vmax.f32 %v1742, %v1605
    %v1744 = vmax.f32 %v1743, %v1608
    %v1745 = vmax.f32 %v1744, %v1611
    %v1746 = vmax.f32 %v1745, %v1614
    %v1747 = vrot.slane %v1746, 4
    %v1748 = vmax.f32 %v1746, %v1747
    %v1749 = vrot.slane %v1748, 2
    %v1750 = vmax.f32 %v1748, %v1749
    %v1751 = vrot.slane %v1750, 1
    %v1752 = vmax.f32 %v1750, %v1751
    %v1753 = vmax.f32 %v1594, %v1597
    %v1754 = vmax.f32 %v1753, %v1600
    %v1755 = vmax.f32 %v1754, %v1603
    %v1756 = vmax.f32 %v1755, %v1606
    %v1757 = vmax.f32 %v1756, %v1609
    %v1758 = vmax.f32 %v1757, %v1612
    %v1759 = vmax.f32 %v1758, %v1615
    %v1760 = vrot.slane %v1759, 4
    %v1761 = vmax.f32 %v1759, %v1760
    %v1762 = vrot.slane %v1761, 2
    %v1763 = vmax.f32 %v1761, %v1762
    %v1764 = vrot.slane %v1763, 1
    %v1765 = vmax.f32 %v1763, %v1764
    %v1766 = vmax.f32 %v1595, %v1598
    %v1767 = vmax.f32 %v1766, %v1601
    %v1768 = vmax.f32 %v1767, %v1604
    %v1769 = vmax.f32 %v1768, %v1607
    %v1770 = vmax.f32 %v1769, %v1610
    %v1771 = vmax.f32 %v1770, %v1613
    %v1772 = vmax.f32 %v1771, %v1616
    %v1773 = vrot.slane %v1772, 4
    %v1774 = vmax.f32 %v1772, %v1773
    %v1775 = vrot.slane %v1774, 2
    %v1776 = vmax.f32 %v1774, %v1775
    %v1777 = vrot.slane %v1776, 1
    %v1778 = vmax.f32 %v1776, %v1777
    %vm1785 = vcmask 1041409
    %v1786 = vsel %vm1785, %v1698, %v1695
    %v1787 = vsel %vm1785, %v1699, %v1696
    %v1788 = vsel %vm1785, %v1700, %v1697
    %vm1798 = vcmask 1043459
    %v1799 = vsel %vm1798, %v1752, %v1713
    %v1800 = vsel %vm1798, %v1765, %v1726
    %v1801 = vsel %vm1798, %v1778, %v1739
    %vm1805 = vcmask 1041408
    %v1806 = vsel %vm1805, %v1786, %v1799
    %v1807 = vsel %vm1805, %v1787, %v1800
    %v1808 = vsel %vm1805, %v1788, %v1801
    %v1809 = vpack.c.bf16 %v1806, %v1806
    %v1810 = vpack.c.bf16 %v1807, %v1807
    %v1811 = vpack.c.bf16 %v1808, %v1808
    %v1812 = vld [vmem:[#allocation8] sm:$0xf]
    %v1813 = vld [vmem:[#allocation8 + $0x4] sm:$0xf]
    %v1814 = vld [vmem:[#allocation8 + $0x8] sm:$0xf]
    %v1815 = vld [vmem:[#allocation8 + $0xc] sm:$0xf]
    %v1816 = vld [vmem:[#allocation8 + $0x10] sm:$0xf]
    %v1817 = vld [vmem:[#allocation8 + $0x14] sm:$0xf]
    %v1818 = vld [vmem:[#allocation8 + $0x18] sm:$0xf]
    %v1819 = vld [vmem:[#allocation8 + $0x1c] sm:$0xf]
    %v1820 = vld [vmem:[#allocation8 + $0x20] sm:$0xf]
    %v1821 = vld [vmem:[#allocation8 + $0x24] sm:$0xf]
    %v1822 = vld [vmem:[#allocation8 + $0x28] sm:$0xf]
    %v1823 = vld [vmem:[#allocation8 + $0x2c] sm:$0xf]
    %v1824 = vld [vmem:[#allocation8 + $0x30] sm:$0xf]
    %v1825 = vld [vmem:[#allocation8 + $0x34] sm:$0xf]
    %v1826 = vld [vmem:[#allocation8 + $0x38] sm:$0xf]
    %v1827 = vld [vmem:[#allocation8 + $0x3c] sm:$0xf]
    %v1828 = vld [vmem:[#allocation8 + $0x40] sm:$0xf]
    %v1829 = vld [vmem:[#allocation8 + $0x44] sm:$0xf]
    %v1830 = vld [vmem:[#allocation8 + $0x48] sm:$0xf]
    %v1831 = vld [vmem:[#allocation8 + $0x4c] sm:$0xf]
    %v1832 = vld [vmem:[#allocation8 + $0x50] sm:$0xf]
    %v1833 = vld [vmem:[#allocation8 + $0x54] sm:$0xf]
    %v1834 = vld [vmem:[#allocation8 + $0x58] sm:$0xf]
    %v1835 = vld [vmem:[#allocation8 + $0x5c] sm:$0xf]
    %v1836 = vld [vmem:[#allocation8 + $0x60] sm:$0xf]
    %v1837 = vld [vmem:[#allocation8 + $0x64] sm:$0xf]
    %v1838 = vld [vmem:[#allocation8 + $0x68] sm:$0xf]
    %v1839 = vld [vmem:[#allocation8 + $0x6c] sm:$0xf]
    %v1840 = vld [vmem:[#allocation8 + $0x70] sm:$0xf]
    %v1841 = vld [vmem:[#allocation8 + $0x74] sm:$0xf]
    %v1842 = vld [vmem:[#allocation8 + $0x78] sm:$0xf]
    %v1843 = vld [vmem:[#allocation8 + $0x7c] sm:$0xf]
    %v1844 = vld [vmem:[#allocation8 + $0x80] sm:$0xf]
    %v1845 = vld [vmem:[#allocation8 + $0x84] sm:$0xf]
    %v1846 = vld [vmem:[#allocation8 + $0x88] sm:$0xf]
    %v1847 = vld [vmem:[#allocation8 + $0x8c] sm:$0xf]
    %v1848 = vld [vmem:[#allocation8 + $0x90] sm:$0xf]
    %v1849 = vld [vmem:[#allocation8 + $0x94] sm:$0xf]
    %v1850 = vld [vmem:[#allocation8 + $0x98] sm:$0xf]
    %v1851 = vld [vmem:[#allocation8 + $0x9c] sm:$0xf]
    %v1852 = vld [vmem:[#allocation8 + $0xa0] sm:$0xf]
    %v1853 = vld [vmem:[#allocation8 + $0xa4] sm:$0xf]
    %v1854 = vld [vmem:[#allocation8 + $0xa8] sm:$0xf]
    %v1855 = vld [vmem:[#allocation8 + $0xac] sm:$0xf]
    %v1856 = vld [vmem:[#allocation8 + $0xb0] sm:$0xf]
    %v1857 = vld [vmem:[#allocation8 + $0xb4] sm:$0xf]
    %v1858 = vld [vmem:[#allocation8 + $0xb8] sm:$0xf]
    %v1859 = vld [vmem:[#allocation8 + $0xbc] sm:$0xf]
    %v1908 = vunpack.c.l.b16 %v1812
    %v1909 = vunpack.c.l.b16 %v1813
    %v1910 = vunpack.c.l.b16 %v1814
    %v1911 = vunpack.c.l.b16 %v1815
    %v1912 = vunpack.c.l.b16 %v1816
    %v1913 = vunpack.c.l.b16 %v1817
    %v1914 = vunpack.c.l.b16 %v1818
    %v1915 = vunpack.c.l.b16 %v1819
    %v1916 = vunpack.c.l.b16 %v1820
    %v1917 = vunpack.c.l.b16 %v1821
    %v1918 = vunpack.c.l.b16 %v1822
    %v1919 = vunpack.c.l.b16 %v1823
    %v1920 = vunpack.c.l.b16 %v1824
    %v1921 = vunpack.c.l.b16 %v1825
    %v1922 = vunpack.c.l.b16 %v1826
    %v1923 = vunpack.c.l.b16 %v1827
    %v1924 = vunpack.c.l.b16 %v1828
    %v1925 = vunpack.c.l.b16 %v1829
    %v1926 = vunpack.c.l.b16 %v1830
    %v1927 = vunpack.c.l.b16 %v1831
    %v1928 = vunpack.c.l.b16 %v1832
    %v1929 = vunpack.c.l.b16 %v1833
    %v1930 = vunpack.c.l.b16 %v1834
    %v1931 = vunpack.c.l.b16 %v1835
    %v1932 = vunpack.c.l.b16 %v1836
    %v1933 = vunpack.c.l.b16 %v1837
    %v1934 = vunpack.c.l.b16 %v1838
    %v1935 = vunpack.c.l.b16 %v1839
    %v1936 = vunpack.c.l.b16 %v1840
    %v1937 = vunpack.c.l.b16 %v1841
    %v1938 = vunpack.c.l.b16 %v1842
    %v1939 = vunpack.c.l.b16 %v1843
    %v1940 = vunpack.c.l.b16 %v1844
    %v1941 = vunpack.c.l.b16 %v1845
    %v1942 = vunpack.c.l.b16 %v1846
    %v1943 = vunpack.c.l.b16 %v1847
    %v1944 = vunpack.c.l.b16 %v1848
    %v1945 = vunpack.c.l.b16 %v1849
    %v1946 = vunpack.c.l.b16 %v1850
    %v1947 = vunpack.c.l.b16 %v1851
    %v1948 = vunpack.c.l.b16 %v1852
    %v1949 = vunpack.c.l.b16 %v1853
    %v1950 = vunpack.c.l.b16 %v1854
    %v1951 = vunpack.c.l.b16 %v1855
    %v1952 = vunpack.c.l.b16 %v1856
    %v1953 = vunpack.c.l.b16 %v1857
    %v1954 = vunpack.c.l.b16 %v1858
    %v1955 = vunpack.c.l.b16 %v1859
    %v1956 = vpack.c.b16 %v1909, %v1908
    %v1957 = vpack.c.b16 %v1911, %v1910
    %v1958 = vpack.c.b16 %v1913, %v1912
    %v1959 = vpack.c.b16 %v1915, %v1914
    %v1960 = vpack.c.b16 %v1917, %v1916
    %v1961 = vpack.c.b16 %v1919, %v1918
    %v1962 = vpack.c.b16 %v1921, %v1920
    %v1963 = vpack.c.b16 %v1923, %v1922
    %v1964 = vpack.c.b16 %v1925, %v1924
    %v1965 = vpack.c.b16 %v1927, %v1926
    %v1966 = vpack.c.b16 %v1929, %v1928
    %v1967 = vpack.c.b16 %v1931, %v1930
    %v1968 = vpack.c.b16 %v1933, %v1932
    %v1969 = vpack.c.b16 %v1935, %v1934
    %v1970 = vpack.c.b16 %v1937, %v1936
    %v1971 = vpack.c.b16 %v1939, %v1938
    %v1972 = vpack.c.b16 %v1941, %v1940
    %v1973 = vpack.c.b16 %v1943, %v1942
    %v1974 = vpack.c.b16 %v1945, %v1944
    %v1975 = vpack.c.b16 %v1947, %v1946
    %v1976 = vpack.c.b16 %v1949, %v1948
    %v1977 = vpack.c.b16 %v1951, %v1950
    %v1978 = vpack.c.b16 %v1953, %v1952
    %v1979 = vpack.c.b16 %v1955, %v1954
    %2004 = vmatprep.subr.bf16.mxu0 0
    %2005 = vmatpush1.bf16.msra.mxu0 %v1956
    %2006 = vmatprep.subr.bf16.mxu0 0
    %2007 = vmatpush1.bf16.msra.mxu0 %v1957
    %2008 = vmatprep.subr.bf16.mxu0 0
    %2009 = vmatpush1.bf16.msra.mxu0 %v1958
    %2010 = vmatprep.subr.bf16.mxu0 0
    %2011 = vmatpush1.bf16.msra.mxu0 %v1959
    %2012 = vmatprep.subr.bf16.mxu0 0
    %2013 = vmatpush1.bf16.msra.mxu0 %v1960
    %2014 = vmatprep.subr.bf16.mxu0 0
    %2015 = vmatpush1.bf16.msra.mxu0 %v1961
    %2016 = vmatprep.subr.bf16.mxu0 0
    %2017 = vmatpush1.bf16.msra.mxu0 %v1962
    %2018 = vmatprep.subr.bf16.mxu0 0
    %2019 = vmatpush1.bf16.msra.mxu0 %v1963
    %2020 = vmatprep.subr.bf16.mxu0 0
    %2021 = vmatpush1.bf16.msra.mxu0 %v1964
    %2022 = vmatprep.subr.bf16.mxu0 0
    %2023 = vmatpush1.bf16.msra.mxu0 %v1965
    %2024 = vmatprep.subr.bf16.mxu0 0
    %2025 = vmatpush1.bf16.msra.mxu0 %v1966
    %2026 = vmatprep.subr.bf16.mxu0 0
    %2027 = vmatpush1.bf16.msra.mxu0 %v1967
    %2028 = vmatprep.subr.bf16.mxu0 0
    %2029 = vmatpush1.bf16.msra.mxu0 %v1968
    %2030 = vmatprep.subr.bf16.mxu0 0
    %2031 = vmatpush1.bf16.msra.mxu0 %v1969
    %2032 = vmatprep.subr.bf16.mxu0 0
    %2033 = vmatpush1.bf16.msra.mxu0 %v1970
    %2034 = vmatprep.subr.bf16.mxu0 0
    %2035 = vmatpush1.bf16.msra.mxu0 %v1971
    %2036 = vmatprep.mubr.bf16.mxu0 %v1810
    %2037 = vmatmul.mubr.bf16.gmra.mrb[0].mxu0 %v1809
    %v2038 = vpop.f32.mrb[0].mxu0
    %v2039 = vadd.f32 0.0, %v2038
    %v2040 = vpop.f32.mrb[0].mxu0
    %v2041 = vpop.f32.mrb[0].mxu0
    %v2042 = vpop.f32.mrb[0].mxu0
    %2043 = vdwg.mxu0
    %2044 = vmatprep.subr.bf16.mxu0 0
    %2045 = vmatpush1.bf16.msra.mxu0 %v1972
    %2046 = vmatprep.subr.bf16.mxu0 0
    %2047 = vmatpush1.bf16.msra.mxu0 %v1973
    %2048 = vmatprep.subr.bf16.mxu0 0
    %2049 = vmatpush1.bf16.msra.mxu0 %v1974
    %2050 = vmatprep.subr.bf16.mxu0 0
    %2051 = vmatpush1.bf16.msra.mxu0 %v1975
    %2052 = vmatprep.subr.bf16.mxu0 0
    %2053 = vmatpush1.bf16.msra.mxu0 %v1976
    %2054 = vmatprep.subr.bf16.mxu0 0
    %2055 = vmatpush1.bf16.msra.mxu0 %v1977
    %2056 = vmatprep.subr.bf16.mxu0 0
    %2057 = vmatpush1.bf16.msra.mxu0 %v1978
    %2058 = vmatprep.subr.bf16.mxu0 0
    %2059 = vmatpush1.bf16.msra.mxu0 %v1979
    %2060 = vmatprep.subr.bf16.mxu0 0
    %2061 = vmatpush1.bf16.msra.mxu0 0
    %2062 = vmatprep.subr.bf16.mxu0 0
    %2063 = vmatpush1.bf16.msra.mxu0 0
    %2064 = vmatprep.subr.bf16.mxu0 0
    %2065 = vmatpush1.bf16.msra.mxu0 0
    %2066 = vmatprep.subr.bf16.mxu0 0
    %2067 = vmatpush1.bf16.msra.mxu0 0
    %2068 = vmatprep.subr.bf16.mxu0 0
    %2069 = vmatpush1.bf16.msra.mxu0 0
    %2070 = vmatprep.subr.bf16.mxu0 0
    %2071 = vmatpush1.bf16.msra.mxu0 0
    %2072 = vmatprep.subr.bf16.mxu0 0
    %2073 = vmatpush1.bf16.msra.mxu0 0
    %2074 = vmatprep.subr.bf16.mxu0 0
    %2075 = vmatpush1.bf16.msra.mxu0 0
    %2076 = vmatprep.mubr.bf16.mxu0 0
    %2077 = vmatmul.mubr.bf16.gmra.mrb[0].mxu0 %v1811
    %v2078 = vpop.f32.mrb[0].mxu0
    %v2079 = vadd.f32 %v2039, %v2078
    %v2080 = vpop.f32.mrb[0].mxu0
    %v2081 = vpop.f32.mrb[0].mxu0
    %v2082 = vpop.f32.mrb[0].mxu0
    %2083 = vdwg.mxu0
    %v2084 = vmax.f32 %v2079, 0.0
    %v2085 = vpack.c.bf16 %v2084, %v2084
    %v2086 = vld [vmem:[#allocation9] sm:$0xff]
    %v2087 = vld [vmem:[#allocation9 + $0x8] sm:$0xf]
    %v2088 = vld [vmem:[#allocation9 + $0xc] sm:$0xff]
    %v2089 = vld [vmem:[#allocation9 + $0x14] sm:$0xf]
    %v2090 = vld [vmem:[#allocation9 + $0x18] sm:$0xff]
    %v2091 = vld [vmem:[#allocation9 + $0x20] sm:$0xf]
    %v2092 = vld [vmem:[#allocation9 + $0x24] sm:$0xff]
    %v2093 = vld [vmem:[#allocation9 + $0x2c] sm:$0xf]
    %v2094 = vld [vmem:[#allocation9 + $0x30] sm:$0xff]
    %v2095 = vld [vmem:[#allocation9 + $0x38] sm:$0xf]
    %v2096 = vld [vmem:[#allocation9 + $0x3c] sm:$0xff]
    %v2097 = vld [vmem:[#allocation9 + $0x44] sm:$0xf]
    %v2098 = vld [vmem:[#allocation9 + $0x48] sm:$0xff]
    %v2099 = vld [vmem:[#allocation9 + $0x50] sm:$0xf]
    %v2100 = vld [vmem:[#allocation9 + $0x54] sm:$0xff]
    %v2101 = vld [vmem:[#allocation9 + $0x5c] sm:$0xf]
    %v2102 = vld [vmem:[#allocation9 + $0x60] sm:$0xff]
    %v2103 = vld [vmem:[#allocation9 + $0x68] sm:$0xf]
    %v2104 = vld [vmem:[#allocation9 + $0x6c] sm:$0xff]
    %v2105 = vld [vmem:[#allocation9 + $0x74] sm:$0xf]
    %v2106 = vld [vmem:[#allocation9 + $0x78] sm:$0xff]
    %v2107 = vld [vmem:[#allocation9 + $0x80] sm:$0xf]
    %v2108 = vld [vmem:[#allocation9 + $0x84] sm:$0xff]
    %v2109 = vld [vmem:[#allocation9 + $0x8c] sm:$0xf]
    %v2110 = vld [vmem:[#allocation9 + $0x90] sm:$0xff]
    %v2111 = vld [vmem:[#allocation9 + $0x98] sm:$0xf]
    %v2112 = vld [vmem:[#allocation9 + $0x9c] sm:$0xff]
    %v2113 = vld [vmem:[#allocation9 + $0xa4] sm:$0xf]
    %v2114 = vld [vmem:[#allocation9 + $0xa8] sm:$0xff]
    %v2115 = vld [vmem:[#allocation9 + $0xb0] sm:$0xf]
    %v2116 = vld [vmem:[#allocation9 + $0xb4] sm:$0xff]
    %v2117 = vld [vmem:[#allocation9 + $0xbc] sm:$0xf]
    %v2150 = vunpack.c.l.b16 %v2086
    %v2151 = vunpack.c.h.b16 %v2086
    %v2152 = vunpack.c.l.b16 %v2087
    %v2153 = vunpack.c.l.b16 %v2088
    %v2154 = vunpack.c.h.b16 %v2088
    %v2155 = vunpack.c.l.b16 %v2089
    %v2156 = vunpack.c.l.b16 %v2090
    %v2157 = vunpack.c.h.b16 %v2090
    %v2158 = vunpack.c.l.b16 %v2091
    %v2159 = vunpack.c.l.b16 %v2092
    %v2160 = vunpack.c.h.b16 %v2092
    %v2161 = vunpack.c.l.b16 %v2093
    %v2162 = vunpack.c.l.b16 %v2094
    %v2163 = vunpack.c.h.b16 %v2094
    %v2164 = vunpack.c.l.b16 %v2095
    %v2165 = vunpack.c.l.b16 %v2096
    %v2166 = vunpack.c.h.b16 %v2096
    %v2167 = vunpack.c.l.b16 %v2097
    %v2168 = vunpack.c.l.b16 %v2098
    %v2169 = vunpack.c.h.b16 %v2098
    %v2170 = vunpack.c.l.b16 %v2099
    %v2171 = vunpack.c.l.b16 %v2100
    %v2172 = vunpack.c.h.b16 %v2100
    %v2173 = vunpack.c.l.b16 %v2101
    %v2174 = vunpack.c.l.b16 %v2102
    %v2175 = vunpack.c.h.b16 %v2102
    %v2176 = vunpack.c.l.b16 %v2103
    %v2177 = vunpack.c.l.b16 %v2104
    %v2178 = vunpack.c.h.b16 %v2104
    %v2179 = vunpack.c.l.b16 %v2105
    %v2180 = vunpack.c.l.b16 %v2106
    %v2181 = vunpack.c.h.b16 %v2106
    %v2182 = vunpack.c.l.b16 %v2107
    %v2183 = vunpack.c.l.b16 %v2108
    %v2184 = vunpack.c.h.b16 %v2108
    %v2185 = vunpack.c.l.b16 %v2109
    %v2186 = vunpack.c.l.b16 %v2110
    %v2187 = vunpack.c.h.b16 %v2110
    %v2188 = vunpack.c.l.b16 %v2111
    %v2189 = vunpack.c.l.b16 %v2112
    %v2190 = vunpack.c.h.b16 %v2112
    %v2191 = vunpack.c.l.b16 %v2113
    %v2192 = vunpack.c.l.b16 %v2114
    %v2193 = vunpack.c.h.b16 %v2114
    %v2194 = vunpack.c.l.b16 %v2115
    %v2195 = vunpack.c.l.b16 %v2116
    %v2196 = vunpack.c.h.b16 %v2116
    %v2197 = vunpack.c.l.b16 %v2117
    %v2198 = vpack.c.b16 %v2153, %v2150
    %v2199 = vpack.c.b16 %v2154, %v2151
    %v2200 = vpack.c.b16 %v2155, %v2152
    %v2201 = vpack.c.b16 %v2159, %v2156
    %v2202 = vpack.c.b16 %v2160, %v2157
    %v2203 = vpack.c.b16 %v2161, %v2158
    %v2204 = vpack.c.b16 %v2165, %v2162
    %v2205 = vpack.c.b16 %v2166, %v2163
    %v2206 = vpack.c.b16 %v2167, %v2164
    %v2207 = vpack.c.b16 %v2171, %v2168
    %v2208 = vpack.c.b16 %v2172, %v2169
    %v2209 = vpack.c.b16 %v2173, %v2170
    %v2210 = vpack.c.b16 %v2177, %v2174
    %v2211 = vpack.c.b16 %v2178, %v2175
    %v2212 = vpack.c.b16 %v2179, %v2176
    %v2213 = vpack.c.b16 %v2183, %v2180
    %v2214 = vpack.c.b16 %v2184, %v2181
    %v2215 = vpack.c.b16 %v2185, %v2182
    %v2216 = vpack.c.b16 %v2189, %v2186
    %v2217 = vpack.c.b16 %v2190, %v2187
    %v2218 = vpack.c.b16 %v2191, %v2188
    %v2219 = vpack.c.b16 %v2195, %v2192
    %v2220 = vpack.c.b16 %v2196, %v2193
    %v2221 = vpack.c.b16 %v2197, %v2194
    %2246 = vmatprep.subr.bf16.mxu0 %v2199
    %2247 = vmatpush1.bf16.msra.mxu0 %v2198
    %2248 = vmatprep.subr.bf16.mxu0 %v2202
    %2249 = vmatpush1.bf16.msra.mxu0 %v2201
    %2250 = vmatprep.subr.bf16.mxu0 %v2205
    %2251 = vmatpush1.bf16.msra.mxu0 %v2204
    %2252 = vmatprep.subr.bf16.mxu0 %v2208
    %2253 = vmatpush1.bf16.msra.mxu0 %v2207
    %2254 = vmatprep.subr.bf16.mxu0 %v2211
    %2255 = vmatpush1.bf16.msra.mxu0 %v2210
    %2256 = vmatprep.subr.bf16.mxu0 %v2214
    %2257 = vmatpush1.bf16.msra.mxu0 %v2213
    %2258 = vmatprep.subr.bf16.mxu0 %v2217
    %2259 = vmatpush1.bf16.msra.mxu0 %v2216
    %2260 = vmatprep.subr.bf16.mxu0 %v2220
    %2261 = vmatpush1.bf16.msra.mxu0 %v2219
    %2262 = vmatprep.subr.bf16.mxu0 0
    %2263 = vmatpush1.bf16.msra.mxu0 0
    %2264 = vmatprep.subr.bf16.mxu0 0
    %2265 = vmatpush1.bf16.msra.mxu0 0
    %2266 = vmatprep.subr.bf16.mxu0 0
    %2267 = vmatpush1.bf16.msra.mxu0 0
    %2268 = vmatprep.subr.bf16.mxu0 0
    %2269 = vmatpush1.bf16.msra.mxu0 0
    %2270 = vmatprep.subr.bf16.mxu0 0
    %2271 = vmatpush1.bf16.msra.mxu0 0
    %2272 = vmatprep.subr.bf16.mxu0 0
    %2273 = vmatpush1.bf16.msra.mxu0 0
    %2274 = vmatprep.subr.bf16.mxu0 0
    %2275 = vmatpush1.bf16.msra.mxu0 0
    %2276 = vmatprep.subr.bf16.mxu0 0
    %2277 = vmatpush1.bf16.msra.mxu0 0
    %2278 = vmatprep.mubr.bf16.mxu0 0
    %2279 = vmatmul.mubr.bf16.gmra.mrb[0].mxu0 %v2085
    %v2280 = vpop.f32.mrb[0].mxu0
    %v2281 = vadd.f32 0.0, %v2280
    %v2282 = vpop.f32.mrb[0].mxu0
    %v2283 = vadd.f32 0.0, %v2282
    %v2284 = vpop.f32.mrb[0].mxu0
    %v2285 = vpop.f32.mrb[0].mxu0
    %2286 = vdwg.mxu0
    %2287 = vmatprep.subr.bf16.mxu0 0
    %2288 = vmatpush1.bf16.msra.mxu0 %v2200
    %2289 = vmatprep.subr.bf16.mxu0 0
    %2290 = vmatpush1.bf16.msra.mxu0 %v2203
    %2291 = vmatprep.subr.bf16.mxu0 0
    %2292 = vmatpush1.bf16.msra.mxu0 %v2206
    %2293 = vmatprep.subr.bf16.mxu0 0
    %2294 = vmatpush1.bf16.msra.mxu0 %v2209
    %2295 = vmatprep.subr.bf16.mxu0 0
    %2296 = vmatpush1.bf16.msra.mxu0 %v2212
    %2297 = vmatprep.subr.bf16.mxu0 0
    %2298 = vmatpush1.bf16.msra.mxu0 %v2215
    %2299 = vmatprep.subr.bf16.mxu0 0
    %2300 = vmatpush1.bf16.msra.mxu0 %v2218
    %2301 = vmatprep.subr.bf16.mxu0 0
    %2302 = vmatpush1.bf16.msra.mxu0 %v2221
    %2303 = vmatprep.subr.bf16.mxu0 0
    %2304 = vmatpush1.bf16.msra.mxu0 0
    %2305 = vmatprep.subr.bf16.mxu0 0
    %2306 = vmatpush1.bf16.msra.mxu0 0
    %2307 = vmatprep.subr.bf16.mxu0 0
    %2308 = vmatpush1.bf16.msra.mxu0 0
    %2309 = vmatprep.subr.bf16.mxu0 0
    %2310 = vmatpush1.bf16.msra.mxu0 0
    %2311 = vmatprep.subr.bf16.mxu0 0
    %2312 = vmatpush1.bf16.msra.mxu0 0
    %2313 = vmatprep.subr.bf16.mxu0 0
    %2314 = vmatpush1.bf16.msra.mxu0 0
    %2315 = vmatprep.subr.bf16.mxu0 0
    %2316 = vmatpush1.bf16.msra.mxu0 0
    %2317 = vmatprep.subr.bf16.mxu0 0
    %2318 = vmatpush1.bf16.msra.mxu0 0
    %2319 = vmatprep.mubr.bf16.mxu0 0
    %2320 = vmatmul.mubr.bf16.gmra.mrb[0].mxu0 %v2085
    %v2321 = vpop.f32.mrb[0].mxu0
    %v2322 = vadd.f32 0.0, %v2321
    %v2323 = vpop.f32.mrb[0].mxu0
    %v2324 = vpop.f32.mrb[0].mxu0
    %v2325 = vpop.f32.mrb[0].mxu0
    %2326 = vdwg.mxu0
    %v2330 = vrot.slane %v2281, 2
    %v2331 = vrot.slane %v2283, 2
    %v2332 = vrot.slane %v2322, 2
    %v2336 = vadd.f32 %v2281, %v2330
    %v2337 = vadd.f32 %v2283, %v2331
    %v2338 = vadd.f32 %v2322, %v2332
    %v2339 = vxor.u32 %v2336, 2147483648
    %v2340 = vxor.u32 %v2337, 2147483648
    %v2341 = vxor.u32 %v2338, 2147483648
    %v2342 = vmul.f32 %v2339, 1.442695
    %v2343 = vpow.pop %v2342
    %v2344 = vmul.f32 %v2340, 1.442695
    %v2345 = vpow.pop %v2344
    %v2346 = vmul.f32 %v2341, 1.442695
    %v2347 = vpow.pop %v2346
    %v2348 = vadd.f32 %v2343, 1.0
    %v2349 = vadd.f32 %v2345, 1.0
    %v2350 = vadd.f32 %v2347, 1.0
    %v2351 = vrcp.pop %v2348
    %v2352 = vmul.f32 1.0, %v2351
    %v2353 = vrcp.pop %v2349
    %v2354 = vmul.f32 1.0, %v2353
    %v2355 = vrcp.pop %v2350
    %v2356 = vmul.f32 1.0, %v2355
    %v2360 = vcombine.low %v2352, %v2354
    %v2362 = vunpack.c.l.s4 1966171168
    %v2363 = vunpack.c.0.s8 %v2362
    %v2364 = vlaneseq
    %v2365 = vshrl.u32 %v2364, 7
    %v2366 = vsub.s32 %v2363, %v2365
    %v2367 = vrot.slane %v2360, %v2366
    %v2369 = vunpack.c.l.s4 1966171168
    %v2370 = vunpack.c.0.s8 %v2369
    %v2371 = vlaneseq
    %v2372 = vshrl.u32 %v2371, 7
    %v2373 = vsub.s32 %v2370, %v2372
    %v2374 = vrot.slane %v2356, %v2373
    %v2375 = vcombine.low %v2367, %v2374
    %v2376 = vcombine.high %v2367, %v2374
    %v2378 = vunpack.c.l.s4 1966171168
    %v2379 = vunpack.c.0.s8 %v2378
    %v2380 = vlaneseq
    %v2381 = vshrl.u32 %v2380, 7
    %v2382 = vsub.s32 %v2379, %v2381
    %v2383 = vrot.slane %v2375, %v2382
    %v2385 = vunpack.c.l.s4 1966171168
    %v2386 = vunpack.c.0.s8 %v2385
    %v2387 = vlaneseq
    %v2388 = vshrl.u32 %v2387, 7
    %v2389 = vsub.s32 %v2386, %v2388
    %v2390 = vrot.slane %v2376, %v2389
    %v2391 = vlaneseq
    %v2392 = vshrl.u32 %v2391, 7
    %v2393 = vsub.s32 0, %v2392
    %v2394 = vrot.slane %v2383, %v2393
    %v2395 = vlaneseq
    %v2396 = vshrl.u32 %v2395, 7
    %v2397 = vsub.s32 1, %v2396
    %v2398 = vrot.slane %v2383, %v2397
    %v2399 = vlaneseq
    %v2400 = vshrl.u32 %v2399, 7
    %v2401 = vsub.s32 2, %v2400
    %v2402 = vrot.slane %v2383, %v2401
    %v2403 = vlaneseq
    %v2404 = vshrl.u32 %v2403, 7
    %v2405 = vsub.s32 0, %v2404
    %v2406 = vrot.slane %v2390, %v2405
    %v2407 = vlaneseq
    %v2408 = vshrl.u32 %v2407, 7
    %v2409 = vsub.s32 1, %v2408
    %v2410 = vrot.slane %v2390, %v2409
    %v2411 = vlaneseq
    %v2412 = vshrl.u32 %v2411, 7
    %v2413 = vsub.s32 2, %v2412
    %v2414 = vrot.slane %v2390, %v2413
    %v2421 = vmul.f32 %v1569, %v2394
    %v2422 = vmul.f32 %v1570, %v2398
    %v2423 = vmul.f32 %v1571, %v2402
    %v2424 = vmul.f32 %v1572, %v2394
    %v2425 = vmul.f32 %v1573, %v2398
    %v2426 = vmul.f32 %v1574, %v2402
    %v2427 = vmul.f32 %v1575, %v2394
    %v2428 = vmul.f32 %v1576, %v2398
    %v2429 = vmul.f32 %v1577, %v2402
    %v2430 = vmul.f32 %v1578, %v2394
    %v2431 = vmul.f32 %v1579, %v2398
    %v2432 = vmul.f32 %v1580, %v2402
    %v2433 = vmul.f32 %v1581, %v2394
    %v2434 = vmul.f32 %v1582, %v2398
    %v2435 = vmul.f32 %v1583, %v2402
    %v2436 = vmul.f32 %v1584, %v2394
    %v2437 = vmul.f32 %v1585, %v2398
    %v2438 = vmul.f32 %v1586, %v2402
    %v2439 = vmul.f32 %v1587, %v2394
    %v2440 = vmul.f32 %v1588, %v2398
    %v2441 = vmul.f32 %v1589, %v2402
    %v2442 = vmul.f32 %v1590, %v2394
    %v2443 = vmul.f32 %v1591, %v2398
    %v2444 = vmul.f32 %v1592, %v2402
    %v2445 = vmul.f32 %v1593, %v2406
    %v2446 = vmul.f32 %v1594, %v2410
    %v2447 = vmul.f32 %v1595, %v2414
    %v2448 = vmul.f32 %v1596, %v2406
    %v2449 = vmul.f32 %v1597, %v2410
    %v2450 = vmul.f32 %v1598, %v2414
    %v2451 = vmul.f32 %v1599, %v2406
    %v2452 = vmul.f32 %v1600, %v2410
    %v2453 = vmul.f32 %v1601, %v2414
    %v2454 = vmul.f32 %v1602, %v2406
    %v2455 = vmul.f32 %v1603, %v2410
    %v2456 = vmul.f32 %v1604, %v2414
    %v2457 = vmul.f32 %v1605, %v2406
    %v2458 = vmul.f32 %v1606, %v2410
    %v2459 = vmul.f32 %v1607, %v2414
    %v2460 = vmul.f32 %v1608, %v2406
    %v2461 = vmul.f32 %v1609, %v2410
    %v2462 = vmul.f32 %v1610, %v2414
    %v2463 = vmul.f32 %v1611, %v2406
    %v2464 = vmul.f32 %v1612, %v2410
    %v2465 = vmul.f32 %v1613, %v2414
    %v2466 = vmul.f32 %v1614, %v2406
    %v2467 = vmul.f32 %v1615, %v2410
    %v2468 = vmul.f32 %v1616, %v2414
    %v2469 = vadd.f32 %v2421, %v2422
    %v2470 = vadd.f32 %v2469, %v2423
    %2471 = vadd.xlane.f32.xlu0 %v2470
    %v2472 = vpop.xlane.xlu0 %2471
    %v2473 = vadd.f32 %v2424, %v2425
    %v2474 = vadd.f32 %v2473, %v2426
    %2475 = vadd.xlane.f32.xlu0 %v2474
    %v2476 = vpop.xlane.xlu0 %2475
    %v2477 = vadd.f32 %v2427, %v2428
    %v2478 = vadd.f32 %v2477, %v2429
    %2479 = vadd.xlane.f32.xlu0 %v2478
    %v2480 = vpop.xlane.xlu0 %2479
    %v2481 = vadd.f32 %v2430, %v2431
    %v2482 = vadd.f32 %v2481, %v2432
    %2483 = vadd.xlane.f32.xlu0 %v2482
    %v2484 = vpop.xlane.xlu0 %2483
    %v2485 = vadd.f32 %v2433, %v2434
    %v2486 = vadd.f32 %v2485, %v2435
    %2487 = vadd.xlane.f32.xlu0 %v2486
    %v2488 = vpop.xlane.xlu0 %2487
    %v2489 = vadd.f32 %v2436, %v2437
    %v2490 = vadd.f32 %v2489, %v2438
    %2491 = vadd.xlane.f32.xlu0 %v2490
    %v2492 = vpop.xlane.xlu0 %2491
    %v2493 = vadd.f32 %v2439, %v2440
    %v2494 = vadd.f32 %v2493, %v2441
    %2495 = vadd.xlane.f32.xlu0 %v2494
    %v2496 = vpop.xlane.xlu0 %2495
    %v2497 = vadd.f32 %v2442, %v2443
    %v2498 = vadd.f32 %v2497, %v2444
    %2499 = vadd.xlane.f32.xlu0 %v2498
    %v2500 = vpop.xlane.xlu0 %2499
    %v2501 = vadd.f32 %v2445, %v2446
    %v2502 = vadd.f32 %v2501, %v2447
    %2503 = vadd.xlane.f32.xlu0 %v2502
    %v2504 = vpop.xlane.xlu0 %2503
    %v2505 = vadd.f32 %v2448, %v2449
    %v2506 = vadd.f32 %v2505, %v2450
    %2507 = vadd.xlane.f32.xlu0 %v2506
    %v2508 = vpop.xlane.xlu0 %2507
    %v2509 = vadd.f32 %v2451, %v2452
    %v2510 = vadd.f32 %v2509, %v2453
    %2511 = vadd.xlane.f32.xlu0 %v2510
    %v2512 = vpop.xlane.xlu0 %2511
    %v2513 = vadd.f32 %v2454, %v2455
    %v2514 = vadd.f32 %v2513, %v2456
    %2515 = vadd.xlane.f32.xlu0 %v2514
    %v2516 = vpop.xlane.xlu0 %2515
    %v2517 = vadd.f32 %v2457, %v2458
    %v2518 = vadd.f32 %v2517, %v2459
    %2519 = vadd.xlane.f32.xlu0 %v2518
    %v2520 = vpop.xlane.xlu0 %2519
    %v2521 = vadd.f32 %v2460, %v2461
    %v2522 = vadd.f32 %v2521, %v2462
    %2523 = vadd.xlane.f32.xlu0 %v2522
    %v2524 = vpop.xlane.xlu0 %2523
    %v2525 = vadd.f32 %v2463, %v2464
    %v2526 = vadd.f32 %v2525, %v2465
    %2527 = vadd.xlane.f32.xlu0 %v2526
    %v2528 = vpop.xlane.xlu0 %2527
    %v2529 = vadd.f32 %v2466, %v2467
    %v2530 = vadd.f32 %v2529, %v2468
    %2531 = vadd.xlane.f32.xlu0 %v2530
    %v2532 = vpop.xlane.xlu0 %2531
    %v2533 = vmul.f32 %v2472, 0.0029761905
    %v2534 = vmul.f32 %v2476, 0.0029761905
    %v2535 = vmul.f32 %v2480, 0.0029761905
    %v2536 = vmul.f32 %v2484, 0.0029761905
    %v2537 = vmul.f32 %v2488, 0.0029761905
    %v2538 = vmul.f32 %v2492, 0.0029761905
    %v2539 = vmul.f32 %v2496, 0.0029761905
    %v2540 = vmul.f32 %v2500, 0.0029761905
    %v2541 = vmul.f32 %v2504, 0.0029761905
    %v2542 = vmul.f32 %v2508, 0.0029761905
    %v2543 = vmul.f32 %v2512, 0.0029761905
    %v2544 = vmul.f32 %v2516, 0.0029761905
    %v2545 = vmul.f32 %v2520, 0.0029761905
    %v2546 = vmul.f32 %v2524, 0.0029761905
    %v2547 = vmul.f32 %v2528, 0.0029761905
    %v2548 = vmul.f32 %v2532, 0.0029761905
    %v2549 = vmax.f32 %v2421, %v2422
    %v2550 = vmax.f32 %v2549, %v2423
    %2551 = vmax.xlane.f32.xlu0 %v2550
    %v2552 = vpop.xlane.xlu0 %2551
    %v2553 = vmax.f32 %v2424, %v2425
    %v2554 = vmax.f32 %v2553, %v2426
    %2555 = vmax.xlane.f32.xlu0 %v2554
    %v2556 = vpop.xlane.xlu0 %2555
    %v2557 = vmax.f32 %v2427, %v2428
    %v2558 = vmax.f32 %v2557, %v2429
    %2559 = vmax.xlane.f32.xlu0 %v2558
    %v2560 = vpop.xlane.xlu0 %2559
    %v2561 = vmax.f32 %v2430, %v2431
    %v2562 = vmax.f32 %v2561, %v2432
    %2563 = vmax.xlane.f32.xlu0 %v2562
    %v2564 = vpop.xlane.xlu0 %2563
    %v2565 = vmax.f32 %v2433, %v2434
    %v2566 = vmax.f32 %v2565, %v2435
    %2567 = vmax.xlane.f32.xlu0 %v2566
    %v2568 = vpop.xlane.xlu0 %2567
    %v2569 = vmax.f32 %v2436, %v2437
    %v2570 = vmax.f32 %v2569, %v2438
    %2571 = vmax.xlane.f32.xlu0 %v2570
    %v2572 = vpop.xlane.xlu0 %2571
    %v2573 = vmax.f32 %v2439, %v2440
    %v2574 = vmax.f32 %v2573, %v2441
    %2575 = vmax.xlane.f32.xlu0 %v2574
    %v2576 = vpop.xlane.xlu0 %2575
    %v2577 = vmax.f32 %v2442, %v2443
    %v2578 = vmax.f32 %v2577, %v2444
    %2579 = vmax.xlane.f32.xlu0 %v2578
    %v2580 = vpop.xlane.xlu0 %2579
    %v2581 = vmax.f32 %v2445, %v2446
    %v2582 = vmax.f32 %v2581, %v2447
    %2583 = vmax.xlane.f32.xlu0 %v2582
    %v2584 = vpop.xlane.xlu0 %2583
    %v2585 = vmax.f32 %v2448, %v2449
    %v2586 = vmax.f32 %v2585, %v2450
    %2587 = vmax.xlane.f32.xlu0 %v2586
    %v2588 = vpop.xlane.xlu0 %2587
    %v2589 = vmax.f32 %v2451, %v2452
    %v2590 = vmax.f32 %v2589, %v2453
    %2591 = vmax.xlane.f32.xlu0 %v2590
    %v2592 = vpop.xlane.xlu0 %2591
    %v2593 = vmax.f32 %v2454, %v2455
    %v2594 = vmax.f32 %v2593, %v2456
    %2595 = vmax.xlane.f32.xlu0 %v2594
    %v2596 = vpop.xlane.xlu0 %2595
    %v2597 = vmax.f32 %v2457, %v2458
    %v2598 = vmax.f32 %v2597, %v2459
    %2599 = vmax.xlane.f32.xlu0 %v2598
    %v2600 = vpop.xlane.xlu0 %2599
    %v2601 = vmax.f32 %v2460, %v2461
    %v2602 = vmax.f32 %v2601, %v2462
    %2603 = vmax.xlane.f32.xlu0 %v2602
    %v2604 = vpop.xlane.xlu0 %2603
    %v2605 = vmax.f32 %v2463, %v2464
    %v2606 = vmax.f32 %v2605, %v2465
    %2607 = vmax.xlane.f32.xlu0 %v2606
    %v2608 = vpop.xlane.xlu0 %2607
    %v2609 = vmax.f32 %v2466, %v2467
    %v2610 = vmax.f32 %v2609, %v2468
    %2611 = vmax.xlane.f32.xlu0 %v2610
    %v2612 = vpop.xlane.xlu0 %2611
    %vm2613 = vcmask 108544
    %2614 = vst.msk [vmem:[#allocation2] sm:$0x7] %vm2613, 0.0
    %2615 = vst.msk [vmem:[#allocation2 + $0x10] sm:$0x7] %vm2613, 0.0
    %2616 = vst.msk [vmem:[#allocation2 + $0x20] sm:$0x7] %vm2613, 0.0
    %2617 = vst.msk [vmem:[#allocation2 + $0x30] sm:$0x7] %vm2613, 0.0
    %2618 = vst.msk [vmem:[#allocation2 + $0xb] sm:$0x7] %vm2613, 0.0
    %2619 = vst.msk [vmem:[#allocation2 + $0x1b] sm:$0x7] %vm2613, 0.0
    %2620 = vst.msk [vmem:[#allocation2 + $0x2b] sm:$0x7] %vm2613, 0.0
    %2621 = vst.msk [vmem:[#allocation2 + $0x3b] sm:$0x7] %vm2613, 0.0
    %vm2622 = vcmask 23552
    %2623 = vst.msk [vmem:[#allocation2 + $0x3] sm:$0xff] %vm2622, 0.0
    %2624 = vst.msk [vmem:[#allocation2 + $0x13] sm:$0xff] %vm2622, 0.0
    %2625 = vst.msk [vmem:[#allocation2 + $0x23] sm:$0xff] %vm2622, 0.0
    %2626 = vst.msk [vmem:[#allocation2 + $0x33] sm:$0xff] %vm2622, 0.0
    %vm2627 = vcmask 113752
    %2628 = vst.msk [vmem:[#allocation2 + $0x3] sm:$0xff] %vm2627, 0.0
    %2629 = vst.msk [vmem:[#allocation2 + $0x13] sm:$0xff] %vm2627, 0.0
    %2630 = vst.msk [vmem:[#allocation2 + $0x23] sm:$0xff] %vm2627, 0.0
    %2631 = vst.msk [vmem:[#allocation2 + $0x33] sm:$0xff] %vm2627, 0.0
    %v2648 = vlaneseq
    %v2649 = vand.u32 %v2648, 127
    %v2650 = vadd.s32 %v2649, 4294967293
    %v2651 = vlaneseq
    %v2652 = vshrl.u32 %v2651, 7
    %v2653 = vsub.s32 %v2650, %v2652
    %v2654 = vrot.slane %v2533, %v2653
    %v2655 = vlaneseq
    %v2656 = vshrl.u32 %v2655, 7
    %v2657 = vsub.s32 %v2650, %v2656
    %v2658 = vrot.slane %v2534, %v2657
    %v2659 = vlaneseq
    %v2660 = vshrl.u32 %v2659, 7
    %v2661 = vsub.s32 %v2650, %v2660
    %v2662 = vrot.slane %v2535, %v2661
    %v2663 = vlaneseq
    %v2664 = vshrl.u32 %v2663, 7
    %v2665 = vsub.s32 %v2650, %v2664
    %v2666 = vrot.slane %v2536, %v2665
    %v2667 = vlaneseq
    %v2668 = vshrl.u32 %v2667, 7
    %v2669 = vsub.s32 %v2650, %v2668
    %v2670 = vrot.slane %v2537, %v2669
    %v2671 = vlaneseq
    %v2672 = vshrl.u32 %v2671, 7
    %v2673 = vsub.s32 %v2650, %v2672
    %v2674 = vrot.slane %v2538, %v2673
    %v2675 = vlaneseq
    %v2676 = vshrl.u32 %v2675, 7
    %v2677 = vsub.s32 %v2650, %v2676
    %v2678 = vrot.slane %v2539, %v2677
    %v2679 = vlaneseq
    %v2680 = vshrl.u32 %v2679, 7
    %v2681 = vsub.s32 %v2650, %v2680
    %v2682 = vrot.slane %v2540, %v2681
    %v2683 = vlaneseq
    %v2684 = vshrl.u32 %v2683, 7
    %v2685 = vsub.s32 %v2650, %v2684
    %v2686 = vrot.slane %v2541, %v2685
    %v2687 = vlaneseq
    %v2688 = vshrl.u32 %v2687, 7
    %v2689 = vsub.s32 %v2650, %v2688
    %v2690 = vrot.slane %v2542, %v2689
    %v2691 = vlaneseq
    %v2692 = vshrl.u32 %v2691, 7
    %v2693 = vsub.s32 %v2650, %v2692
    %v2694 = vrot.slane %v2543, %v2693
    %v2695 = vlaneseq
    %v2696 = vshrl.u32 %v2695, 7
    %v2697 = vsub.s32 %v2650, %v2696
    %v2698 = vrot.slane %v2544, %v2697
    %v2699 = vlaneseq
    %v2700 = vshrl.u32 %v2699, 7
    %v2701 = vsub.s32 %v2650, %v2700
    %v2702 = vrot.slane %v2545, %v2701
    %v2703 = vlaneseq
    %v2704 = vshrl.u32 %v2703, 7
    %v2705 = vsub.s32 %v2650, %v2704
    %v2706 = vrot.slane %v2546, %v2705
    %v2707 = vlaneseq
    %v2708 = vshrl.u32 %v2707, 7
    %v2709 = vsub.s32 %v2650, %v2708
    %v2710 = vrot.slane %v2547, %v2709
    %v2711 = vlaneseq
    %v2712 = vshrl.u32 %v2711, 7
    %v2713 = vsub.s32 %v2650, %v2712
    %v2714 = vrot.slane %v2548, %v2713
    %v2715 = vsel %vm1785, %v2658, %v2654
    %vm2716 = vcmask 1042434
    %v2717 = vsel %vm2716, %v2662, %v2715
    %v2718 = vsel %vm1798, %v2666, %v2717
    %vm2719 = vcmask 1044484
    %v2720 = vsel %vm2719, %v2670, %v2718
    %vm2721 = vcmask 1045509
    %v2722 = vsel %vm2721, %v2674, %v2720
    %vm2723 = vcmask 1046534
    %v2724 = vsel %vm2723, %v2678, %v2722
    %vm2725 = vcmask 1047559
    %v2726 = vsel %vm2725, %v2682, %v2724
    %v2727 = vsel %vm1785, %v2690, %v2686
    %v2728 = vsel %vm2716, %v2694, %v2727
    %v2729 = vsel %vm1798, %v2698, %v2728
    %v2730 = vsel %vm2719, %v2702, %v2729
    %v2731 = vsel %vm2721, %v2706, %v2730
    %v2732 = vsel %vm2723, %v2710, %v2731
    %v2733 = vsel %vm2725, %v2714, %v2732
    %vm2736 = vcmask 89112
    %2737 = vst.msk [vmem:[#allocation2 + $0x3] sm:$0xff] %vm2736, %v2726
    %2738 = vst.msk [vmem:[#allocation2 + $0x13] sm:$0xff] %vm2736, %v2733
    %v2755 = vlaneseq
    %v2756 = vshrl.u32 %v2755, 7
    %v2757 = vsub.s32 %v2650, %v2756
    %v2758 = vrot.slane %v2552, %v2757
    %v2759 = vlaneseq
    %v2760 = vshrl.u32 %v2759, 7
    %v2761 = vsub.s32 %v2650, %v2760
    %v2762 = vrot.slane %v2556, %v2761
    %v2763 = vlaneseq
    %v2764 = vshrl.u32 %v2763, 7
    %v2765 = vsub.s32 %v2650, %v2764
    %v2766 = vrot.slane %v2560, %v2765
    %v2767 = vlaneseq
    %v2768 = vshrl.u32 %v2767, 7
    %v2769 = vsub.s32 %v2650, %v2768
    %v2770 = vrot.slane %v2564, %v2769
    %v2771 = vlaneseq
    %v2772 = vshrl.u32 %v2771, 7
    %v2773 = vsub.s32 %v2650, %v2772
    %v2774 = vrot.slane %v2568, %v2773
    %v2775 = vlaneseq
    %v2776 = vshrl.u32 %v2775, 7
    %v2777 = vsub.s32 %v2650, %v2776
    %v2778 = vrot.slane %v2572, %v2777
    %v2779 = vlaneseq
    %v2780 = vshrl.u32 %v2779, 7
    %v2781 = vsub.s32 %v2650, %v2780
    %v2782 = vrot.slane %v2576, %v2781
    %v2783 = vlaneseq
    %v2784 = vshrl.u32 %v2783, 7
    %v2785 = vsub.s32 %v2650, %v2784
    %v2786 = vrot.slane %v2580, %v2785
    %v2787 = vlaneseq
    %v2788 = vshrl.u32 %v2787, 7
    %v2789 = vsub.s32 %v2650, %v2788
    %v2790 = vrot.slane %v2584, %v2789
    %v2791 = vlaneseq
    %v2792 = vshrl.u32 %v2791, 7
    %v2793 = vsub.s32 %v2650, %v2792
    %v2794 = vrot.slane %v2588, %v2793
    %v2795 = vlaneseq
    %v2796 = vshrl.u32 %v2795, 7
    %v2797 = vsub.s32 %v2650, %v2796
    %v2798 = vrot.slane %v2592, %v2797
    %v2799 = vlaneseq
    %v2800 = vshrl.u32 %v2799, 7
    %v2801 = vsub.s32 %v2650, %v2800
    %v2802 = vrot.slane %v2596, %v2801
    %v2803 = vlaneseq
    %v2804 = vshrl.u32 %v2803, 7
    %v2805 = vsub.s32 %v2650, %v2804
    %v2806 = vrot.slane %v2600, %v2805
    %v2807 = vlaneseq
    %v2808 = vshrl.u32 %v2807, 7
    %v2809 = vsub.s32 %v2650, %v2808
    %v2810 = vrot.slane %v2604, %v2809
    %v2811 = vlaneseq
    %v2812 = vshrl.u32 %v2811, 7
    %v2813 = vsub.s32 %v2650, %v2812
    %v2814 = vrot.slane %v2608, %v2813
    %v2815 = vlaneseq
    %v2816 = vshrl.u32 %v2815, 7
    %v2817 = vsub.s32 %v2650, %v2816
    %v2818 = vrot.slane %v2612, %v2817
    %v2819 = vsel %vm1785, %v2762, %v2758
    %v2820 = vsel %vm2716, %v2766, %v2819
    %v2821 = vsel %vm1798, %v2770, %v2820
    %v2822 = vsel %vm2719, %v2774, %v2821
    %v2823 = vsel %vm2721, %v2778, %v2822
    %v2824 = vsel %vm2723, %v2782, %v2823
    %v2825 = vsel %vm2725, %v2786, %v2824
    %v2826 = vsel %vm1785, %v2794, %v2790
    %v2827 = vsel %vm2716, %v2798, %v2826
    %v2828 = vsel %vm1798, %v2802, %v2827
    %v2829 = vsel %vm2719, %v2806, %v2828
    %v2830 = vsel %vm2721, %v2810, %v2829
    %v2831 = vsel %vm2723, %v2814, %v2830
    %v2832 = vsel %vm2725, %v2818, %v2831
    %s2835 = scalar_lea.vmem [#allocation2], 32
    %2836 = vst.msk [vmem:[%s2835 + $0x3] sm:$0xff] %vm2736, %v2825
    %2837 = vst.msk [vmem:[%s2835 + $0x13] sm:$0xff] %vm2736, %v2832
    %v2838 = vld [vmem:[#allocation2] sm:$0xff]
    %v2839 = vld [vmem:[#allocation2 + $0x10] sm:$0xff]
    %v2840 = vld [vmem:[#allocation2 + $0x20] sm:$0xff]
    %v2841 = vld [vmem:[#allocation2 + $0x30] sm:$0xff]
    %s2842 = sld [smem:[#allocation11]]
    %s2843 = sld [smem:[#allocation11 + $0x31]]
    %v2844 = vstv %s2842
    %v2845 = vmul.f32 %v2844, %v2838
    %v2846 = vmul.f32 %v2844, %v2839
    %v2847 = vadd.f32 %v2845, 0.0
    %v2848 = vadd.f32 %v2846, 0.0
    %v2849 = vstv %s2843
    %v2850 = vmul.f32 %v2849, %v2840
    %v2851 = vmul.f32 %v2849, %v2841
    %v2852 = vadd.f32 %v2850, 0.0
    %v2853 = vadd.f32 %v2851, 0.0
    %s2854 = sld [smem:[#allocation11 + $0x1]]
    %s2855 = sld [smem:[#allocation11 + $0x32]]
    %v2856 = vstv %s2854
    %v2857 = vmul.f32 %v2856, %v2838
    %v2858 = vmul.f32 %v2856, %v2839
    %2861 = vrot.lane.b32.xlu0 %v2857, 127
    %v2862 = vpop.permute.xlu0 %2861
    %2863 = vrot.lane.b32.xlu0 %v2858, 127
    %v2864 = vpop.permute.xlu0 %2863
    %v2867 = vadd.f32 %v2847, %v2862
    %v2868 = vadd.f32 %v2848, %v2864
    %v2869 = vstv %s2855
    %v2870 = vmul.f32 %v2869, %v2840
    %v2871 = vmul.f32 %v2869, %v2841
    %2874 = vrot.lane.b32.xlu0 %v2870, 127
    %v2875 = vpop.permute.xlu0 %2874
    %2876 = vrot.lane.b32.xlu0 %v2871, 127
    %v2877 = vpop.permute.xlu0 %2876
    %v2880 = vadd.f32 %v2852, %v2875
    %v2881 = vadd.f32 %v2853, %v2877
    %s2882 = sld [smem:[#allocation11 + $0x2]]
    %s2883 = sld [smem:[#allocation11 + $0x33]]
    %v2884 = vstv %s2882
    %v2885 = vmul.f32 %v2884, %v2838
    %v2886 = vmul.f32 %v2884, %v2839
    %2889 = vrot.lane.b32.xlu0 %v2885, 126
    %v2890 = vpop.permute.xlu0 %2889
    %2891 = vrot.lane.b32.xlu0 %v2886, 126
    %v2892 = vpop.permute.xlu0 %2891
    %v2895 = vadd.f32 %v2867, %v2890
    %v2896 = vadd.f32 %v2868, %v2892
    %v2897 = vstv %s2883
    %v2898 = vmul.f32 %v2897, %v2840
    %v2899 = vmul.f32 %v2897, %v2841
    %2902 = vrot.lane.b32.xlu0 %v2898, 126
    %v2903 = vpop.permute.xlu0 %2902
    %2904 = vrot.lane.b32.xlu0 %v2899, 126
    %v2905 = vpop.permute.xlu0 %2904
    %v2908 = vadd.f32 %v2880, %v2903
    %v2909 = vadd.f32 %v2881, %v2905
    %s2910 = sld [smem:[#allocation11 + $0x3]]
    %s2911 = sld [smem:[#allocation11 + $0x34]]
    %v2912 = vstv %s2910
    %v2913 = vmul.f32 %v2912, %v2838
    %v2914 = vmul.f32 %v2912, %v2839
    %2917 = vrot.lane.b32.xlu0 %v2913, 125
    %v2918 = vpop.permute.xlu0 %2917
    %2919 = vrot.lane.b32.xlu0 %v2914, 125
    %v2920 = vpop.permute.xlu0 %2919
    %v2923 = vadd.f32 %v2895, %v2918
    %v2924 = vadd.f32 %v2896, %v2920
    %v2925 = vstv %s2911
    %v2926 = vmul.f32 %v2925, %v2840
    %v2927 = vmul.f32 %v2925, %v2841
    %2930 = vrot.lane.b32.xlu0 %v2926, 125
    %v2931 = vpop.permute.xlu0 %2930
    %2932 = vrot.lane.b32.xlu0 %v2927, 125
    %v2933 = vpop.permute.xlu0 %2932
    %v2936 = vadd.f32 %v2908, %v2931
    %v2937 = vadd.f32 %v2909, %v2933
    %s2938 = sld [smem:[#allocation11 + $0x4]]
    %s2939 = sld [smem:[#allocation11 + $0x35]]
    %v2940 = vstv %s2938
    %v2941 = vmul.f32 %v2940, %v2838
    %v2942 = vmul.f32 %v2940, %v2839
    %2945 = vrot.lane.b32.xlu0 %v2941, 124
    %v2946 = vpop.permute.xlu0 %2945
    %2947 = vrot.lane.b32.xlu0 %v2942, 124
    %v2948 = vpop.permute.xlu0 %2947
    %v2951 = vadd.f32 %v2923, %v2946
    %v2952 = vadd.f32 %v2924, %v2948
    %v2953 = vstv %s2939
    %v2954 = vmul.f32 %v2953, %v2840
    %v2955 = vmul.f32 %v2953, %v2841
    %2958 = vrot.lane.b32.xlu0 %v2954, 124
    %v2959 = vpop.permute.xlu0 %2958
    %2960 = vrot.lane.b32.xlu0 %v2955, 124
    %v2961 = vpop.permute.xlu0 %2960
    %v2964 = vadd.f32 %v2936, %v2959
    %v2965 = vadd.f32 %v2937, %v2961
    %s2966 = sld [smem:[#allocation11 + $0x5]]
    %s2967 = sld [smem:[#allocation11 + $0x36]]
    %v2968 = vstv %s2966
    %v2969 = vmul.f32 %v2968, %v2838
    %v2970 = vmul.f32 %v2968, %v2839
    %2973 = vrot.lane.b32.xlu0 %v2969, 123
    %v2974 = vpop.permute.xlu0 %2973
    %2975 = vrot.lane.b32.xlu0 %v2970, 123
    %v2976 = vpop.permute.xlu0 %2975
    %v2979 = vadd.f32 %v2951, %v2974
    %v2980 = vadd.f32 %v2952, %v2976
    %v2981 = vstv %s2967
    %v2982 = vmul.f32 %v2981, %v2840
    %v2983 = vmul.f32 %v2981, %v2841
    %2986 = vrot.lane.b32.xlu0 %v2982, 123
    %v2987 = vpop.permute.xlu0 %2986
    %2988 = vrot.lane.b32.xlu0 %v2983, 123
    %v2989 = vpop.permute.xlu0 %2988
    %v2992 = vadd.f32 %v2964, %v2987
    %v2993 = vadd.f32 %v2965, %v2989
    %s2994 = sld [smem:[#allocation11 + $0x6]]
    %s2995 = sld [smem:[#allocation11 + $0x37]]
    %v2996 = vstv %s2994
    %v2997 = vmul.f32 %v2996, %v2838
    %v2998 = vmul.f32 %v2996, %v2839
    %3001 = vrot.lane.b32.xlu0 %v2997, 122
    %v3002 = vpop.permute.xlu0 %3001
    %3003 = vrot.lane.b32.xlu0 %v2998, 122
    %v3004 = vpop.permute.xlu0 %3003
    %v3007 = vadd.f32 %v2979, %v3002
    %v3008 = vadd.f32 %v2980, %v3004
    %v3009 = vstv %s2995
    %v3010 = vmul.f32 %v3009, %v2840
    %v3011 = vmul.f32 %v3009, %v2841
    %3014 = vrot.lane.b32.xlu0 %v3010, 122
    %v3015 = vpop.permute.xlu0 %3014
    %3016 = vrot.lane.b32.xlu0 %v3011, 122
    %v3017 = vpop.permute.xlu0 %3016
    %v3020 = vadd.f32 %v2992, %v3015
    %v3021 = vadd.f32 %v2993, %v3017
    %v3022 = vld [vmem:[#allocation2 + $0x1] sm:$0xff]
    %v3023 = vld [vmem:[#allocation2 + $0x11] sm:$0xff]
    %v3024 = vld [vmem:[#allocation2 + $0x21] sm:$0xff]
    %v3025 = vld [vmem:[#allocation2 + $0x31] sm:$0xff]
    %s3026 = sld [smem:[#allocation11 + $0x7]]
    %s3027 = sld [smem:[#allocation11 + $0x38]]
    %v3028 = vstv %s3026
    %v3029 = vmul.f32 %v3028, %v3022
    %v3030 = vmul.f32 %v3028, %v3023
    %v3031 = vadd.f32 %v3007, %v3029
    %v3032 = vadd.f32 %v3008, %v3030
    %v3033 = vstv %s3027
    %v3034 = vmul.f32 %v3033, %v3024
    %v3035 = vmul.f32 %v3033, %v3025
    %v3036 = vadd.f32 %v3020, %v3034
    %v3037 = vadd.f32 %v3021, %v3035
    %s3038 = sld [smem:[#allocation11 + $0x8]]
    %s3039 = sld [smem:[#allocation11 + $0x39]]
    %v3040 = vstv %s3038
    %v3041 = vmul.f32 %v3040, %v3022
    %v3042 = vmul.f32 %v3040, %v3023
    %3045 = vrot.lane.b32.xlu0 %v3041, 127
    %v3046 = vpop.permute.xlu0 %3045
    %3047 = vrot.lane.b32.xlu0 %v3042, 127
    %v3048 = vpop.permute.xlu0 %3047
    %v3051 = vadd.f32 %v3031, %v3046
    %v3052 = vadd.f32 %v3032, %v3048
    %v3053 = vstv %s3039
    %v3054 = vmul.f32 %v3053, %v3024
    %v3055 = vmul.f32 %v3053, %v3025
    %3058 = vrot.lane.b32.xlu0 %v3054, 127
    %v3059 = vpop.permute.xlu0 %3058
    %3060 = vrot.lane.b32.xlu0 %v3055, 127
    %v3061 = vpop.permute.xlu0 %3060
    %v3064 = vadd.f32 %v3036, %v3059
    %v3065 = vadd.f32 %v3037, %v3061
    %s3066 = sld [smem:[#allocation11 + $0x9]]
    %s3067 = sld [smem:[#allocation11 + $0x3a]]
    %v3068 = vstv %s3066
    %v3069 = vmul.f32 %v3068, %v3022
    %v3070 = vmul.f32 %v3068, %v3023
    %3073 = vrot.lane.b32.xlu0 %v3069, 126
    %v3074 = vpop.permute.xlu0 %3073
    %3075 = vrot.lane.b32.xlu0 %v3070, 126
    %v3076 = vpop.permute.xlu0 %3075
    %v3079 = vadd.f32 %v3051, %v3074
    %v3080 = vadd.f32 %v3052, %v3076
    %v3081 = vstv %s3067
    %v3082 = vmul.f32 %v3081, %v3024
    %v3083 = vmul.f32 %v3081, %v3025
    %3086 = vrot.lane.b32.xlu0 %v3082, 126
    %v3087 = vpop.permute.xlu0 %3086
    %3088 = vrot.lane.b32.xlu0 %v3083, 126
    %v3089 = vpop.permute.xlu0 %3088
    %v3092 = vadd.f32 %v3064, %v3087
    %v3093 = vadd.f32 %v3065, %v3089
    %s3094 = sld [smem:[#allocation11 + $0xa]]
    %s3095 = sld [smem:[#allocation11 + $0x3b]]
    %v3096 = vstv %s3094
    %v3097 = vmul.f32 %v3096, %v3022
    %v3098 = vmul.f32 %v3096, %v3023
    %3101 = vrot.lane.b32.xlu0 %v3097, 125
    %v3102 = vpop.permute.xlu0 %3101
    %3103 = vrot.lane.b32.xlu0 %v3098, 125
    %v3104 = vpop.permute.xlu0 %3103
    %v3107 = vadd.f32 %v3079, %v3102
    %v3108 = vadd.f32 %v3080, %v3104
    %v3109 = vstv %s3095
    %v3110 = vmul.f32 %v3109, %v3024
    %v3111 = vmul.f32 %v3109, %v3025
    %3114 = vrot.lane.b32.xlu0 %v3110, 125
    %v3115 = vpop.permute.xlu0 %3114
    %3116 = vrot.lane.b32.xlu0 %v3111, 125
    %v3117 = vpop.permute.xlu0 %3116
    %v3120 = vadd.f32 %v3092, %v3115
    %v3121 = vadd.f32 %v3093, %v3117
    %s3122 = sld [smem:[#allocation11 + $0xb]]
    %s3123 = sld [smem:[#allocation11 + $0x3c]]
    %v3124 = vstv %s3122
    %v3125 = vmul.f32 %v3124, %v3022
    %v3126 = vmul.f32 %v3124, %v3023
    %3129 = vrot.lane.b32.xlu0 %v3125, 124
    %v3130 = vpop.permute.xlu0 %3129
    %3131 = vrot.lane.b32.xlu0 %v3126, 124
    %v3132 = vpop.permute.xlu0 %3131
    %v3135 = vadd.f32 %v3107, %v3130
    %v3136 = vadd.f32 %v3108, %v3132
    %v3137 = vstv %s3123
    %v3138 = vmul.f32 %v3137, %v3024
    %v3139 = vmul.f32 %v3137, %v3025
    %3142 = vrot.lane.b32.xlu0 %v3138, 124
    %v3143 = vpop.permute.xlu0 %3142
    %3144 = vrot.lane.b32.xlu0 %v3139, 124
    %v3145 = vpop.permute.xlu0 %3144
    %v3148 = vadd.f32 %v3120, %v3143
    %v3149 = vadd.f32 %v3121, %v3145
    %s3150 = sld [smem:[#allocation11 + $0xc]]
    %s3151 = sld [smem:[#allocation11 + $0x3d]]
    %v3152 = vstv %s3150
    %v3153 = vmul.f32 %v3152, %v3022
    %v3154 = vmul.f32 %v3152, %v3023
    %3157 = vrot.lane.b32.xlu0 %v3153, 123
    %v3158 = vpop.permute.xlu0 %3157
    %3159 = vrot.lane.b32.xlu0 %v3154, 123
    %v3160 = vpop.permute.xlu0 %3159
    %v3163 = vadd.f32 %v3135, %v3158
    %v3164 = vadd.f32 %v3136, %v3160
    %v3165 = vstv %s3151
    %v3166 = vmul.f32 %v3165, %v3024
    %v3167 = vmul.f32 %v3165, %v3025
    %3170 = vrot.lane.b32.xlu0 %v3166, 123
    %v3171 = vpop.permute.xlu0 %3170
    %3172 = vrot.lane.b32.xlu0 %v3167, 123
    %v3173 = vpop.permute.xlu0 %3172
    %v3176 = vadd.f32 %v3148, %v3171
    %v3177 = vadd.f32 %v3149, %v3173
    %s3178 = sld [smem:[#allocation11 + $0xd]]
    %s3179 = sld [smem:[#allocation11 + $0x3e]]
    %v3180 = vstv %s3178
    %v3181 = vmul.f32 %v3180, %v3022
    %v3182 = vmul.f32 %v3180, %v3023
    %3185 = vrot.lane.b32.xlu0 %v3181, 122
    %v3186 = vpop.permute.xlu0 %3185
    %3187 = vrot.lane.b32.xlu0 %v3182, 122
    %v3188 = vpop.permute.xlu0 %3187
    %v3191 = vadd.f32 %v3163, %v3186
    %v3192 = vadd.f32 %v3164, %v3188
    %v3193 = vstv %s3179
    %v3194 = vmul.f32 %v3193, %v3024
    %v3195 = vmul.f32 %v3193, %v3025
    %3198 = vrot.lane.b32.xlu0 %v3194, 122
    %v3199 = vpop.permute.xlu0 %3198
    %3200 = vrot.lane.b32.xlu0 %v3195, 122
    %v3201 = vpop.permute.xlu0 %3200
    %v3204 = vadd.f32 %v3176, %v3199
    %v3205 = vadd.f32 %v3177, %v3201
    %v3206 = vld [vmem:[#allocation2 + $0x2] sm:$0xff]
    %v3207 = vld [vmem:[#allocation2 + $0x12] sm:$0xff]
    %v3208 = vld [vmem:[#allocation2 + $0x22] sm:$0xff]
    %v3209 = vld [vmem:[#allocation2 + $0x32] sm:$0xff]
    %s3210 = sld [smem:[#allocation11 + $0xe]]
    %s3211 = sld [smem:[#allocation11 + $0x3f]]
    %v3212 = vstv %s3210
    %v3213 = vmul.f32 %v3212, %v3206
    %v3214 = vmul.f32 %v3212, %v3207
    %v3215 = vadd.f32 %v3191, %v3213
    %v3216 = vadd.f32 %v3192, %v3214
    %v3217 = vstv %s3211
    %v3218 = vmul.f32 %v3217, %v3208
    %v3219 = vmul.f32 %v3217, %v3209
    %v3220 = vadd.f32 %v3204, %v3218
    %v3221 = vadd.f32 %v3205, %v3219
    %s3222 = sld [smem:[#allocation11 + $0xf]]
    %s3223 = sld [smem:[#allocation11 + $0x40]]
    %v3224 = vstv %s3222
    %v3225 = vmul.f32 %v3224, %v3206
    %v3226 = vmul.f32 %v3224, %v3207
    %3229 = vrot.lane.b32.xlu0 %v3225, 127
    %v3230 = vpop.permute.xlu0 %3229
    %3231 = vrot.lane.b32.xlu0 %v3226, 127
    %v3232 = vpop.permute.xlu0 %3231
    %v3235 = vadd.f32 %v3215, %v3230
    %v3236 = vadd.f32 %v3216, %v3232
    %v3237 = vstv %s3223
    %v3238 = vmul.f32 %v3237, %v3208
    %v3239 = vmul.f32 %v3237, %v3209
    %3242 = vrot.lane.b32.xlu0 %v3238, 127
    %v3243 = vpop.permute.xlu0 %3242
    %3244 = vrot.lane.b32.xlu0 %v3239, 127
    %v3245 = vpop.permute.xlu0 %3244
    %v3248 = vadd.f32 %v3220, %v3243
    %v3249 = vadd.f32 %v3221, %v3245
    %s3250 = sld [smem:[#allocation11 + $0x10]]
    %s3251 = sld [smem:[#allocation11 + $0x41]]
    %v3252 = vstv %s3250
    %v3253 = vmul.f32 %v3252, %v3206
    %v3254 = vmul.f32 %v3252, %v3207
    %3257 = vrot.lane.b32.xlu0 %v3253, 126
    %v3258 = vpop.permute.xlu0 %3257
    %3259 = vrot.lane.b32.xlu0 %v3254, 126
    %v3260 = vpop.permute.xlu0 %3259
    %v3263 = vadd.f32 %v3235, %v3258
    %v3264 = vadd.f32 %v3236, %v3260
    %v3265 = vstv %s3251
    %v3266 = vmul.f32 %v3265, %v3208
    %v3267 = vmul.f32 %v3265, %v3209
    %3270 = vrot.lane.b32.xlu0 %v3266, 126
    %v3271 = vpop.permute.xlu0 %3270
    %3272 = vrot.lane.b32.xlu0 %v3267, 126
    %v3273 = vpop.permute.xlu0 %3272
    %v3276 = vadd.f32 %v3248, %v3271
    %v3277 = vadd.f32 %v3249, %v3273
    %s3278 = sld [smem:[#allocation11 + $0x11]]
    %s3279 = sld [smem:[#allocation11 + $0x42]]
    %v3280 = vstv %s3278
    %v3281 = vmul.f32 %v3280, %v3206
    %v3282 = vmul.f32 %v3280, %v3207
    %3285 = vrot.lane.b32.xlu0 %v3281, 125
    %v3286 = vpop.permute.xlu0 %3285
    %3287 = vrot.lane.b32.xlu0 %v3282, 125
    %v3288 = vpop.permute.xlu0 %3287
    %v3291 = vadd.f32 %v3263, %v3286
    %v3292 = vadd.f32 %v3264, %v3288
    %v3293 = vstv %s3279
    %v3294 = vmul.f32 %v3293, %v3208
    %v3295 = vmul.f32 %v3293, %v3209
    %3298 = vrot.lane.b32.xlu0 %v3294, 125
    %v3299 = vpop.permute.xlu0 %3298
    %3300 = vrot.lane.b32.xlu0 %v3295, 125
    %v3301 = vpop.permute.xlu0 %3300
    %v3304 = vadd.f32 %v3276, %v3299
    %v3305 = vadd.f32 %v3277, %v3301
    %s3306 = sld [smem:[#allocation11 + $0x12]]
    %s3307 = sld [smem:[#allocation11 + $0x43]]
    %v3308 = vstv %s3306
    %v3309 = vmul.f32 %v3308, %v3206
    %v3310 = vmul.f32 %v3308, %v3207
    %3313 = vrot.lane.b32.xlu0 %v3309, 124
    %v3314 = vpop.permute.xlu0 %3313
    %3315 = vrot.lane.b32.xlu0 %v3310, 124
    %v3316 = vpop.permute.xlu0 %3315
    %v3319 = vadd.f32 %v3291, %v3314
    %v3320 = vadd.f32 %v3292, %v3316
    %v3321 = vstv %s3307
    %v3322 = vmul.f32 %v3321, %v3208
    %v3323 = vmul.f32 %v3321, %v3209
    %3326 = vrot.lane.b32.xlu0 %v3322, 124
    %v3327 = vpop.permute.xlu0 %3326
    %3328 = vrot.lane.b32.xlu0 %v3323, 124
    %v3329 = vpop.permute.xlu0 %3328
    %v3332 = vadd.f32 %v3304, %v3327
    %v3333 = vadd.f32 %v3305, %v3329
    %s3334 = sld [smem:[#allocation11 + $0x13]]
    %s3335 = sld [smem:[#allocation11 + $0x44]]
    %v3336 = vstv %s3334
    %v3337 = vmul.f32 %v3336, %v3206
    %v3338 = vmul.f32 %v3336, %v3207
    %3341 = vrot.lane.b32.xlu0 %v3337, 123
    %v3342 = vpop.permute.xlu0 %3341
    %3343 = vrot.lane.b32.xlu0 %v3338, 123
    %v3344 = vpop.permute.xlu0 %3343
    %v3347 = vadd.f32 %v3319, %v3342
    %v3348 = vadd.f32 %v3320, %v3344
    %v3349 = vstv %s3335
    %v3350 = vmul.f32 %v3349, %v3208
    %v3351 = vmul.f32 %v3349, %v3209
    %3354 = vrot.lane.b32.xlu0 %v3350, 123
    %v3355 = vpop.permute.xlu0 %3354
    %3356 = vrot.lane.b32.xlu0 %v3351, 123
    %v3357 = vpop.permute.xlu0 %3356
    %v3360 = vadd.f32 %v3332, %v3355
    %v3361 = vadd.f32 %v3333, %v3357
    %s3362 = sld [smem:[#allocation11 + $0x14]]
    %s3363 = sld [smem:[#allocation11 + $0x45]]
    %v3364 = vstv %s3362
    %v3365 = vmul.f32 %v3364, %v3206
    %v3366 = vmul.f32 %v3364, %v3207
    %3369 = vrot.lane.b32.xlu0 %v3365, 122
    %v3370 = vpop.permute.xlu0 %3369
    %3371 = vrot.lane.b32.xlu0 %v3366, 122
    %v3372 = vpop.permute.xlu0 %3371
    %v3375 = vadd.f32 %v3347, %v3370
    %v3376 = vadd.f32 %v3348, %v3372
    %v3377 = vstv %s3363
    %v3378 = vmul.f32 %v3377, %v3208
    %v3379 = vmul.f32 %v3377, %v3209
    %3382 = vrot.lane.b32.xlu0 %v3378, 122
    %v3383 = vpop.permute.xlu0 %3382
    %3384 = vrot.lane.b32.xlu0 %v3379, 122
    %v3385 = vpop.permute.xlu0 %3384
    %v3388 = vadd.f32 %v3360, %v3383
    %v3389 = vadd.f32 %v3361, %v3385
    %v3390 = vld [vmem:[#allocation2 + $0x3] sm:$0xff]
    %v3391 = vld [vmem:[#allocation2 + $0x13] sm:$0xff]
    %v3392 = vld [vmem:[#allocation2 + $0x23] sm:$0xff]
    %v3393 = vld [vmem:[#allocation2 + $0x33] sm:$0xff]
    %s3394 = sld [smem:[#allocation11 + $0x15]]
    %s3395 = sld [smem:[#allocation11 + $0x46]]
    %v3396 = vstv %s3394
    %v3397 = vmul.f32 %v3396, %v3390
    %v3398 = vmul.f32 %v3396, %v3391
    %v3399 = vadd.f32 %v3375, %v3397
    %v3400 = vadd.f32 %v3376, %v3398
    %v3401 = vstv %s3395
    %v3402 = vmul.f32 %v3401, %v3392
    %v3403 = vmul.f32 %v3401, %v3393
    %v3404 = vadd.f32 %v3388, %v3402
    %v3405 = vadd.f32 %v3389, %v3403
    %s3406 = sld [smem:[#allocation11 + $0x16]]
    %s3407 = sld [smem:[#allocation11 + $0x47]]
    %v3408 = vstv %s3406
    %v3409 = vmul.f32 %v3408, %v3390
    %v3410 = vmul.f32 %v3408, %v3391
    %3413 = vrot.lane.b32.xlu0 %v3409, 127
    %v3414 = vpop.permute.xlu0 %3413
    %3415 = vrot.lane.b32.xlu0 %v3410, 127
    %v3416 = vpop.permute.xlu0 %3415
    %v3419 = vadd.f32 %v3399, %v3414
    %v3420 = vadd.f32 %v3400, %v3416
    %v3421 = vstv %s3407
    %v3422 = vmul.f32 %v3421, %v3392
    %v3423 = vmul.f32 %v3421, %v3393
    %3426 = vrot.lane.b32.xlu0 %v3422, 127
    %v3427 = vpop.permute.xlu0 %3426
    %3428 = vrot.lane.b32.xlu0 %v3423, 127
    %v3429 = vpop.permute.xlu0 %3428
    %v3432 = vadd.f32 %v3404, %v3427
    %v3433 = vadd.f32 %v3405, %v3429
    %s3434 = sld [smem:[#allocation11 + $0x17]]
    %s3435 = sld [smem:[#allocation11 + $0x48]]
    %v3436 = vstv %s3434
    %v3437 = vmul.f32 %v3436, %v3390
    %v3438 = vmul.f32 %v3436, %v3391
    %3441 = vrot.lane.b32.xlu0 %v3437, 126
    %v3442 = vpop.permute.xlu0 %3441
    %3443 = vrot.lane.b32.xlu0 %v3438, 126
    %v3444 = vpop.permute.xlu0 %3443
    %v3447 = vadd.f32 %v3419, %v3442
    %v3448 = vadd.f32 %v3420, %v3444
    %v3449 = vstv %s3435
    %v3450 = vmul.f32 %v3449, %v3392
    %v3451 = vmul.f32 %v3449, %v3393
    %3454 = vrot.lane.b32.xlu0 %v3450, 126
    %v3455 = vpop.permute.xlu0 %3454
    %3456 = vrot.lane.b32.xlu0 %v3451, 126
    %v3457 = vpop.permute.xlu0 %3456
    %v3460 = vadd.f32 %v3432, %v3455
    %v3461 = vadd.f32 %v3433, %v3457
    %s3462 = sld [smem:[#allocation11 + $0x18]]
    %s3463 = sld [smem:[#allocation11 + $0x49]]
    %v3464 = vstv %s3462
    %v3465 = vmul.f32 %v3464, %v3390
    %v3466 = vmul.f32 %v3464, %v3391
    %3469 = vrot.lane.b32.xlu0 %v3465, 125
    %v3470 = vpop.permute.xlu0 %3469
    %3471 = vrot.lane.b32.xlu0 %v3466, 125
    %v3472 = vpop.permute.xlu0 %3471
    %v3475 = vadd.f32 %v3447, %v3470
    %v3476 = vadd.f32 %v3448, %v3472
    %v3477 = vstv %s3463
    %v3478 = vmul.f32 %v3477, %v3392
    %v3479 = vmul.f32 %v3477, %v3393
    %3482 = vrot.lane.b32.xlu0 %v3478, 125
    %v3483 = vpop.permute.xlu0 %3482
    %3484 = vrot.lane.b32.xlu0 %v3479, 125
    %v3485 = vpop.permute.xlu0 %3484
    %v3488 = vadd.f32 %v3460, %v3483
    %v3489 = vadd.f32 %v3461, %v3485
    %s3490 = sld [smem:[#allocation11 + $0x19]]
    %s3491 = sld [smem:[#allocation11 + $0x4a]]
    %v3492 = vstv %s3490
    %v3493 = vmul.f32 %v3492, %v3390
    %v3494 = vmul.f32 %v3492, %v3391
    %3497 = vrot.lane.b32.xlu0 %v3493, 124
    %v3498 = vpop.permute.xlu0 %3497
    %3499 = vrot.lane.b32.xlu0 %v3494, 124
    %v3500 = vpop.permute.xlu0 %3499
    %v3503 = vadd.f32 %v3475, %v3498
    %v3504 = vadd.f32 %v3476, %v3500
    %v3505 = vstv %s3491
    %v3506 = vmul.f32 %v3505, %v3392
    %v3507 = vmul.f32 %v3505, %v3393
    %3510 = vrot.lane.b32.xlu0 %v3506, 124
    %v3511 = vpop.permute.xlu0 %3510
    %3512 = vrot.lane.b32.xlu0 %v3507, 124
    %v3513 = vpop.permute.xlu0 %3512
    %v3516 = vadd.f32 %v3488, %v3511
    %v3517 = vadd.f32 %v3489, %v3513
    %s3518 = sld [smem:[#allocation11 + $0x1a]]
    %s3519 = sld [smem:[#allocation11 + $0x4b]]
    %v3520 = vstv %s3518
    %v3521 = vmul.f32 %v3520, %v3390
    %v3522 = vmul.f32 %v3520, %v3391
    %3525 = vrot.lane.b32.xlu0 %v3521, 123
    %v3526 = vpop.permute.xlu0 %3525
    %3527 = vrot.lane.b32.xlu0 %v3522, 123
    %v3528 = vpop.permute.xlu0 %3527
    %v3531 = vadd.f32 %v3503, %v3526
    %v3532 = vadd.f32 %v3504, %v3528
    %v3533 = vstv %s3519
    %v3534 = vmul.f32 %v3533, %v3392
    %v3535 = vmul.f32 %v3533, %v3393
    %3538 = vrot.lane.b32.xlu0 %v3534, 123
    %v3539 = vpop.permute.xlu0 %3538
    %3540 = vrot.lane.b32.xlu0 %v3535, 123
    %v3541 = vpop.permute.xlu0 %3540
    %v3544 = vadd.f32 %v3516, %v3539
    %v3545 = vadd.f32 %v3517, %v3541
    %s3546 = sld [smem:[#allocation11 + $0x1b]]
    %s3547 = sld [smem:[#allocation11 + $0x4c]]
    %v3548 = vstv %s3546
    %v3549 = vmul.f32 %v3548, %v3390
    %v3550 = vmul.f32 %v3548, %v3391
    %3553 = vrot.lane.b32.xlu0 %v3549, 122
    %v3554 = vpop.permute.xlu0 %3553
    %3555 = vrot.lane.b32.xlu0 %v3550, 122
    %v3556 = vpop.permute.xlu0 %3555
    %v3559 = vadd.f32 %v3531, %v3554
    %v3560 = vadd.f32 %v3532, %v3556
    %v3561 = vstv %s3547
    %v3562 = vmul.f32 %v3561, %v3392
    %v3563 = vmul.f32 %v3561, %v3393
    %3566 = vrot.lane.b32.xlu0 %v3562, 122
    %v3567 = vpop.permute.xlu0 %3566
    %3568 = vrot.lane.b32.xlu0 %v3563, 122
    %v3569 = vpop.permute.xlu0 %3568
    %v3572 = vadd.f32 %v3544, %v3567
    %v3573 = vadd.f32 %v3545, %v3569
    %v3574 = vld [vmem:[#allocation2 + $0x4] sm:$0xff]
    %v3575 = vld [vmem:[#allocation2 + $0x14] sm:$0xff]
    %v3576 = vld [vmem:[#allocation2 + $0x24] sm:$0xff]
    %v3577 = vld [vmem:[#allocation2 + $0x34] sm:$0xff]
    %s3578 = sld [smem:[#allocation11 + $0x1c]]
    %s3579 = sld [smem:[#allocation11 + $0x4d]]
    %v3580 = vstv %s3578
    %v3581 = vmul.f32 %v3580, %v3574
    %v3582 = vmul.f32 %v3580, %v3575
    %v3583 = vadd.f32 %v3559, %v3581
    %v3584 = vadd.f32 %v3560, %v3582
    %v3585 = vstv %s3579
    %v3586 = vmul.f32 %v3585, %v3576
    %v3587 = vmul.f32 %v3585, %v3577
    %v3588 = vadd.f32 %v3572, %v3586
    %v3589 = vadd.f32 %v3573, %v3587
    %s3590 = sld [smem:[#allocation11 + $0x1d]]
    %s3591 = sld [smem:[#allocation11 + $0x4e]]
    %v3592 = vstv %s3590
    %v3593 = vmul.f32 %v3592, %v3574
    %v3594 = vmul.f32 %v3592, %v3575
    %3597 = vrot.lane.b32.xlu0 %v3593, 127
    %v3598 = vpop.permute.xlu0 %3597
    %3599 = vrot.lane.b32.xlu0 %v3594, 127
    %v3600 = vpop.permute.xlu0 %3599
    %v3603 = vadd.f32 %v3583, %v3598
    %v3604 = vadd.f32 %v3584, %v3600
    %v3605 = vstv %s3591
    %v3606 = vmul.f32 %v3605, %v3576
    %v3607 = vmul.f32 %v3605, %v3577
    %3610 = vrot.lane.b32.xlu0 %v3606, 127
    %v3611 = vpop.permute.xlu0 %3610
    %3612 = vrot.lane.b32.xlu0 %v3607, 127
    %v3613 = vpop.permute.xlu0 %3612
    %v3616 = vadd.f32 %v3588, %v3611
    %v3617 = vadd.f32 %v3589, %v3613
    %s3618 = sld [smem:[#allocation11 + $0x1e]]
    %s3619 = sld [smem:[#allocation11 + $0x4f]]
    %v3620 = vstv %s3618
    %v3621 = vmul.f32 %v3620, %v3574
    %v3622 = vmul.f32 %v3620, %v3575
    %3625 = vrot.lane.b32.xlu0 %v3621, 126
    %v3626 = vpop.permute.xlu0 %3625
    %3627 = vrot.lane.b32.xlu0 %v3622, 126
    %v3628 = vpop.permute.xlu0 %3627
    %v3631 = vadd.f32 %v3603, %v3626
    %v3632 = vadd.f32 %v3604, %v3628
    %v3633 = vstv %s3619
    %v3634 = vmul.f32 %v3633, %v3576
    %v3635 = vmul.f32 %v3633, %v3577
    %3638 = vrot.lane.b32.xlu0 %v3634, 126
    %v3639 = vpop.permute.xlu0 %3638
    %3640 = vrot.lane.b32.xlu0 %v3635, 126
    %v3641 = vpop.permute.xlu0 %3640
    %v3644 = vadd.f32 %v3616, %v3639
    %v3645 = vadd.f32 %v3617, %v3641
    %s3646 = sld [smem:[#allocation11 + $0x1f]]
    %s3647 = sld [smem:[#allocation11 + $0x50]]
    %v3648 = vstv %s3646
    %v3649 = vmul.f32 %v3648, %v3574
    %v3650 = vmul.f32 %v3648, %v3575
    %3653 = vrot.lane.b32.xlu0 %v3649, 125
    %v3654 = vpop.permute.xlu0 %3653
    %3655 = vrot.lane.b32.xlu0 %v3650, 125
    %v3656 = vpop.permute.xlu0 %3655
    %v3659 = vadd.f32 %v3631, %v3654
    %v3660 = vadd.f32 %v3632, %v3656
    %v3661 = vstv %s3647
    %v3662 = vmul.f32 %v3661, %v3576
    %v3663 = vmul.f32 %v3661, %v3577
    %3666 = vrot.lane.b32.xlu0 %v3662, 125
    %v3667 = vpop.permute.xlu0 %3666
    %3668 = vrot.lane.b32.xlu0 %v3663, 125
    %v3669 = vpop.permute.xlu0 %3668
    %v3672 = vadd.f32 %v3644, %v3667
    %v3673 = vadd.f32 %v3645, %v3669
    %s3674 = sld [smem:[#allocation11 + $0x20]]
    %s3675 = sld [smem:[#allocation11 + $0x51]]
    %v3676 = vstv %s3674
    %v3677 = vmul.f32 %v3676, %v3574
    %v3678 = vmul.f32 %v3676, %v3575
    %3681 = vrot.lane.b32.xlu0 %v3677, 124
    %v3682 = vpop.permute.xlu0 %3681
    %3683 = vrot.lane.b32.xlu0 %v3678, 124
    %v3684 = vpop.permute.xlu0 %3683
    %v3687 = vadd.f32 %v3659, %v3682
    %v3688 = vadd.f32 %v3660, %v3684
    %v3689 = vstv %s3675
    %v3690 = vmul.f32 %v3689, %v3576
    %v3691 = vmul.f32 %v3689, %v3577
    %3694 = vrot.lane.b32.xlu0 %v3690, 124
    %v3695 = vpop.permute.xlu0 %3694
    %3696 = vrot.lane.b32.xlu0 %v3691, 124
    %v3697 = vpop.permute.xlu0 %3696
    %v3700 = vadd.f32 %v3672, %v3695
    %v3701 = vadd.f32 %v3673, %v3697
    %s3702 = sld [smem:[#allocation11 + $0x21]]
    %s3703 = sld [smem:[#allocation11 + $0x52]]
    %v3704 = vstv %s3702
    %v3705 = vmul.f32 %v3704, %v3574
    %v3706 = vmul.f32 %v3704, %v3575
    %3709 = vrot.lane.b32.xlu0 %v3705, 123
    %v3710 = vpop.permute.xlu0 %3709
    %3711 = vrot.lane.b32.xlu0 %v3706, 123
    %v3712 = vpop.permute.xlu0 %3711
    %v3715 = vadd.f32 %v3687, %v3710
    %v3716 = vadd.f32 %v3688, %v3712
    %v3717 = vstv %s3703
    %v3718 = vmul.f32 %v3717, %v3576
    %v3719 = vmul.f32 %v3717, %v3577
    %3722 = vrot.lane.b32.xlu0 %v3718, 123
    %v3723 = vpop.permute.xlu0 %3722
    %3724 = vrot.lane.b32.xlu0 %v3719, 123
    %v3725 = vpop.permute.xlu0 %3724
    %v3728 = vadd.f32 %v3700, %v3723
    %v3729 = vadd.f32 %v3701, %v3725
    %s3730 = sld [smem:[#allocation11 + $0x22]]
    %s3731 = sld [smem:[#allocation11 + $0x53]]
    %v3732 = vstv %s3730
    %v3733 = vmul.f32 %v3732, %v3574
    %v3734 = vmul.f32 %v3732, %v3575
    %3737 = vrot.lane.b32.xlu0 %v3733, 122
    %v3738 = vpop.permute.xlu0 %3737
    %3739 = vrot.lane.b32.xlu0 %v3734, 122
    %v3740 = vpop.permute.xlu0 %3739
    %v3743 = vadd.f32 %v3715, %v3738
    %v3744 = vadd.f32 %v3716, %v3740
    %v3745 = vstv %s3731
    %v3746 = vmul.f32 %v3745, %v3576
    %v3747 = vmul.f32 %v3745, %v3577
    %3750 = vrot.lane.b32.xlu0 %v3746, 122
    %v3751 = vpop.permute.xlu0 %3750
    %3752 = vrot.lane.b32.xlu0 %v3747, 122
    %v3753 = vpop.permute.xlu0 %3752
    %v3756 = vadd.f32 %v3728, %v3751
    %v3757 = vadd.f32 %v3729, %v3753
    %v3758 = vld [vmem:[#allocation2 + $0x5] sm:$0xff]
    %v3759 = vld [vmem:[#allocation2 + $0x15] sm:$0xff]
    %v3760 = vld [vmem:[#allocation2 + $0x25] sm:$0xff]
    %v3761 = vld [vmem:[#allocation2 + $0x35] sm:$0xff]
    %s3762 = sld [smem:[#allocation11 + $0x23]]
    %s3763 = sld [smem:[#allocation11 + $0x54]]
    %v3764 = vstv %s3762
    %v3765 = vmul.f32 %v3764, %v3758
    %v3766 = vmul.f32 %v3764, %v3759
    %v3767 = vadd.f32 %v3743, %v3765
    %v3768 = vadd.f32 %v3744, %v3766
    %v3769 = vstv %s3763
    %v3770 = vmul.f32 %v3769, %v3760
    %v3771 = vmul.f32 %v3769, %v3761
    %v3772 = vadd.f32 %v3756, %v3770
    %v3773 = vadd.f32 %v3757, %v3771
    %s3774 = sld [smem:[#allocation11 + $0x24]]
    %s3775 = sld [smem:[#allocation11 + $0x55]]
    %v3776 = vstv %s3774
    %v3777 = vmul.f32 %v3776, %v3758
    %v3778 = vmul.f32 %v3776, %v3759
    %3781 = vrot.lane.b32.xlu0 %v3777, 127
    %v3782 = vpop.permute.xlu0 %3781
    %3783 = vrot.lane.b32.xlu0 %v3778, 127
    %v3784 = vpop.permute.xlu0 %3783
    %v3787 = vadd.f32 %v3767, %v3782
    %v3788 = vadd.f32 %v3768, %v3784
    %v3789 = vstv %s3775
    %v3790 = vmul.f32 %v3789, %v3760
    %v3791 = vmul.f32 %v3789, %v3761
    %3794 = vrot.lane.b32.xlu0 %v3790, 127
    %v3795 = vpop.permute.xlu0 %3794
    %3796 = vrot.lane.b32.xlu0 %v3791, 127
    %v3797 = vpop.permute.xlu0 %3796
    %v3800 = vadd.f32 %v3772, %v3795
    %v3801 = vadd.f32 %v3773, %v3797
    %s3802 = sld [smem:[#allocation11 + $0x25]]
    %s3803 = sld [smem:[#allocation11 + $0x56]]
    %v3804 = vstv %s3802
    %v3805 = vmul.f32 %v3804, %v3758
    %v3806 = vmul.f32 %v3804, %v3759
    %3809 = vrot.lane.b32.xlu0 %v3805, 126
    %v3810 = vpop.permute.xlu0 %3809
    %3811 = vrot.lane.b32.xlu0 %v3806, 126
    %v3812 = vpop.permute.xlu0 %3811
    %v3815 = vadd.f32 %v3787, %v3810
    %v3816 = vadd.f32 %v3788, %v3812
    %v3817 = vstv %s3803
    %v3818 = vmul.f32 %v3817, %v3760
    %v3819 = vmul.f32 %v3817, %v3761
    %3822 = vrot.lane.b32.xlu0 %v3818, 126
    %v3823 = vpop.permute.xlu0 %3822
    %3824 = vrot.lane.b32.xlu0 %v3819, 126
    %v3825 = vpop.permute.xlu0 %3824
    %v3828 = vadd.f32 %v3800, %v3823
    %v3829 = vadd.f32 %v3801, %v3825
    %s3830 = sld [smem:[#allocation11 + $0x26]]
    %s3831 = sld [smem:[#allocation11 + $0x57]]
    %v3832 = vstv %s3830
    %v3833 = vmul.f32 %v3832, %v3758
    %v3834 = vmul.f32 %v3832, %v3759
    %3837 = vrot.lane.b32.xlu0 %v3833, 125
    %v3838 = vpop.permute.xlu0 %3837
    %3839 = vrot.lane.b32.xlu0 %v3834, 125
    %v3840 = vpop.permute.xlu0 %3839
    %v3843 = vadd.f32 %v3815, %v3838
    %v3844 = vadd.f32 %v3816, %v3840
    %v3845 = vstv %s3831
    %v3846 = vmul.f32 %v3845, %v3760
    %v3847 = vmul.f32 %v3845, %v3761
    %3850 = vrot.lane.b32.xlu0 %v3846, 125
    %v3851 = vpop.permute.xlu0 %3850
    %3852 = vrot.lane.b32.xlu0 %v3847, 125
    %v3853 = vpop.permute.xlu0 %3852
    %v3856 = vadd.f32 %v3828, %v3851
    %v3857 = vadd.f32 %v3829, %v3853
    %s3858 = sld [smem:[#allocation11 + $0x27]]
    %s3859 = sld [smem:[#allocation11 + $0x58]]
    %v3860 = vstv %s3858
    %v3861 = vmul.f32 %v3860, %v3758
    %v3862 = vmul.f32 %v3860, %v3759
    %3865 = vrot.lane.b32.xlu0 %v3861, 124
    %v3866 = vpop.permute.xlu0 %3865
    %3867 = vrot.lane.b32.xlu0 %v3862, 124
    %v3868 = vpop.permute.xlu0 %3867
    %v3871 = vadd.f32 %v3843, %v3866
    %v3872 = vadd.f32 %v3844, %v3868
    %v3873 = vstv %s3859
    %v3874 = vmul.f32 %v3873, %v3760
    %v3875 = vmul.f32 %v3873, %v3761
    %3878 = vrot.lane.b32.xlu0 %v3874, 124
    %v3879 = vpop.permute.xlu0 %3878
    %3880 = vrot.lane.b32.xlu0 %v3875, 124
    %v3881 = vpop.permute.xlu0 %3880
    %v3884 = vadd.f32 %v3856, %v3879
    %v3885 = vadd.f32 %v3857, %v3881
    %s3886 = sld [smem:[#allocation11 + $0x28]]
    %s3887 = sld [smem:[#allocation11 + $0x59]]
    %v3888 = vstv %s3886
    %v3889 = vmul.f32 %v3888, %v3758
    %v3890 = vmul.f32 %v3888, %v3759
    %3893 = vrot.lane.b32.xlu0 %v3889, 123
    %v3894 = vpop.permute.xlu0 %3893
    %3895 = vrot.lane.b32.xlu0 %v3890, 123
    %v3896 = vpop.permute.xlu0 %3895
    %v3899 = vadd.f32 %v3871, %v3894
    %v3900 = vadd.f32 %v3872, %v3896
    %v3901 = vstv %s3887
    %v3902 = vmul.f32 %v3901, %v3760
    %v3903 = vmul.f32 %v3901, %v3761
    %3906 = vrot.lane.b32.xlu0 %v3902, 123
    %v3907 = vpop.permute.xlu0 %3906
    %3908 = vrot.lane.b32.xlu0 %v3903, 123
    %v3909 = vpop.permute.xlu0 %3908
    %v3912 = vadd.f32 %v3884, %v3907
    %v3913 = vadd.f32 %v3885, %v3909
    %s3914 = sld [smem:[#allocation11 + $0x29]]
    %s3915 = sld [smem:[#allocation11 + $0x5a]]
    %v3916 = vstv %s3914
    %v3917 = vmul.f32 %v3916, %v3758
    %v3918 = vmul.f32 %v3916, %v3759
    %3921 = vrot.lane.b32.xlu0 %v3917, 122
    %v3922 = vpop.permute.xlu0 %3921
    %3923 = vrot.lane.b32.xlu0 %v3918, 122
    %v3924 = vpop.permute.xlu0 %3923
    %v3927 = vadd.f32 %v3899, %v3922
    %v3928 = vadd.f32 %v3900, %v3924
    %v3929 = vstv %s3915
    %v3930 = vmul.f32 %v3929, %v3760
    %v3931 = vmul.f32 %v3929, %v3761
    %3934 = vrot.lane.b32.xlu0 %v3930, 122
    %v3935 = vpop.permute.xlu0 %3934
    %3936 = vrot.lane.b32.xlu0 %v3931, 122
    %v3937 = vpop.permute.xlu0 %3936
    %v3940 = vadd.f32 %v3912, %v3935
    %v3941 = vadd.f32 %v3913, %v3937
    %v3942 = vld [vmem:[#allocation2 + $0x6] sm:$0xff]
    %v3943 = vld [vmem:[#allocation2 + $0x16] sm:$0xff]
    %v3944 = vld [vmem:[#allocation2 + $0x26] sm:$0xff]
    %v3945 = vld [vmem:[#allocation2 + $0x36] sm:$0xff]
    %s3946 = sld [smem:[#allocation11 + $0x2a]]
    %s3947 = sld [smem:[#allocation11 + $0x5b]]
    %v3948 = vstv %s3946
    %v3949 = vmul.f32 %v3948, %v3942
    %v3950 = vmul.f32 %v3948, %v3943
    %v3951 = vadd.f32 %v3927, %v3949
    %v3952 = vadd.f32 %v3928, %v3950
    %v3953 = vstv %s3947
    %v3954 = vmul.f32 %v3953, %v3944
    %v3955 = vmul.f32 %v3953, %v3945
    %v3956 = vadd.f32 %v3940, %v3954
    %v3957 = vadd.f32 %v3941, %v3955
    %s3958 = sld [smem:[#allocation11 + $0x2b]]
    %s3959 = sld [smem:[#allocation11 + $0x5c]]
    %v3960 = vstv %s3958
    %v3961 = vmul.f32 %v3960, %v3942
    %v3962 = vmul.f32 %v3960, %v3943
    %3965 = vrot.lane.b32.xlu0 %v3961, 127
    %v3966 = vpop.permute.xlu0 %3965
    %3967 = vrot.lane.b32.xlu0 %v3962, 127
    %v3968 = vpop.permute.xlu0 %3967
    %v3971 = vadd.f32 %v3951, %v3966
    %v3972 = vadd.f32 %v3952, %v3968
    %v3973 = vstv %s3959
    %v3974 = vmul.f32 %v3973, %v3944
    %v3975 = vmul.f32 %v3973, %v3945
    %3978 = vrot.lane.b32.xlu0 %v3974, 127
    %v3979 = vpop.permute.xlu0 %3978
    %3980 = vrot.lane.b32.xlu0 %v3975, 127
    %v3981 = vpop.permute.xlu0 %3980
    %v3984 = vadd.f32 %v3956, %v3979
    %v3985 = vadd.f32 %v3957, %v3981
    %s3986 = sld [smem:[#allocation11 + $0x2c]]
    %s3987 = sld [smem:[#allocation11 + $0x5d]]
    %v3988 = vstv %s3986
    %v3989 = vmul.f32 %v3988, %v3942
    %v3990 = vmul.f32 %v3988, %v3943
    %3993 = vrot.lane.b32.xlu0 %v3989, 126
    %v3994 = vpop.permute.xlu0 %3993
    %3995 = vrot.lane.b32.xlu0 %v3990, 126
    %v3996 = vpop.permute.xlu0 %3995
    %v3999 = vadd.f32 %v3971, %v3994
    %v4000 = vadd.f32 %v3972, %v3996
    %v4001 = vstv %s3987
    %v4002 = vmul.f32 %v4001, %v3944
    %v4003 = vmul.f32 %v4001, %v3945
    %4006 = vrot.lane.b32.xlu0 %v4002, 126
    %v4007 = vpop.permute.xlu0 %4006
    %4008 = vrot.lane.b32.xlu0 %v4003, 126
    %v4009 = vpop.permute.xlu0 %4008
    %v4012 = vadd.f32 %v3984, %v4007
    %v4013 = vadd.f32 %v3985, %v4009
    %s4014 = sld [smem:[#allocation11 + $0x2d]]
    %s4015 = sld [smem:[#allocation11 + $0x5e]]
    %v4016 = vstv %s4014
    %v4017 = vmul.f32 %v4016, %v3942
    %v4018 = vmul.f32 %v4016, %v3943
    %4021 = vrot.lane.b32.xlu0 %v4017, 125
    %v4022 = vpop.permute.xlu0 %4021
    %4023 = vrot.lane.b32.xlu0 %v4018, 125
    %v4024 = vpop.permute.xlu0 %4023
    %v4027 = vadd.f32 %v3999, %v4022
    %v4028 = vadd.f32 %v4000, %v4024
    %v4029 = vstv %s4015
    %v4030 = vmul.f32 %v4029, %v3944
    %v4031 = vmul.f32 %v4029, %v3945
    %4034 = vrot.lane.b32.xlu0 %v4030, 125
    %v4035 = vpop.permute.xlu0 %4034
    %4036 = vrot.lane.b32.xlu0 %v4031, 125
    %v4037 = vpop.permute.xlu0 %4036
    %v4040 = vadd.f32 %v4012, %v4035
    %v4041 = vadd.f32 %v4013, %v4037
    %s4042 = sld [smem:[#allocation11 + $0x2e]]
    %s4043 = sld [smem:[#allocation11 + $0x5f]]
    %v4044 = vstv %s4042
    %v4045 = vmul.f32 %v4044, %v3942
    %v4046 = vmul.f32 %v4044, %v3943
    %4049 = vrot.lane.b32.xlu0 %v4045, 124
    %v4050 = vpop.permute.xlu0 %4049
    %4051 = vrot.lane.b32.xlu0 %v4046, 124
    %v4052 = vpop.permute.xlu0 %4051
    %v4055 = vadd.f32 %v4027, %v4050
    %v4056 = vadd.f32 %v4028, %v4052
    %v4057 = vstv %s4043
    %v4058 = vmul.f32 %v4057, %v3944
    %v4059 = vmul.f32 %v4057, %v3945
    %4062 = vrot.lane.b32.xlu0 %v4058, 124
    %v4063 = vpop.permute.xlu0 %4062
    %4064 = vrot.lane.b32.xlu0 %v4059, 124
    %v4065 = vpop.permute.xlu0 %4064
    %v4068 = vadd.f32 %v4040, %v4063
    %v4069 = vadd.f32 %v4041, %v4065
    %s4070 = sld [smem:[#allocation11 + $0x2f]]
    %s4071 = sld [smem:[#allocation11 + $0x60]]
    %v4072 = vstv %s4070
    %v4073 = vmul.f32 %v4072, %v3942
    %v4074 = vmul.f32 %v4072, %v3943
    %4077 = vrot.lane.b32.xlu0 %v4073, 123
    %v4078 = vpop.permute.xlu0 %4077
    %4079 = vrot.lane.b32.xlu0 %v4074, 123
    %v4080 = vpop.permute.xlu0 %4079
    %v4083 = vadd.f32 %v4055, %v4078
    %v4084 = vadd.f32 %v4056, %v4080
    %v4085 = vstv %s4071
    %v4086 = vmul.f32 %v4085, %v3944
    %v4087 = vmul.f32 %v4085, %v3945
    %4090 = vrot.lane.b32.xlu0 %v4086, 123
    %v4091 = vpop.permute.xlu0 %4090
    %4092 = vrot.lane.b32.xlu0 %v4087, 123
    %v4093 = vpop.permute.xlu0 %4092
    %v4096 = vadd.f32 %v4068, %v4091
    %v4097 = vadd.f32 %v4069, %v4093
    %s4098 = sld [smem:[#allocation11 + $0x30]]
    %s4099 = sld [smem:[#allocation11 + $0x61]]
    %v4100 = vstv %s4098
    %v4101 = vmul.f32 %v4100, %v3942
    %v4102 = vmul.f32 %v4100, %v3943
    %4105 = vrot.lane.b32.xlu0 %v4101, 122
    %v4106 = vpop.permute.xlu0 %4105
    %4107 = vrot.lane.b32.xlu0 %v4102, 122
    %v4108 = vpop.permute.xlu0 %4107
    %v4111 = vadd.f32 %v4083, %v4106
    %v4112 = vadd.f32 %v4084, %v4108
    %v4113 = vstv %s4099
    %v4114 = vmul.f32 %v4113, %v3944
    %v4115 = vmul.f32 %v4113, %v3945
    %4118 = vrot.lane.b32.xlu0 %v4114, 122
    %v4119 = vpop.permute.xlu0 %4118
    %4120 = vrot.lane.b32.xlu0 %v4115, 122
    %v4121 = vpop.permute.xlu0 %4120
    %v4124 = vadd.f32 %v4096, %v4119
    %v4125 = vadd.f32 %v4097, %v4121
    %v4126 = vadd.f32 %v4111, %v4124
    %v4127 = vadd.f32 %v4112, %v4125
    %v4128 = vxor.u32 %v4126, 2147483648
    %v4129 = vxor.u32 %v4127, 2147483648
    %v4130 = vmul.f32 %v4128, 1.442695
    %v4131 = vpow.pop %v4130
    %v4132 = vmul.f32 %v4129, 1.442695
    %v4133 = vpow.pop %v4132
    %v4134 = vadd.f32 %v4131, 1.0
    %v4135 = vadd.f32 %v4133, 1.0
    %v4136 = vrcp.pop %v4134
    %v4137 = vmul.f32 1.0, %v4136
    %v4138 = vrcp.pop %v4135
    %v4139 = vmul.f32 1.0, %v4138
    %v4140 = vlaneseq
    %v4141 = vshrl.u32 %v4140, 7
    %v4142 = vsub.s32 0, %v4141
    %v4143 = vrot.slane %v4137, %v4142
    %4145 = vbcast.lane.b32.xlu0 %v4143, 256
    %v4146 = vpop.permute.xlu0 %4145
    %v4147 = vlaneseq
    %v4148 = vshrl.u32 %v4147, 7
    %v4149 = vsub.s32 1, %v4148
    %v4150 = vrot.slane %v4137, %v4149
    %4152 = vbcast.lane.b32.xlu0 %v4150, 256
    %v4153 = vpop.permute.xlu0 %4152
    %v4154 = vlaneseq
    %v4155 = vshrl.u32 %v4154, 7
    %v4156 = vsub.s32 2, %v4155
    %v4157 = vrot.slane %v4137, %v4156
    %4159 = vbcast.lane.b32.xlu0 %v4157, 256
    %v4160 = vpop.permute.xlu0 %4159
    %v4161 = vlaneseq
    %v4162 = vshrl.u32 %v4161, 7
    %v4163 = vsub.s32 3, %v4162
    %v4164 = vrot.slane %v4137, %v4163
    %4166 = vbcast.lane.b32.xlu0 %v4164, 256
    %v4167 = vpop.permute.xlu0 %4166
    %v4168 = vlaneseq
    %v4169 = vshrl.u32 %v4168, 7
    %v4170 = vsub.s32 4, %v4169
    %v4171 = vrot.slane %v4137, %v4170
    %4173 = vbcast.lane.b32.xlu0 %v4171, 256
    %v4174 = vpop.permute.xlu0 %4173
    %v4175 = vlaneseq
    %v4176 = vshrl.u32 %v4175, 7
    %v4177 = vsub.s32 5, %v4176
    %v4178 = vrot.slane %v4137, %v4177
    %4180 = vbcast.lane.b32.xlu0 %v4178, 256
    %v4181 = vpop.permute.xlu0 %4180
    %v4182 = vlaneseq
    %v4183 = vshrl.u32 %v4182, 7
    %v4184 = vsub.s32 6, %v4183
    %v4185 = vrot.slane %v4137, %v4184
    %4187 = vbcast.lane.b32.xlu0 %v4185, 256
    %v4188 = vpop.permute.xlu0 %4187
    %v4189 = vlaneseq
    %v4190 = vshrl.u32 %v4189, 7
    %v4191 = vsub.s32 7, %v4190
    %v4192 = vrot.slane %v4137, %v4191
    %4194 = vbcast.lane.b32.xlu0 %v4192, 256
    %v4195 = vpop.permute.xlu0 %4194
    %v4196 = vlaneseq
    %v4197 = vshrl.u32 %v4196, 7
    %v4198 = vsub.s32 0, %v4197
    %v4199 = vrot.slane %v4139, %v4198
    %4201 = vbcast.lane.b32.xlu0 %v4199, 256
    %v4202 = vpop.permute.xlu0 %4201
    %v4203 = vlaneseq
    %v4204 = vshrl.u32 %v4203, 7
    %v4205 = vsub.s32 1, %v4204
    %v4206 = vrot.slane %v4139, %v4205
    %4208 = vbcast.lane.b32.xlu0 %v4206, 256
    %v4209 = vpop.permute.xlu0 %4208
    %v4210 = vlaneseq
    %v4211 = vshrl.u32 %v4210, 7
    %v4212 = vsub.s32 2, %v4211
    %v4213 = vrot.slane %v4139, %v4212
    %4215 = vbcast.lane.b32.xlu0 %v4213, 256
    %v4216 = vpop.permute.xlu0 %4215
    %v4217 = vlaneseq
    %v4218 = vshrl.u32 %v4217, 7
    %v4219 = vsub.s32 3, %v4218
    %v4220 = vrot.slane %v4139, %v4219
    %4222 = vbcast.lane.b32.xlu0 %v4220, 256
    %v4223 = vpop.permute.xlu0 %4222
    %v4224 = vlaneseq
    %v4225 = vshrl.u32 %v4224, 7
    %v4226 = vsub.s32 4, %v4225
    %v4227 = vrot.slane %v4139, %v4226
    %4229 = vbcast.lane.b32.xlu0 %v4227, 256
    %v4230 = vpop.permute.xlu0 %4229
    %v4231 = vlaneseq
    %v4232 = vshrl.u32 %v4231, 7
    %v4233 = vsub.s32 5, %v4232
    %v4234 = vrot.slane %v4139, %v4233
    %4236 = vbcast.lane.b32.xlu0 %v4234, 256
    %v4237 = vpop.permute.xlu0 %4236
    %v4238 = vlaneseq
    %v4239 = vshrl.u32 %v4238, 7
    %v4240 = vsub.s32 6, %v4239
    %v4241 = vrot.slane %v4139, %v4240
    %4243 = vbcast.lane.b32.xlu0 %v4241, 256
    %v4244 = vpop.permute.xlu0 %4243
    %v4245 = vlaneseq
    %v4246 = vshrl.u32 %v4245, 7
    %v4247 = vsub.s32 7, %v4246
    %v4248 = vrot.slane %v4139, %v4247
    %4250 = vbcast.lane.b32.xlu0 %v4248, 256
    %v4251 = vpop.permute.xlu0 %4250
    %v4252 = vmul.f32 %v2394, %v4146
    %v4253 = vmul.f32 %v2398, %v4146
    %v4254 = vmul.f32 %v2402, %v4146
    %v4255 = vmul.f32 %v2394, %v4153
    %v4256 = vmul.f32 %v2398, %v4153
    %v4257 = vmul.f32 %v2402, %v4153
    %v4258 = vmul.f32 %v2394, %v4160
    %v4259 = vmul.f32 %v2398, %v4160
    %v4260 = vmul.f32 %v2402, %v4160
    %v4261 = vmul.f32 %v2394, %v4167
    %v4262 = vmul.f32 %v2398, %v4167
    %v4263 = vmul.f32 %v2402, %v4167
    %v4264 = vmul.f32 %v2394, %v4174
    %v4265 = vmul.f32 %v2398, %v4174
    %v4266 = vmul.f32 %v2402, %v4174
    %v4267 = vmul.f32 %v2394, %v4181
    %v4268 = vmul.f32 %v2398, %v4181
    %v4269 = vmul.f32 %v2402, %v4181
    %v4270 = vmul.f32 %v2394, %v4188
    %v4271 = vmul.f32 %v2398, %v4188
    %v4272 = vmul.f32 %v2402, %v4188
    %v4273 = vmul.f32 %v2394, %v4195
    %v4274 = vmul.f32 %v2398, %v4195
    %v4275 = vmul.f32 %v2402, %v4195
    %v4276 = vmul.f32 %v2406, %v4202
    %v4277 = vmul.f32 %v2410, %v4202
    %v4278 = vmul.f32 %v2414, %v4202
    %v4279 = vmul.f32 %v2406, %v4209
    %v4280 = vmul.f32 %v2410, %v4209
    %v4281 = vmul.f32 %v2414, %v4209
    %v4282 = vmul.f32 %v2406, %v4216
    %v4283 = vmul.f32 %v2410, %v4216
    %v4284 = vmul.f32 %v2414, %v4216
    %v4285 = vmul.f32 %v2406, %v4223
    %v4286 = vmul.f32 %v2410, %v4223
    %v4287 = vmul.f32 %v2414, %v4223
    %v4288 = vmul.f32 %v2406, %v4230
    %v4289 = vmul.f32 %v2410, %v4230
    %v4290 = vmul.f32 %v2414, %v4230
    %v4291 = vmul.f32 %v2406, %v4237
    %v4292 = vmul.f32 %v2410, %v4237
    %v4293 = vmul.f32 %v2414, %v4237
    %v4294 = vmul.f32 %v2406, %v4244
    %v4295 = vmul.f32 %v2410, %v4244
    %v4296 = vmul.f32 %v2414, %v4244
    %v4297 = vmul.f32 %v2406, %v4251
    %v4298 = vmul.f32 %v2410, %v4251
    %v4299 = vmul.f32 %v2414, %v4251
    %v4300 = vadd.f32 %v4252, 1.0
    %v4301 = vadd.f32 %v4253, 1.0
    %v4302 = vadd.f32 %v4254, 1.0
    %v4303 = vadd.f32 %v4255, 1.0
    %v4304 = vadd.f32 %v4256, 1.0
    %v4305 = vadd.f32 %v4257, 1.0
    %v4306 = vadd.f32 %v4258, 1.0
    %v4307 = vadd.f32 %v4259, 1.0
    %v4308 = vadd.f32 %v4260, 1.0
    %v4309 = vadd.f32 %v4261, 1.0
    %v4310 = vadd.f32 %v4262, 1.0
    %v4311 = vadd.f32 %v4263, 1.0
    %v4312 = vadd.f32 %v4264, 1.0
    %v4313 = vadd.f32 %v4265, 1.0
    %v4314 = vadd.f32 %v4266, 1.0
    %v4315 = vadd.f32 %v4267, 1.0
    %v4316 = vadd.f32 %v4268, 1.0
    %v4317 = vadd.f32 %v4269, 1.0
    %v4318 = vadd.f32 %v4270, 1.0
    %v4319 = vadd.f32 %v4271, 1.0
    %v4320 = vadd.f32 %v4272, 1.0
    %v4321 = vadd.f32 %v4273, 1.0
    %v4322 = vadd.f32 %v4274, 1.0
    %v4323 = vadd.f32 %v4275, 1.0
    %v4324 = vadd.f32 %v4276, 1.0
    %v4325 = vadd.f32 %v4277, 1.0
    %v4326 = vadd.f32 %v4278, 1.0
    %v4327 = vadd.f32 %v4279, 1.0
    %v4328 = vadd.f32 %v4280, 1.0
    %v4329 = vadd.f32 %v4281, 1.0
    %v4330 = vadd.f32 %v4282, 1.0
    %v4331 = vadd.f32 %v4283, 1.0
    %v4332 = vadd.f32 %v4284, 1.0
    %v4333 = vadd.f32 %v4285, 1.0
    %v4334 = vadd.f32 %v4286, 1.0
    %v4335 = vadd.f32 %v4287, 1.0
    %v4336 = vadd.f32 %v4288, 1.0
    %v4337 = vadd.f32 %v4289, 1.0
    %v4338 = vadd.f32 %v4290, 1.0
    %v4339 = vadd.f32 %v4291, 1.0
    %v4340 = vadd.f32 %v4292, 1.0
    %v4341 = vadd.f32 %v4293, 1.0
    %v4342 = vadd.f32 %v4294, 1.0
    %v4343 = vadd.f32 %v4295, 1.0
    %v4344 = vadd.f32 %v4296, 1.0
    %v4345 = vadd.f32 %v4297, 1.0
    %v4346 = vadd.f32 %v4298, 1.0
    %v4347 = vadd.f32 %v4299, 1.0
    %v4348 = vmul.f32 %v1569, %v4300
    %v4349 = vmul.f32 %v1570, %v4301
    %v4350 = vmul.f32 %v1571, %v4302
    %v4351 = vmul.f32 %v1572, %v4303
    %v4352 = vmul.f32 %v1573, %v4304
    %v4353 = vmul.f32 %v1574, %v4305
    %v4354 = vmul.f32 %v1575, %v4306
    %v4355 = vmul.f32 %v1576, %v4307
    %v4356 = vmul.f32 %v1577, %v4308
    %v4357 = vmul.f32 %v1578, %v4309
    %v4358 = vmul.f32 %v1579, %v4310
    %v4359 = vmul.f32 %v1580, %v4311
    %v4360 = vmul.f32 %v1581, %v4312
    %v4361 = vmul.f32 %v1582, %v4313
    %v4362 = vmul.f32 %v1583, %v4314
    %v4363 = vmul.f32 %v1584, %v4315
    %v4364 = vmul.f32 %v1585, %v4316
    %v4365 = vmul.f32 %v1586, %v4317
    %v4366 = vmul.f32 %v1587, %v4318
    %v4367 = vmul.f32 %v1588, %v4319
    %v4368 = vmul.f32 %v1589, %v4320
    %v4369 = vmul.f32 %v1590, %v4321
    %v4370 = vmul.f32 %v1591, %v4322
    %v4371 = vmul.f32 %v1592, %v4323
    %v4372 = vmul.f32 %v1593, %v4324
    %v4373 = vmul.f32 %v1594, %v4325
    %v4374 = vmul.f32 %v1595, %v4326
    %v4375 = vmul.f32 %v1596, %v4327
    %v4376 = vmul.f32 %v1597, %v4328
    %v4377 = vmul.f32 %v1598, %v4329
    %v4378 = vmul.f32 %v1599, %v4330
    %v4379 = vmul.f32 %v1600, %v4331
    %v4380 = vmul.f32 %v1601, %v4332
    %v4381 = vmul.f32 %v1602, %v4333
    %v4382 = vmul.f32 %v1603, %v4334
    %v4383 = vmul.f32 %v1604, %v4335
    %v4384 = vmul.f32 %v1605, %v4336
    %v4385 = vmul.f32 %v1606, %v4337
    %v4386 = vmul.f32 %v1607, %v4338
    %v4387 = vmul.f32 %v1608, %v4339
    %v4388 = vmul.f32 %v1609, %v4340
    %v4389 = vmul.f32 %v1610, %v4341
    %v4390 = vmul.f32 %v1611, %v4342
    %v4391 = vmul.f32 %v1612, %v4343
    %v4392 = vmul.f32 %v1613, %v4344
    %v4393 = vmul.f32 %v1614, %v4345
    %v4394 = vmul.f32 %v1615, %v4346
    %v4395 = vmul.f32 %v1616, %v4347
    %4396 = vst [vmem:[%s8] sm:$0xff] %v4348
    %4397 = vst [vmem:[%s8 + $0x8] sm:$0xff] %v4349
    %4398 = vst [vmem:[%s8 + $0x10] sm:$0xff] %v4350
    %4399 = vst [vmem:[%s8 + $0x18] sm:$0xff] %v4351
    %4400 = vst [vmem:[%s8 + $0x20] sm:$0xff] %v4352
    %4401 = vst [vmem:[%s8 + $0x28] sm:$0xff] %v4353
    %4402 = vst [vmem:[%s8 + $0x30] sm:$0xff] %v4354
    %4403 = vst [vmem:[%s8 + $0x38] sm:$0xff] %v4355
    %4404 = vst [vmem:[%s8 + $0x40] sm:$0xff] %v4356
    %4405 = vst [vmem:[%s8 + $0x48] sm:$0xff] %v4357
    %4406 = vst [vmem:[%s8 + $0x50] sm:$0xff] %v4358
    %4407 = vst [vmem:[%s8 + $0x58] sm:$0xff] %v4359
    %4408 = vst [vmem:[%s8 + $0x60] sm:$0xff] %v4360
    %4409 = vst [vmem:[%s8 + $0x68] sm:$0xff] %v4361
    %4410 = vst [vmem:[%s8 + $0x70] sm:$0xff] %v4362
    %4411 = vst [vmem:[%s8 + $0x78] sm:$0xff] %v4363
    %4412 = vst [vmem:[%s8 + $0x80] sm:$0xff] %v4364
    %4413 = vst [vmem:[%s8 + $0x88] sm:$0xff] %v4365
    %4414 = vst [vmem:[%s8 + $0x90] sm:$0xff] %v4366
    %4415 = vst [vmem:[%s8 + $0x98] sm:$0xff] %v4367
    %4416 = vst [vmem:[%s8 + $0xa0] sm:$0xff] %v4368
    %4417 = vst [vmem:[%s8 + $0xa8] sm:$0xff] %v4369
    %4418 = vst [vmem:[%s8 + $0xb0] sm:$0xff] %v4370
    %4419 = vst [vmem:[%s8 + $0xb8] sm:$0xff] %v4371
    %4420 = vst [vmem:[%s8 + $0xc0] sm:$0xff] %v4372
    %4421 = vst [vmem:[%s8 + $0xc8] sm:$0xff] %v4373
    %4422 = vst [vmem:[%s8 + $0xd0] sm:$0xff] %v4374
    %4423 = vst [vmem:[%s8 + $0xd8] sm:$0xff] %v4375
    %4424 = vst [vmem:[%s8 + $0xe0] sm:$0xff] %v4376
    %4425 = vst [vmem:[%s8 + $0xe8] sm:$0xff] %v4377
    %4426 = vst [vmem:[%s8 + $0xf0] sm:$0xff] %v4378
    %4427 = vst [vmem:[%s8 + $0xf8] sm:$0xff] %v4379
    %4428 = vst [vmem:[%s8 + $0x100] sm:$0xff] %v4380
    %4429 = vst [vmem:[%s8 + $0x108] sm:$0xff] %v4381
    %4430 = vst [vmem:[%s8 + $0x110] sm:$0xff] %v4382
    %4431 = vst [vmem:[%s8 + $0x118] sm:$0xff] %v4383
    %4432 = vst [vmem:[%s8 + $0x120] sm:$0xff] %v4384
    %4433 = vst [vmem:[%s8 + $0x128] sm:$0xff] %v4385
    %4434 = vst [vmem:[%s8 + $0x130] sm:$0xff] %v4386
    %4435 = vst [vmem:[%s8 + $0x138] sm:$0xff] %v4387
    %4436 = vst [vmem:[%s8 + $0x140] sm:$0xff] %v4388
    %4437 = vst [vmem:[%s8 + $0x148] sm:$0xff] %v4389
    %4438 = vst [vmem:[%s8 + $0x150] sm:$0xff] %v4390
    %4439 = vst [vmem:[%s8 + $0x158] sm:$0xff] %v4391
    %4440 = vst [vmem:[%s8 + $0x160] sm:$0xff] %v4392
    %4441 = vst [vmem:[%s8 + $0x168] sm:$0xff] %v4393
    %4442 = vst [vmem:[%s8 + $0x170] sm:$0xff] %v4394
    %4443 = vst [vmem:[%s8 + $0x178] sm:$0xff] %v4395
    // Predicated region
    $region54: #{stage3_gif_forward.1} parent=1 // pred_check
      _
    $region55: #{stage3_gif_forward.1} parent=1 // pred_check_branch
      %4445 = sbr.rel (0) target = $region57
    $region56: #{stage3_gif_forward.1} parent=1 // pred_region
      _
    $region57: #{stage3_gif_forward.1} parent=1 // pred_fallthru
      _
    // Predicated region
    $region58: #{stage3_gif_forward.1} parent=1 // pred_check
      _
    $region59: #{stage3_gif_forward.1} parent=1 // pred_check_branch
      %4447 = sbr.rel (0) target = $region61
    $region60: #{stage3_gif_forward.1} parent=1 // pred_region
      _
    $region61: #{stage3_gif_forward.1} parent=1 // pred_fallthru
      _
    %4448 = vsyncpa [#allocation4], 1
    %4449 = vsyncpa [#allocation7], 1
    %4450 = vsyncpa [#allocation10], 1
    %4451 = vsyncpa [#allocation5], 1

</llo_original>
